<compile_context>
chip_gen: v7x
topology: tpu7x:2x2x1
jax: 0.10.0
libtpu: 0.0.40
codegen_flags: <defaults>
</compile_context>

<pallas_src>
import functools
import math

import jax
import jax.numpy as jnp
import numpy as np
from jax.experimental import pallas as pl
from jax.experimental.pallas import tpu as pltpu

EPS = 1e-5       # PyTorch nn.LayerNorm default
NEG_INF = -1e30  # masked logits -> exp() underflows to exactly 0
                 # (safe because the causal diagonal is never masked -> no fully-masked rows)


# ----------------------------------------------------------------------------
# Shared math
# ----------------------------------------------------------------------------
def _layernorm(x, g, b):
    mu = jnp.mean(x, axis=-1, keepdims=True)
    var = jnp.mean(jnp.square(x - mu), axis=-1, keepdims=True)
    return (x - mu) * jax.lax.rsqrt(var + EPS) * g + b


# ----------------------------------------------------------------------------
# Pallas kernel: ONE decoder layer per grid step (weights streamed), activation
# carried across layers in a persistent VMEM scratch.  Grid = (B, L).
# ----------------------------------------------------------------------------
def fused_layer_kernel(num_heads,
                       x_ref, enc_ref,
                       ln1g_ref, ln1b_ref, wq1_ref, wk1_ref, wv1_ref, wo1_ref,
                       ln2g_ref, ln2b_ref, wq2_ref, wk2_ref, wv2_ref, wo2_ref,
                       ln3g_ref, ln3b_ref, w1_ref, b1_ref, w2_ref, b2_ref,
                       fg_ref, fb_ref,
                       out_ref, act_ref):
    layer = pl.program_id(1)
    num_layers = pl.num_programs(1)

    _, T, D = x_ref.shape          # block shapes are (1, T, D) / (1, S, D)
    S = enc_ref.shape[1]
    H = num_heads
    hd = D // H

    # Initialize the persistent activation scratch at the first layer of each batch element.
    @pl.when(layer == 0)
    def _init():
        act_ref[...] = x_ref[0].astype(jnp.float32)

    x = act_ref[...]                              # (T, D) f32 running activation
    enc = enc_ref[0].astype(jnp.float32)          # (S, D) f32

    # Additive causal bias (1, T, T): 0 where visible, NEG_INF above the diagonal.
    row = jax.lax.broadcasted_iota(jnp.int32, (1, T, T), 1)
    col = jax.lax.broadcasted_iota(jnp.int32, (1, T, T), 2)
    causal_bias = jnp.where(col > row, NEG_INF, 0.0).astype(jnp.float32)

    def split_heads(m):
        # (n, D) -> (H, n, hd): head-major batch for ONE batched einsum over all heads.
        n = m.shape[0]
        m3 = m.reshape(1, n, D)
        return jnp.concatenate([m3[:, :, h * hd:(h + 1) * hd] for h in range(H)], axis=0)

    def mha(q_in, kv_in, wq, wk, wv, wo, bias):
        # q_in: (T, D); kv_in: (kv_len, D).  wq is pre-scaled by D**-0.5 (folded at prep time,
        # matching the module's d_model**-0.5 scale).
        q = jnp.dot(q_in, wq, preferred_element_type=jnp.float32)
        k = jnp.dot(kv_in, wk, preferred_element_type=jnp.float32)
        v = jnp.dot(kv_in, wv, preferred_element_type=jnp.float32)
        qh = split_heads(q)                       # (H, T, hd)
        kh = split_heads(k)                       # (H, kv, hd)
        vh = split_heads(v)                       # (H, kv, hd)
        s = jnp.einsum('htd,hsd->hts', qh, kh, preferred_element_type=jnp.float32)
        if bias is not None:
            s = s + bias                          # single vadd, broadcast over heads
        s = s - jnp.max(s, axis=-1, keepdims=True)
        e = jnp.exp(s)
        p = e / jnp.sum(e, axis=-1, keepdims=True)   # exact divide (review: approx compounds)
        o = jnp.einsum('hts,hsd->htd', p, vh, preferred_element_type=jnp.float32)
        o = jnp.concatenate([o[h] for h in range(H)], axis=-1)   # (T, D), head order matches wo
        return jnp.dot(o, wo, preferred_element_type=jnp.float32)

    # ---- decoder block (weights read at point of use from the streamed layer slice) ----
    xn = _layernorm(x, ln1g_ref[0], ln1b_ref[0])
    sa = mha(xn, xn, wq1_ref[0], wk1_ref[0], wv1_ref[0], wo1_ref[0], causal_bias)
    # First layer uses the normed input as the residual base (matches the PyTorch module's
    # is_first=True branch: `input = LN(input); x = attn(input); input = input + x`).
    x = jnp.where(layer == 0, xn, x) + sa

    xn2 = _layernorm(x, ln2g_ref[0], ln2b_ref[0])
    x = x + mha(xn2, enc, wq2_ref[0], wk2_ref[0], wv2_ref[0], wo2_ref[0], None)

    xn3 = _layernorm(x, ln3g_ref[0], ln3b_ref[0])
    h1 = jnp.maximum(jnp.dot(xn3, w1_ref[0], preferred_element_type=jnp.float32) + b1_ref[0],
                     0.0)
    x = x + jnp.dot(h1, w2_ref[0], preferred_element_type=jnp.float32) + b2_ref[0]
    # nn.Dropout layers are identity in eval mode, so not emitted.

    act_ref[...] = x

    # Final LayerNorm + output store only once, after the last layer.
    @pl.when(layer == num_layers - 1)
    def _finalize():
        y = _layernorm(x, fg_ref[...].astype(jnp.float32), fb_ref[...].astype(jnp.float32))
        out_ref[...] = y.reshape(1, T, D).astype(out_ref.dtype)
        # TODO(synk): a lane-dense (B, T*D) output layout would avoid masked vst at D<128, but
        # the in-kernel cross-tile reshape costs a relayout; negligible either way at this size.


# ----------------------------------------------------------------------------
# Cost estimate (advisory, helps XLA schedule around the custom call)
# ----------------------------------------------------------------------------
def _cost_estimate(B, T, S, D, L, H, bytes_accessed):
    per_ex_layer = (
        4 * 2 * T * D * D          # self-attn q,k,v,o projections
        + 4 * T * T * D            # self-attn QK^T + PV
        + 2 * 2 * T * D * D        # cross-attn q,o projections
        + 2 * 2 * S * D * D        # cross-attn k,v projections
        + 4 * T * S * D            # cross-attn QK^T + PV
        + 16 * T * D * D           # FFN (D->4D->D)
    )
    return pl.CostEstimate(
        flops=int(B * L * per_ex_layer),
        transcendentals=int(B * L * H * T * (T + S)),   # exp() in the two softmaxes
        bytes_accessed=int(bytes_accessed),
    )


# ----------------------------------------------------------------------------
# Wrapper: stack per-layer weights along L and launch the (B, L) grid
# ----------------------------------------------------------------------------
def slate_decoder_forward(x, enc, layer_params, final_g, final_b, num_heads):
    B, T, D = x.shape
    S = enc.shape[1]
    L = len(layer_params)
    scale = D ** (-0.5)

    stacked = []
    for i in range(18):
        arrs = [lp[i] for lp in layer_params]
        if i in (2, 8):                      # wq (self- and cross-attn): fold in softmax scale
            arrs = [a * scale for a in arrs]
        stacked.append(jnp.stack(arrs, axis=0))     # (L, r, c)

    kernel = functools.partial(fused_layer_kernel, num_heads)

    in_specs = [
        pl.BlockSpec((1, T, D), lambda b, l: (b, 0, 0)),    # x: per-batch block, resident over l
        pl.BlockSpec((1, S, D), lambda b, l: (b, 0, 0)),    # encoder output
    ]
    for w in stacked:                                       # per-layer weight slice, streamed
        in_specs.append(pl.BlockSpec((1,) + w.shape[1:], lambda b, l: (l, 0, 0)))
    in_specs.append(pl.BlockSpec((1, D), lambda b, l: (0, 0)))   # final LN gamma
    in_specs.append(pl.BlockSpec((1, D), lambda b, l: (0, 0)))   # final LN beta

    out_specs = pl.BlockSpec((1, T, D), lambda b, l: (b, 0, 0))  # written once at l == L-1

    grid_spec = pltpu.PrefetchScalarGridSpec(
        num_scalar_prefetch=0,
        grid=(B, L),
        in_specs=in_specs,
        out_specs=out_specs,
        scratch_shapes=[pltpu.VMEM((T, D), jnp.float32)],        # persistent activation
    )

    total_bytes = (x.size * x.dtype.itemsize + enc.size * enc.dtype.itemsize
                   + sum(w.size * w.dtype.itemsize for w in stacked)
                   + final_g.size * final_g.dtype.itemsize
                   + final_b.size * final_b.dtype.itemsize
                   + B * T * D * x.dtype.itemsize)

    return pl.pallas_call(
        kernel,
        out_shape=jax.ShapeDtypeStruct((B, T, D), x.dtype),
        grid_spec=grid_spec,
        compiler_params=pltpu.CompilerParams(
            dimension_semantics=("parallel", "arbitrary"),       # batch parallel (v7x 2 TCs),
            vmem_limit_bytes=32 * 1024 * 1024,                   # layers sequential
        ),
        cost_estimate=_cost_estimate(B, T, S, D, L, num_heads, total_bytes),
    )(x, enc, *stacked, final_g, final_b)
    # TODO(synk): the module's forward_with_kv_cache incremental-decode path (true KV caching +
    # positional encoding) is not exercised by forward() and is not implemented here.


# ----------------------------------------------------------------------------
# Deterministic parameter init (mirrors the module's __init__ init schemes)
# ----------------------------------------------------------------------------
def init_params(key, feat_dim, num_layers):
    D = feat_dim
    gain = (3 * num_layers) ** (-0.5)

    def xavier(k, fi, fo, g=1.0):
        bound = g * math.sqrt(6.0 / (fi + fo))
        return jax.random.uniform(k, (fi, fo), jnp.float32, -bound, bound)

    def kaiming(k, fi, fo):  # kaiming_uniform_ with relu gain, fan_in = fi
        bound = math.sqrt(2.0) * math.sqrt(3.0 / fi)
        return jax.random.uniform(k, (fi, fo), jnp.float32, -bound, bound)

    ones = jnp.ones((1, D), jnp.float32)
    zeros = jnp.zeros((1, D), jnp.float32)
    layers = []
    for l in range(num_layers):
        ks = jax.random.split(jax.random.fold_in(key, l), 10)
        w = (
            ones, zeros,                                                 # self-attn LN
            xavier(ks[0], D, D), xavier(ks[1], D, D), xavier(ks[2], D, D),
            xavier(ks[3], D, D, gain),                                   # proj_o (gain)
            ones, zeros,                                                 # cross-attn LN
            xavier(ks[4], D, D), xavier(ks[5], D, D), xavier(ks[6], D, D),
            xavier(ks[7], D, D, gain),
            ones, zeros,                                                 # ffn LN
            kaiming(ks[8], D, 4 * D), jnp.zeros((1, 4 * D), jnp.float32),
            xavier(ks[9], 4 * D, D, gain), jnp.zeros((1, D), jnp.float32),
        )
        layers.append(w)
    final_g = jnp.ones((1, D), jnp.float32)
    final_b = jnp.zeros((1, D), jnp.float32)
    return layers, final_g, final_b


# ----------------------------------------------------------------------------
# Pure-JAX reference (PyTorch-faithful formulation) for a sanity check
# ----------------------------------------------------------------------------
def _ref_mha(q_in, kv_in, wq, wk, wv, wo, num_heads, causal):
    T, D = q_in.shape
    S = kv_in.shape[0]
    hd = D // num_heads
    scale = D ** (-0.5)   # module scales by d_model**-0.5 (d_q = q.shape[-1]), not head_dim
    q = jnp.dot(q_in, wq)
    k = jnp.dot(kv_in, wk)
    v = jnp.dot(kv_in, wv)
    out = jnp.zeros((T, D), jnp.float32)
    for h in range(num_heads):
        qh = q[:, h * hd:(h + 1) * hd]
        kh = k[:, h * hd:(h + 1) * hd]
        vh = v[:, h * hd:(h + 1) * hd]
        attn = jnp.dot(qh * scale, kh.T)
        if causal:
            r = jax.lax.broadcasted_iota(jnp.int32, (T, S), 0)
            c = jax.lax.broadcasted_iota(jnp.int32, (T, S), 1)
            attn = jnp.where(c > r, NEG_INF, attn)
        attn = attn - jnp.max(attn, axis=-1, keepdims=True)
        e = jnp.exp(attn)
        p = e / jnp.sum(e, axis=-1, keepdims=True)
        out = out + jnp.dot(jnp.dot(p, vh), wo[h * hd:(h + 1) * hd, :])
    return out


def _ref_block(x, enc, w, is_first, num_heads):
    (ln1_g, ln1_b, wq1, wk1, wv1, wo1,
     ln2_g, ln2_b, wq2, wk2, wv2, wo2,
     ln3_g, ln3_b, w1, b1, w2, b2) = w
    xn = _layernorm(x, ln1_g, ln1_b)
    sa = _ref_mha(xn, xn, wq1, wk1, wv1, wo1, num_heads, causal=True)
    x = (xn if is_first else x) + sa
    xn2 = _layernorm(x, ln2_g, ln2_b)
    x = x + _ref_mha(xn2, enc, wq2, wk2, wv2, wo2, num_heads, causal=False)
    xn3 = _layernorm(x, ln3_g, ln3_b)
    h = jnp.maximum(jnp.dot(xn3, w1) + b1, 0.0)
    return x + jnp.dot(h, w2) + b2


def ref_forward(x, enc, layer_params, final_g, final_b, num_heads):
    def per_example(xe, ence):
        for i, w in enumerate(layer_params):
            xe = _ref_block(xe, ence, w, i == 0, num_heads)
        return _layernorm(xe, final_g, final_b)
    return jax.vmap(per_example)(x, enc)


if __name__ == "__main__":
    # Shapes consistent with the module: feat_dim=32, num_slots=16 (source len),
    # num_layers=2, num_heads=4, target len T=8, batch B=2.
    B, T, S, D = 2, 8, 16, 32
    NUM_LAYERS, NUM_HEADS = 2, 4

    key = jax.random.PRNGKey(0)
    k_in, k_enc, k_par = jax.random.split(key, 3)
    x = jax.random.normal(k_in, (B, T, D), jnp.float32)
    enc = jax.random.normal(k_enc, (B, S, D), jnp.float32)
    layer_params, final_g, final_b = init_params(k_par, D, NUM_LAYERS)

    out = slate_decoder_forward(x, enc, layer_params, final_g, final_b, NUM_HEADS)
    out = jax.block_until_ready(out)

    ref = jax.block_until_ready(
        ref_forward(x, enc, layer_params, final_g, final_b, NUM_HEADS))
    np.testing.assert_allclose(np.asarray(out), np.asarray(ref), rtol=2e-2, atol=2e-2)

    print("KERNEL_OK")
</pallas_src>

<mosaic_0001>
module attributes {stable_mosaic.version = 11 : i64} {
  func.func @fused_layer_kernel(%arg0: i32, %arg1: i32, %arg2: memref<1x8x32xf32, #tpu.memory_space<vmem>>, %arg3: memref<1x16x32xf32, #tpu.memory_space<vmem>>, %arg4: memref<1x1x32xf32, #tpu.memory_space<vmem>>, %arg5: memref<1x1x32xf32, #tpu.memory_space<vmem>>, %arg6: memref<1x32x32xf32, #tpu.memory_space<vmem>>, %arg7: memref<1x32x32xf32, #tpu.memory_space<vmem>>, %arg8: memref<1x32x32xf32, #tpu.memory_space<vmem>>, %arg9: memref<1x32x32xf32, #tpu.memory_space<vmem>>, %arg10: memref<1x1x32xf32, #tpu.memory_space<vmem>>, %arg11: memref<1x1x32xf32, #tpu.memory_space<vmem>>, %arg12: memref<1x32x32xf32, #tpu.memory_space<vmem>>, %arg13: memref<1x32x32xf32, #tpu.memory_space<vmem>>, %arg14: memref<1x32x32xf32, #tpu.memory_space<vmem>>, %arg15: memref<1x32x32xf32, #tpu.memory_space<vmem>>, %arg16: memref<1x1x32xf32, #tpu.memory_space<vmem>>, %arg17: memref<1x1x32xf32, #tpu.memory_space<vmem>>, %arg18: memref<1x32x128xf32, #tpu.memory_space<vmem>>, %arg19: memref<1x1x128xf32, #tpu.memory_space<vmem>>, %arg20: memref<1x128x32xf32, #tpu.memory_space<vmem>>, %arg21: memref<1x1x32xf32, #tpu.memory_space<vmem>>, %arg22: memref<1x32xf32, #tpu.memory_space<vmem>>, %arg23: memref<1x32xf32, #tpu.memory_space<vmem>>, %arg24: memref<1x8x32xf32, #tpu.memory_space<vmem>>, %arg25: memref<8x32xf32, #tpu.memory_space<vmem>>) attributes {dimension_semantics = [#tpu.dimension_semantics<parallel>, #tpu.dimension_semantics<arbitrary>], iteration_bounds = array<i64: 2, 2>, scalar_prefetch = 0 : i64, scratch_operands = 1 : i64, tpu.core_type = #tpu.core_type<tc>, window_params = [{transform_indices = @transform_0, window_bounds = array<i64: 1, 8, 32>}, {transform_indices = @transform_1, window_bounds = array<i64: 1, 16, 32>}, {transform_indices = @transform_2, window_bounds = array<i64: 1, 1, 32>}, {transform_indices = @transform_3, window_bounds = array<i64: 1, 1, 32>}, {transform_indices = @transform_4, window_bounds = array<i64: 1, 32, 32>}, {transform_indices = @transform_5, window_bounds = array<i64: 1, 32, 32>}, {transform_indices = @transform_6, window_bounds = array<i64: 1, 32, 32>}, {transform_indices = @transform_7, window_bounds = array<i64: 1, 32, 32>}, {transform_indices = @transform_8, window_bounds = array<i64: 1, 1, 32>}, {transform_indices = @transform_9, window_bounds = array<i64: 1, 1, 32>}, {transform_indices = @transform_10, window_bounds = array<i64: 1, 32, 32>}, {transform_indices = @transform_11, window_bounds = array<i64: 1, 32, 32>}, {transform_indices = @transform_12, window_bounds = array<i64: 1, 32, 32>}, {transform_indices = @transform_13, window_bounds = array<i64: 1, 32, 32>}, {transform_indices = @transform_14, window_bounds = array<i64: 1, 1, 32>}, {transform_indices = @transform_15, window_bounds = array<i64: 1, 1, 32>}, {transform_indices = @transform_16, window_bounds = array<i64: 1, 32, 128>}, {transform_indices = @transform_17, window_bounds = array<i64: 1, 1, 128>}, {transform_indices = @transform_18, window_bounds = array<i64: 1, 128, 32>}, {transform_indices = @transform_19, window_bounds = array<i64: 1, 1, 32>}, {pipeline_mode = #tpu.pipeline_mode<synchronous>, transform_indices = @transform_20, window_bounds = array<i64: 1, 32>}, {pipeline_mode = #tpu.pipeline_mode<synchronous>, transform_indices = @transform_21, window_bounds = array<i64: 1, 32>}, {transform_indices = @transform_22, window_bounds = array<i64: 1, 8, 32>}]} {
    %c0_i32 = arith.constant 0 : i32
    %0 = arith.cmpi eq, %arg1, %c0_i32 : i32
    %1 = arith.extui %0 : i1 to i32
    %c0_i32_0 = arith.constant 0 : i32
    %2 = arith.cmpi ne, %1, %c0_i32_0 : i32
    scf.if %2 {
      %c0_98 = arith.constant 0 : index
      %c0_99 = arith.constant 0 : index
      %c0_100 = arith.constant 0 : index
      %217 = vector.load %arg2[%c0_98, %c0_99, %c0_100] : memref<1x8x32xf32, #tpu.memory_space<vmem>>, vector<1x8x32xf32>
      %218 = vector.shape_cast %217 : vector<1x8x32xf32> to vector<8x32xf32>
      %c0_101 = arith.constant 0 : index
      %c0_102 = arith.constant 0 : index
      %219 = vector.load %arg25[%c0_101, %c0_102] : memref<8x32xf32, #tpu.memory_space<vmem>>, vector<8x32xf32>
      tpu.vector_store %arg25[%c0_101, %c0_102], %218 {strides = array<i32>} : memref<8x32xf32, #tpu.memory_space<vmem>>, vector<8x32xf32>,
    } else {
    }
    %c0 = arith.constant 0 : index
    %c0_1 = arith.constant 0 : index
    %3 = vector.load %arg25[%c0, %c0_1] : memref<8x32xf32, #tpu.memory_space<vmem>>, vector<8x32xf32>
    %c0_2 = arith.constant 0 : index
    %c0_3 = arith.constant 0 : index
    %c0_4 = arith.constant 0 : index
    %4 = vector.load %arg3[%c0_2, %c0_3, %c0_4] : memref<1x16x32xf32, #tpu.memory_space<vmem>>, vector<1x16x32xf32>
    %5 = vector.shape_cast %4 : vector<1x16x32xf32> to vector<16x32xf32>
    %6 = tpu.iota {dimensions = array<i32: 1>} : vector<1x8x8xi32>
    %7 = tpu.iota {dimensions = array<i32: 2>} : vector<1x8x8xi32>
    %8 = arith.cmpi sgt, %7, %6 : vector<1x8x8xi32>
    %cst = arith.constant -1.000000e+30 : f32
    %cst_5 = arith.constant 0.000000e+00 : f32
    %9 = vector.broadcast %cst : f32 to vector<1x8x8xf32>
    %10 = vector.broadcast %cst_5 : f32 to vector<1x8x8xf32>
    %11 = arith.select %8, %9, %10 : vector<1x8x8xi1>, vector<1x8x8xf32>
    %c0_6 = arith.constant 0 : index
    %c0_7 = arith.constant 0 : index
    %c0_8 = arith.constant 0 : index
    %12 = vector.load %arg4[%c0_6, %c0_7, %c0_8] : memref<1x1x32xf32, #tpu.memory_space<vmem>>, vector<1x1x32xf32>
    %13 = vector.shape_cast %12 : vector<1x1x32xf32> to vector<1x32xf32>
    %c0_9 = arith.constant 0 : index
    %c0_10 = arith.constant 0 : index
    %c0_11 = arith.constant 0 : index
    %14 = vector.load %arg5[%c0_9, %c0_10, %c0_11] : memref<1x1x32xf32, #tpu.memory_space<vmem>>, vector<1x1x32xf32>
    %15 = vector.shape_cast %14 : vector<1x1x32xf32> to vector<1x32xf32>
    %cst_12 = arith.constant dense<0.000000e+00> : vector<8xf32>
    %16 = vector.multi_reduction <add>, %3, %cst_12 [1] : vector<8x32xf32> to vector<8xf32>
    %17 = vector.shape_cast %16 : vector<8xf32> to vector<8x1xf32>
    %cst_13 = arith.constant 3.200000e+01 : f32
    %18 = vector.broadcast %cst_13 : f32 to vector<8x1xf32>
    %19 = arith.divf %17, %18 : vector<8x1xf32>
    %20 = vector.broadcast %19 : vector<8x1xf32> to vector<8x32xf32>
    %21 = arith.subf %3, %20 : vector<8x32xf32>
    %22 = arith.mulf %21, %21 : vector<8x32xf32>
    %cst_14 = arith.constant dense<0.000000e+00> : vector<8xf32>
    %23 = vector.multi_reduction <add>, %22, %cst_14 [1] : vector<8x32xf32> to vector<8xf32>
    %24 = vector.shape_cast %23 : vector<8xf32> to vector<8x1xf32>
    %cst_15 = arith.constant 3.200000e+01 : f32
    %25 = vector.broadcast %cst_15 : f32 to vector<8x1xf32>
    %26 = arith.divf %24, %25 : vector<8x1xf32>
    %27 = vector.broadcast %19 : vector<8x1xf32> to vector<8x32xf32>
    %28 = arith.subf %3, %27 : vector<8x32xf32>
    %cst_16 = arith.constant 9.99999974E-6 : f32
    %29 = vector.broadcast %cst_16 : f32 to vector<8x1xf32>
    %30 = arith.addf %26, %29 : vector<8x1xf32>
    %31 = math.rsqrt %30 : vector<8x1xf32>
    %32 = vector.broadcast %31 : vector<8x1xf32> to vector<8x32xf32>
    %33 = arith.mulf %28, %32 : vector<8x32xf32>
    %34 = vector.broadcast %13 : vector<1x32xf32> to vector<8x32xf32>
    %35 = arith.mulf %33, %34 : vector<8x32xf32>
    %36 = vector.broadcast %15 : vector<1x32xf32> to vector<8x32xf32>
    %37 = arith.addf %35, %36 : vector<8x32xf32>
    %c0_17 = arith.constant 0 : index
    %c0_18 = arith.constant 0 : index
    %c0_19 = arith.constant 0 : index
    %38 = vector.load %arg6[%c0_17, %c0_18, %c0_19] : memref<1x32x32xf32, #tpu.memory_space<vmem>>, vector<1x32x32xf32>
    %39 = vector.shape_cast %38 : vector<1x32x32xf32> to vector<32x32xf32>
    %c0_20 = arith.constant 0 : index
    %c0_21 = arith.constant 0 : index
    %c0_22 = arith.constant 0 : index
    %40 = vector.load %arg7[%c0_20, %c0_21, %c0_22] : memref<1x32x32xf32, #tpu.memory_space<vmem>>, vector<1x32x32xf32>
    %41 = vector.shape_cast %40 : vector<1x32x32xf32> to vector<32x32xf32>
    %c0_23 = arith.constant 0 : index
    %c0_24 = arith.constant 0 : index
    %c0_25 = arith.constant 0 : index
    %42 = vector.load %arg8[%c0_23, %c0_24, %c0_25] : memref<1x32x32xf32, #tpu.memory_space<vmem>>, vector<1x32x32xf32>
    %43 = vector.shape_cast %42 : vector<1x32x32xf32> to vector<32x32xf32>
    %c0_26 = arith.constant 0 : index
    %c0_27 = arith.constant 0 : index
    %c0_28 = arith.constant 0 : index
    %44 = vector.load %arg9[%c0_26, %c0_27, %c0_28] : memref<1x32x32xf32, #tpu.memory_space<vmem>>, vector<1x32x32xf32>
    %45 = vector.shape_cast %44 : vector<1x32x32xf32> to vector<32x32xf32>
    %cst_29 = arith.constant dense<0.000000e+00> : vector<8x32xf32>
    %46 = tpu.matmul %37, %39, %cst_29 {dimension_numbers = #tpu.dot_dimension_numbers<[1], [0], [0], [1], [0, 0, 1, 1], [], []>} : vector<8x32xf32>, vector<32x32xf32>, vector<8x32xf32> -> vector<8x32xf32>
    %cst_30 = arith.constant dense<0.000000e+00> : vector<8x32xf32>
    %47 = tpu.matmul %37, %41, %cst_30 {dimension_numbers = #tpu.dot_dimension_numbers<[1], [0], [0], [1], [0, 0, 1, 1], [], []>} : vector<8x32xf32>, vector<32x32xf32>, vector<8x32xf32> -> vector<8x32xf32>
    %cst_31 = arith.constant dense<0.000000e+00> : vector<8x32xf32>
    %48 = tpu.matmul %37, %43, %cst_31 {dimension_numbers = #tpu.dot_dimension_numbers<[1], [0], [0], [1], [0, 0, 1, 1], [], []>} : vector<8x32xf32>, vector<32x32xf32>, vector<8x32xf32> -> vector<8x32xf32>
    %49 = vector.shape_cast %46 : vector<8x32xf32> to vector<1x8x32xf32>
    %50 = vector.extract_strided_slice %49 {offsets = [0, 0, 0], sizes = [1, 8, 8], strides = [1, 1, 1]} : vector<1x8x32xf32> to vector<1x8x8xf32>
    %51 = vector.extract_strided_slice %49 {offsets = [0, 0, 8], sizes = [1, 8, 8], strides = [1, 1, 1]} : vector<1x8x32xf32> to vector<1x8x8xf32>
    %52 = vector.extract_strided_slice %49 {offsets = [0, 0, 16], sizes = [1, 8, 8], strides = [1, 1, 1]} : vector<1x8x32xf32> to vector<1x8x8xf32>
    %53 = vector.extract_strided_slice %49 {offsets = [0, 0, 24], sizes = [1, 8, 8], strides = [1, 1, 1]} : vector<1x8x32xf32> to vector<1x8x8xf32>
    %54 = tpu.concatenate %50, %51, %52, %53 in 0 : vector<1x8x8xf32>, vector<1x8x8xf32>, vector<1x8x8xf32>, vector<1x8x8xf32> -> vector<4x8x8xf32>
    %55 = vector.shape_cast %47 : vector<8x32xf32> to vector<1x8x32xf32>
    %56 = vector.extract_strided_slice %55 {offsets = [0, 0, 0], sizes = [1, 8, 8], strides = [1, 1, 1]} : vector<1x8x32xf32> to vector<1x8x8xf32>
    %57 = vector.extract_strided_slice %55 {offsets = [0, 0, 8], sizes = [1, 8, 8], strides = [1, 1, 1]} : vector<1x8x32xf32> to vector<1x8x8xf32>
    %58 = vector.extract_strided_slice %55 {offsets = [0, 0, 16], sizes = [1, 8, 8], strides = [1, 1, 1]} : vector<1x8x32xf32> to vector<1x8x8xf32>
    %59 = vector.extract_strided_slice %55 {offsets = [0, 0, 24], sizes = [1, 8, 8], strides = [1, 1, 1]} : vector<1x8x32xf32> to vector<1x8x8xf32>
    %60 = tpu.concatenate %56, %57, %58, %59 in 0 : vector<1x8x8xf32>, vector<1x8x8xf32>, vector<1x8x8xf32>, vector<1x8x8xf32> -> vector<4x8x8xf32>
    %61 = vector.shape_cast %48 : vector<8x32xf32> to vector<1x8x32xf32>
    %62 = vector.extract_strided_slice %61 {offsets = [0, 0, 0], sizes = [1, 8, 8], strides = [1, 1, 1]} : vector<1x8x32xf32> to vector<1x8x8xf32>
    %63 = vector.extract_strided_slice %61 {offsets = [0, 0, 8], sizes = [1, 8, 8], strides = [1, 1, 1]} : vector<1x8x32xf32> to vector<1x8x8xf32>
    %64 = vector.extract_strided_slice %61 {offsets = [0, 0, 16], sizes = [1, 8, 8], strides = [1, 1, 1]} : vector<1x8x32xf32> to vector<1x8x8xf32>
    %65 = vector.extract_strided_slice %61 {offsets = [0, 0, 24], sizes = [1, 8, 8], strides = [1, 1, 1]} : vector<1x8x32xf32> to vector<1x8x8xf32>
    %66 = tpu.concatenate %62, %63, %64, %65 in 0 : vector<1x8x8xf32>, vector<1x8x8xf32>, vector<1x8x8xf32>, vector<1x8x8xf32> -> vector<4x8x8xf32>
    "tpu.trace_start"() <{level = 10 : i32, message = "htd,hsd->hts"}> : () -> ()
    %cst_32 = arith.constant dense<0.000000e+00> : vector<4x8x8xf32>
    %67 = tpu.matmul %54, %60, %cst_32 {dimension_numbers = #tpu.dot_dimension_numbers<[2], [2], [1], [1], [0, 0, 0, 1, 1, 1], [0], [0]>} : vector<4x8x8xf32>, vector<4x8x8xf32>, vector<4x8x8xf32> -> vector<4x8x8xf32>
    "tpu.trace_stop"() : () -> ()
    %68 = vector.broadcast %11 : vector<1x8x8xf32> to vector<4x8x8xf32>
    %69 = arith.addf %67, %68 : vector<4x8x8xf32>
    %cst_33 = arith.constant dense<0xFF800000> : vector<4x8xf32>
    %70 = vector.multi_reduction <maximumf>, %69, %cst_33 [2] : vector<4x8x8xf32> to vector<4x8xf32>
    %71 = vector.shape_cast %70 : vector<4x8xf32> to vector<4x8x1xf32>
    %72 = vector.broadcast %71 : vector<4x8x1xf32> to vector<4x8x8xf32>
    %73 = arith.subf %69, %72 : vector<4x8x8xf32>
    %74 = math.exp %73 : vector<4x8x8xf32>
    %cst_34 = arith.constant dense<0.000000e+00> : vector<4x8xf32>
    %75 = vector.multi_reduction <add>, %74, %cst_34 [2] : vector<4x8x8xf32> to vector<4x8xf32>
    %76 = vector.shape_cast %75 : vector<4x8xf32> to vector<4x8x1xf32>
    %77 = vector.broadcast %76 : vector<4x8x1xf32> to vector<4x8x8xf32>
    %78 = arith.divf %74, %77 : vector<4x8x8xf32>
    "tpu.trace_start"() <{level = 10 : i32, message = "hts,hsd->htd"}> : () -> ()
    %cst_35 = arith.constant dense<0.000000e+00> : vector<4x8x8xf32>
    %79 = tpu.matmul %78, %66, %cst_35 {dimension_numbers = #tpu.dot_dimension_numbers<[2], [1], [1], [2], [0, 0, 0, 1, 1, 2], [0], [0]>} : vector<4x8x8xf32>, vector<4x8x8xf32>, vector<4x8x8xf32> -> vector<4x8x8xf32>
    "tpu.trace_stop"() : () -> ()
    %80 = vector.extract_strided_slice %79 {offsets = [0, 0, 0], sizes = [1, 8, 8], strides = [1, 1, 1]} : vector<4x8x8xf32> to vector<1x8x8xf32>
    %81 = vector.shape_cast %80 : vector<1x8x8xf32> to vector<8x8xf32>
    %82 = vector.extract_strided_slice %79 {offsets = [1, 0, 0], sizes = [1, 8, 8], strides = [1, 1, 1]} : vector<4x8x8xf32> to vector<1x8x8xf32>
    %83 = vector.shape_cast %82 : vector<1x8x8xf32> to vector<8x8xf32>
    %84 = vector.extract_strided_slice %79 {offsets = [2, 0, 0], sizes = [1, 8, 8], strides = [1, 1, 1]} : vector<4x8x8xf32> to vector<1x8x8xf32>
    %85 = vector.shape_cast %84 : vector<1x8x8xf32> to vector<8x8xf32>
    %86 = vector.extract_strided_slice %79 {offsets = [3, 0, 0], sizes = [1, 8, 8], strides = [1, 1, 1]} : vector<4x8x8xf32> to vector<1x8x8xf32>
    %87 = vector.shape_cast %86 : vector<1x8x8xf32> to vector<8x8xf32>
    %88 = tpu.concatenate %81, %83, %85, %87 in 1 : vector<8x8xf32>, vector<8x8xf32>, vector<8x8xf32>, vector<8x8xf32> -> vector<8x32xf32>
    %cst_36 = arith.constant dense<0.000000e+00> : vector<8x32xf32>
    %89 = tpu.matmul %88, %45, %cst_36 {dimension_numbers = #tpu.dot_dimension_numbers<[1], [0], [0], [1], [0, 0, 1, 1], [], []>} : vector<8x32xf32>, vector<32x32xf32>, vector<8x32xf32> -> vector<8x32xf32>
    %c0_i32_37 = arith.constant 0 : i32
    %90 = arith.cmpi eq, %arg1, %c0_i32_37 : i32
    %91 = arith.select %90, %37, %3 : vector<8x32xf32>
    %92 = arith.addf %91, %89 : vector<8x32xf32>
    %c0_38 = arith.constant 0 : index
    %c0_39 = arith.constant 0 : index
    %c0_40 = arith.constant 0 : index
    %93 = vector.load %arg10[%c0_38, %c0_39, %c0_40] : memref<1x1x32xf32, #tpu.memory_space<vmem>>, vector<1x1x32xf32>
    %94 = vector.shape_cast %93 : vector<1x1x32xf32> to vector<1x32xf32>
    %c0_41 = arith.constant 0 : index
    %c0_42 = arith.constant 0 : index
    %c0_43 = arith.constant 0 : index
    %95 = vector.load %arg11[%c0_41, %c0_42, %c0_43] : memref<1x1x32xf32, #tpu.memory_space<vmem>>, vector<1x1x32xf32>
    %96 = vector.shape_cast %95 : vector<1x1x32xf32> to vector<1x32xf32>
    %cst_44 = arith.constant dense<0.000000e+00> : vector<8xf32>
    %97 = vector.multi_reduction <add>, %92, %cst_44 [1] : vector<8x32xf32> to vector<8xf32>
    %98 = vector.shape_cast %97 : vector<8xf32> to vector<8x1xf32>
    %cst_45 = arith.constant 3.200000e+01 : f32
    %99 = vector.broadcast %cst_45 : f32 to vector<8x1xf32>
    %100 = arith.divf %98, %99 : vector<8x1xf32>
    %101 = vector.broadcast %100 : vector<8x1xf32> to vector<8x32xf32>
    %102 = arith.subf %92, %101 : vector<8x32xf32>
    %103 = arith.mulf %102, %102 : vector<8x32xf32>
    %cst_46 = arith.constant dense<0.000000e+00> : vector<8xf32>
    %104 = vector.multi_reduction <add>, %103, %cst_46 [1] : vector<8x32xf32> to vector<8xf32>
    %105 = vector.shape_cast %104 : vector<8xf32> to vector<8x1xf32>
    %cst_47 = arith.constant 3.200000e+01 : f32
    %106 = vector.broadcast %cst_47 : f32 to vector<8x1xf32>
    %107 = arith.divf %105, %106 : vector<8x1xf32>
    %108 = vector.broadcast %100 : vector<8x1xf32> to vector<8x32xf32>
    %109 = arith.subf %92, %108 : vector<8x32xf32>
    %cst_48 = arith.constant 9.99999974E-6 : f32
    %110 = vector.broadcast %cst_48 : f32 to vector<8x1xf32>
    %111 = arith.addf %107, %110 : vector<8x1xf32>
    %112 = math.rsqrt %111 : vector<8x1xf32>
    %113 = vector.broadcast %112 : vector<8x1xf32> to vector<8x32xf32>
    %114 = arith.mulf %109, %113 : vector<8x32xf32>
    %115 = vector.broadcast %94 : vector<1x32xf32> to vector<8x32xf32>
    %116 = arith.mulf %114, %115 : vector<8x32xf32>
    %117 = vector.broadcast %96 : vector<1x32xf32> to vector<8x32xf32>
    %118 = arith.addf %116, %117 : vector<8x32xf32>
    %c0_49 = arith.constant 0 : index
    %c0_50 = arith.constant 0 : index
    %c0_51 = arith.constant 0 : index
    %119 = vector.load %arg12[%c0_49, %c0_50, %c0_51] : memref<1x32x32xf32, #tpu.memory_space<vmem>>, vector<1x32x32xf32>
    %120 = vector.shape_cast %119 : vector<1x32x32xf32> to vector<32x32xf32>
    %c0_52 = arith.constant 0 : index
    %c0_53 = arith.constant 0 : index
    %c0_54 = arith.constant 0 : index
    %121 = vector.load %arg13[%c0_52, %c0_53, %c0_54] : memref<1x32x32xf32, #tpu.memory_space<vmem>>, vector<1x32x32xf32>
    %122 = vector.shape_cast %121 : vector<1x32x32xf32> to vector<32x32xf32>
    %c0_55 = arith.constant 0 : index
    %c0_56 = arith.constant 0 : index
    %c0_57 = arith.constant 0 : index
    %123 = vector.load %arg14[%c0_55, %c0_56, %c0_57] : memref<1x32x32xf32, #tpu.memory_space<vmem>>, vector<1x32x32xf32>
    %124 = vector.shape_cast %123 : vector<1x32x32xf32> to vector<32x32xf32>
    %c0_58 = arith.constant 0 : index
    %c0_59 = arith.constant 0 : index
    %c0_60 = arith.constant 0 : index
    %125 = vector.load %arg15[%c0_58, %c0_59, %c0_60] : memref<1x32x32xf32, #tpu.memory_space<vmem>>, vector<1x32x32xf32>
    %126 = vector.shape_cast %125 : vector<1x32x32xf32> to vector<32x32xf32>
    %cst_61 = arith.constant dense<0.000000e+00> : vector<8x32xf32>
    %127 = tpu.matmul %118, %120, %cst_61 {dimension_numbers = #tpu.dot_dimension_numbers<[1], [0], [0], [1], [0, 0, 1, 1], [], []>} : vector<8x32xf32>, vector<32x32xf32>, vector<8x32xf32> -> vector<8x32xf32>
    %cst_62 = arith.constant dense<0.000000e+00> : vector<16x32xf32>
    %128 = tpu.matmul %5, %122, %cst_62 {dimension_numbers = #tpu.dot_dimension_numbers<[1], [0], [0], [1], [0, 0, 1, 1], [], []>} : vector<16x32xf32>, vector<32x32xf32>, vector<16x32xf32> -> vector<16x32xf32>
    %cst_63 = arith.constant dense<0.000000e+00> : vector<16x32xf32>
    %129 = tpu.matmul %5, %124, %cst_63 {dimension_numbers = #tpu.dot_dimension_numbers<[1], [0], [0], [1], [0, 0, 1, 1], [], []>} : vector<16x32xf32>, vector<32x32xf32>, vector<16x32xf32> -> vector<16x32xf32>
    %130 = vector.shape_cast %127 : vector<8x32xf32> to vector<1x8x32xf32>
    %131 = vector.extract_strided_slice %130 {offsets = [0, 0, 0], sizes = [1, 8, 8], strides = [1, 1, 1]} : vector<1x8x32xf32> to vector<1x8x8xf32>
    %132 = vector.extract_strided_slice %130 {offsets = [0, 0, 8], sizes = [1, 8, 8], strides = [1, 1, 1]} : vector<1x8x32xf32> to vector<1x8x8xf32>
    %133 = vector.extract_strided_slice %130 {offsets = [0, 0, 16], sizes = [1, 8, 8], strides = [1, 1, 1]} : vector<1x8x32xf32> to vector<1x8x8xf32>
    %134 = vector.extract_strided_slice %130 {offsets = [0, 0, 24], sizes = [1, 8, 8], strides = [1, 1, 1]} : vector<1x8x32xf32> to vector<1x8x8xf32>
    %135 = tpu.concatenate %131, %132, %133, %134 in 0 : vector<1x8x8xf32>, vector<1x8x8xf32>, vector<1x8x8xf32>, vector<1x8x8xf32> -> vector<4x8x8xf32>
    %136 = vector.shape_cast %128 : vector<16x32xf32> to vector<1x16x32xf32>
    %137 = vector.extract_strided_slice %136 {offsets = [0, 0, 0], sizes = [1, 16, 8], strides = [1, 1, 1]} : vector<1x16x32xf32> to vector<1x16x8xf32>
    %138 = vector.extract_strided_slice %136 {offsets = [0, 0, 8], sizes = [1, 16, 8], strides = [1, 1, 1]} : vector<1x16x32xf32> to vector<1x16x8xf32>
    %139 = vector.extract_strided_slice %136 {offsets = [0, 0, 16], sizes = [1, 16, 8], strides = [1, 1, 1]} : vector<1x16x32xf32> to vector<1x16x8xf32>
    %140 = vector.extract_strided_slice %136 {offsets = [0, 0, 24], sizes = [1, 16, 8], strides = [1, 1, 1]} : vector<1x16x32xf32> to vector<1x16x8xf32>
    %141 = tpu.concatenate %137, %138, %139, %140 in 0 : vector<1x16x8xf32>, vector<1x16x8xf32>, vector<1x16x8xf32>, vector<1x16x8xf32> -> vector<4x16x8xf32>
    %142 = vector.shape_cast %129 : vector<16x32xf32> to vector<1x16x32xf32>
    %143 = vector.extract_strided_slice %142 {offsets = [0, 0, 0], sizes = [1, 16, 8], strides = [1, 1, 1]} : vector<1x16x32xf32> to vector<1x16x8xf32>
    %144 = vector.extract_strided_slice %142 {offsets = [0, 0, 8], sizes = [1, 16, 8], strides = [1, 1, 1]} : vector<1x16x32xf32> to vector<1x16x8xf32>
    %145 = vector.extract_strided_slice %142 {offsets = [0, 0, 16], sizes = [1, 16, 8], strides = [1, 1, 1]} : vector<1x16x32xf32> to vector<1x16x8xf32>
    %146 = vector.extract_strided_slice %142 {offsets = [0, 0, 24], sizes = [1, 16, 8], strides = [1, 1, 1]} : vector<1x16x32xf32> to vector<1x16x8xf32>
    %147 = tpu.concatenate %143, %144, %145, %146 in 0 : vector<1x16x8xf32>, vector<1x16x8xf32>, vector<1x16x8xf32>, vector<1x16x8xf32> -> vector<4x16x8xf32>
    "tpu.trace_start"() <{level = 10 : i32, message = "htd,hsd->hts"}> : () -> ()
    %cst_64 = arith.constant dense<0.000000e+00> : vector<4x8x16xf32>
    %148 = tpu.matmul %135, %141, %cst_64 {dimension_numbers = #tpu.dot_dimension_numbers<[2], [2], [1], [1], [0, 0, 0, 1, 1, 1], [0], [0]>} : vector<4x8x8xf32>, vector<4x16x8xf32>, vector<4x8x16xf32> -> vector<4x8x16xf32>
    "tpu.trace_stop"() : () -> ()
    %cst_65 = arith.constant dense<0xFF800000> : vector<4x8xf32>
    %149 = vector.multi_reduction <maximumf>, %148, %cst_65 [2] : vector<4x8x16xf32> to vector<4x8xf32>
    %150 = vector.shape_cast %149 : vector<4x8xf32> to vector<4x8x1xf32>
    %151 = vector.broadcast %150 : vector<4x8x1xf32> to vector<4x8x16xf32>
    %152 = arith.subf %148, %151 : vector<4x8x16xf32>
    %153 = math.exp %152 : vector<4x8x16xf32>
    %cst_66 = arith.constant dense<0.000000e+00> : vector<4x8xf32>
    %154 = vector.multi_reduction <add>, %153, %cst_66 [2] : vector<4x8x16xf32> to vector<4x8xf32>
    %155 = vector.shape_cast %154 : vector<4x8xf32> to vector<4x8x1xf32>
    %156 = vector.broadcast %155 : vector<4x8x1xf32> to vector<4x8x16xf32>
    %157 = arith.divf %153, %156 : vector<4x8x16xf32>
    "tpu.trace_start"() <{level = 10 : i32, message = "hts,hsd->htd"}> : () -> ()
    %cst_67 = arith.constant dense<0.000000e+00> : vector<4x8x8xf32>
    %158 = tpu.matmul %157, %147, %cst_67 {dimension_numbers = #tpu.dot_dimension_numbers<[2], [1], [1], [2], [0, 0, 0, 1, 1, 2], [0], [0]>} : vector<4x8x16xf32>, vector<4x16x8xf32>, vector<4x8x8xf32> -> vector<4x8x8xf32>
    "tpu.trace_stop"() : () -> ()
    %159 = vector.extract_strided_slice %158 {offsets = [0, 0, 0], sizes = [1, 8, 8], strides = [1, 1, 1]} : vector<4x8x8xf32> to vector<1x8x8xf32>
    %160 = vector.shape_cast %159 : vector<1x8x8xf32> to vector<8x8xf32>
    %161 = vector.extract_strided_slice %158 {offsets = [1, 0, 0], sizes = [1, 8, 8], strides = [1, 1, 1]} : vector<4x8x8xf32> to vector<1x8x8xf32>
    %162 = vector.shape_cast %161 : vector<1x8x8xf32> to vector<8x8xf32>
    %163 = vector.extract_strided_slice %158 {offsets = [2, 0, 0], sizes = [1, 8, 8], strides = [1, 1, 1]} : vector<4x8x8xf32> to vector<1x8x8xf32>
    %164 = vector.shape_cast %163 : vector<1x8x8xf32> to vector<8x8xf32>
    %165 = vector.extract_strided_slice %158 {offsets = [3, 0, 0], sizes = [1, 8, 8], strides = [1, 1, 1]} : vector<4x8x8xf32> to vector<1x8x8xf32>
    %166 = vector.shape_cast %165 : vector<1x8x8xf32> to vector<8x8xf32>
    %167 = tpu.concatenate %160, %162, %164, %166 in 1 : vector<8x8xf32>, vector<8x8xf32>, vector<8x8xf32>, vector<8x8xf32> -> vector<8x32xf32>
    %cst_68 = arith.constant dense<0.000000e+00> : vector<8x32xf32>
    %168 = tpu.matmul %167, %126, %cst_68 {dimension_numbers = #tpu.dot_dimension_numbers<[1], [0], [0], [1], [0, 0, 1, 1], [], []>} : vector<8x32xf32>, vector<32x32xf32>, vector<8x32xf32> -> vector<8x32xf32>
    %169 = arith.addf %92, %168 : vector<8x32xf32>
    %c0_69 = arith.constant 0 : index
    %c0_70 = arith.constant 0 : index
    %c0_71 = arith.constant 0 : index
    %170 = vector.load %arg16[%c0_69, %c0_70, %c0_71] : memref<1x1x32xf32, #tpu.memory_space<vmem>>, vector<1x1x32xf32>
    %171 = vector.shape_cast %170 : vector<1x1x32xf32> to vector<1x32xf32>
    %c0_72 = arith.constant 0 : index
    %c0_73 = arith.constant 0 : index
    %c0_74 = arith.constant 0 : index
    %172 = vector.load %arg17[%c0_72, %c0_73, %c0_74] : memref<1x1x32xf32, #tpu.memory_space<vmem>>, vector<1x1x32xf32>
    %173 = vector.shape_cast %172 : vector<1x1x32xf32> to vector<1x32xf32>
    %cst_75 = arith.constant dense<0.000000e+00> : vector<8xf32>
    %174 = vector.multi_reduction <add>, %169, %cst_75 [1] : vector<8x32xf32> to vector<8xf32>
    %175 = vector.shape_cast %174 : vector<8xf32> to vector<8x1xf32>
    %cst_76 = arith.constant 3.200000e+01 : f32
    %176 = vector.broadcast %cst_76 : f32 to vector<8x1xf32>
    %177 = arith.divf %175, %176 : vector<8x1xf32>
    %178 = vector.broadcast %177 : vector<8x1xf32> to vector<8x32xf32>
    %179 = arith.subf %169, %178 : vector<8x32xf32>
    %180 = arith.mulf %179, %179 : vector<8x32xf32>
    %cst_77 = arith.constant dense<0.000000e+00> : vector<8xf32>
    %181 = vector.multi_reduction <add>, %180, %cst_77 [1] : vector<8x32xf32> to vector<8xf32>
    %182 = vector.shape_cast %181 : vector<8xf32> to vector<8x1xf32>
    %cst_78 = arith.constant 3.200000e+01 : f32
    %183 = vector.broadcast %cst_78 : f32 to vector<8x1xf32>
    %184 = arith.divf %182, %183 : vector<8x1xf32>
    %185 = vector.broadcast %177 : vector<8x1xf32> to vector<8x32xf32>
    %186 = arith.subf %169, %185 : vector<8x32xf32>
    %cst_79 = arith.constant 9.99999974E-6 : f32
    %187 = vector.broadcast %cst_79 : f32 to vector<8x1xf32>
    %188 = arith.addf %184, %187 : vector<8x1xf32>
    %189 = math.rsqrt %188 : vector<8x1xf32>
    %190 = vector.broadcast %189 : vector<8x1xf32> to vector<8x32xf32>
    %191 = arith.mulf %186, %190 : vector<8x32xf32>
    %192 = vector.broadcast %171 : vector<1x32xf32> to vector<8x32xf32>
    %193 = arith.mulf %191, %192 : vector<8x32xf32>
    %194 = vector.broadcast %173 : vector<1x32xf32> to vector<8x32xf32>
    %195 = arith.addf %193, %194 : vector<8x32xf32>
    %c0_80 = arith.constant 0 : index
    %c0_81 = arith.constant 0 : index
    %c0_82 = arith.constant 0 : index
    %196 = vector.load %arg18[%c0_80, %c0_81, %c0_82] : memref<1x32x128xf32, #tpu.memory_space<vmem>>, vector<1x32x128xf32>
    %197 = vector.shape_cast %196 : vector<1x32x128xf32> to vector<32x128xf32>
    %cst_83 = arith.constant dense<0.000000e+00> : vector<8x128xf32>
    %198 = tpu.matmul %195, %197, %cst_83 {dimension_numbers = #tpu.dot_dimension_numbers<[1], [0], [0], [1], [0, 0, 1, 1], [], []>} : vector<8x32xf32>, vector<32x128xf32>, vector<8x128xf32> -> vector<8x128xf32>
    %c0_84 = arith.constant 0 : index
    %c0_85 = arith.constant 0 : index
    %c0_86 = arith.constant 0 : index
    %199 = vector.load %arg19[%c0_84, %c0_85, %c0_86] : memref<1x1x128xf32, #tpu.memory_space<vmem>>, vector<1x1x128xf32>
    %200 = vector.shape_cast %199 : vector<1x1x128xf32> to vector<1x128xf32>
    %201 = vector.broadcast %200 : vector<1x128xf32> to vector<8x128xf32>
    %202 = arith.addf %198, %201 : vector<8x128xf32>
    %cst_87 = arith.constant 0.000000e+00 : f32
    %203 = vector.broadcast %cst_87 : f32 to vector<8x128xf32>
    %204 = arith.maximumf %202, %203 : vector<8x128xf32>
    %c0_88 = arith.constant 0 : index
    %c0_89 = arith.constant 0 : index
    %c0_90 = arith.constant 0 : index
    %205 = vector.load %arg20[%c0_88, %c0_89, %c0_90] : memref<1x128x32xf32, #tpu.memory_space<vmem>>, vector<1x128x32xf32>
    %206 = vector.shape_cast %205 : vector<1x128x32xf32> to vector<128x32xf32>
    %cst_91 = arith.constant dense<0.000000e+00> : vector<8x32xf32>
    %207 = tpu.matmul %204, %206, %cst_91 {dimension_numbers = #tpu.dot_dimension_numbers<[1], [0], [0], [1], [0, 0, 1, 1], [], []>} : vector<8x128xf32>, vector<128x32xf32>, vector<8x32xf32> -> vector<8x32xf32>
    %208 = arith.addf %169, %207 : vector<8x32xf32>
    %c0_92 = arith.constant 0 : index
    %c0_93 = arith.constant 0 : index
    %c0_94 = arith.constant 0 : index
    %209 = vector.load %arg21[%c0_92, %c0_93, %c0_94] : memref<1x1x32xf32, #tpu.memory_space<vmem>>, vector<1x1x32xf32>
    %210 = vector.shape_cast %209 : vector<1x1x32xf32> to vector<1x32xf32>
    %211 = vector.broadcast %210 : vector<1x32xf32> to vector<8x32xf32>
    %212 = arith.addf %208, %211 : vector<8x32xf32>
    %c0_95 = arith.constant 0 : index
    %c0_96 = arith.constant 0 : index
    %213 = vector.load %arg25[%c0_95, %c0_96] : memref<8x32xf32, #tpu.memory_space<vmem>>, vector<8x32xf32>
    tpu.vector_store %arg25[%c0_95, %c0_96], %212 {strides = array<i32>} : memref<8x32xf32, #tpu.memory_space<vmem>>, vector<8x32xf32>,
    %c1_i32 = arith.constant 1 : i32
    %214 = arith.cmpi eq, %arg1, %c1_i32 : i32
    %215 = arith.extui %214 : i1 to i32
    %c0_i32_97 = arith.constant 0 : i32
    %216 = arith.cmpi ne, %215, %c0_i32_97 : i32
    scf.if %216 {
      %c0_98 = arith.constant 0 : index
      %c0_99 = arith.constant 0 : index
      %217 = vector.load %arg22[%c0_98, %c0_99] : memref<1x32xf32, #tpu.memory_space<vmem>>, vector<1x32xf32>
      %c0_100 = arith.constant 0 : index
      %c0_101 = arith.constant 0 : index
      %218 = vector.load %arg23[%c0_100, %c0_101] : memref<1x32xf32, #tpu.memory_space<vmem>>, vector<1x32xf32>
      %cst_102 = arith.constant dense<0.000000e+00> : vector<8xf32>
      %219 = vector.multi_reduction <add>, %212, %cst_102 [1] : vector<8x32xf32> to vector<8xf32>
      %220 = vector.shape_cast %219 : vector<8xf32> to vector<8x1xf32>
      %cst_103 = arith.constant 3.200000e+01 : f32
      %221 = vector.broadcast %cst_103 : f32 to vector<8x1xf32>
      %222 = arith.divf %220, %221 : vector<8x1xf32>
      %223 = vector.broadcast %222 : vector<8x1xf32> to vector<8x32xf32>
      %224 = arith.subf %212, %223 : vector<8x32xf32>
      %225 = arith.mulf %224, %224 : vector<8x32xf32>
      %cst_104 = arith.constant dense<0.000000e+00> : vector<8xf32>
      %226 = vector.multi_reduction <add>, %225, %cst_104 [1] : vector<8x32xf32> to vector<8xf32>
      %227 = vector.shape_cast %226 : vector<8xf32> to vector<8x1xf32>
      %cst_105 = arith.constant 3.200000e+01 : f32
      %228 = vector.broadcast %cst_105 : f32 to vector<8x1xf32>
      %229 = arith.divf %227, %228 : vector<8x1xf32>
      %230 = vector.broadcast %222 : vector<8x1xf32> to vector<8x32xf32>
      %231 = arith.subf %212, %230 : vector<8x32xf32>
      %cst_106 = arith.constant 9.99999974E-6 : f32
      %232 = vector.broadcast %cst_106 : f32 to vector<8x1xf32>
      %233 = arith.addf %229, %232 : vector<8x1xf32>
      %234 = math.rsqrt %233 : vector<8x1xf32>
      %235 = vector.broadcast %234 : vector<8x1xf32> to vector<8x32xf32>
      %236 = arith.mulf %231, %235 : vector<8x32xf32>
      %237 = vector.broadcast %217 : vector<1x32xf32> to vector<8x32xf32>
      %238 = arith.mulf %236, %237 : vector<8x32xf32>
      %239 = vector.broadcast %218 : vector<1x32xf32> to vector<8x32xf32>
      %240 = arith.addf %238, %239 : vector<8x32xf32>
      %241 = vector.shape_cast %240 : vector<8x32xf32> to vector<1x8x32xf32>
      %c0_107 = arith.constant 0 : index
      %c0_108 = arith.constant 0 : index
      %c0_109 = arith.constant 0 : index
      %242 = vector.load %arg24[%c0_107, %c0_108, %c0_109] : memref<1x8x32xf32, #tpu.memory_space<vmem>>, vector<1x8x32xf32>
      tpu.vector_store %arg24[%c0_107, %c0_108, %c0_109], %241 {strides = array<i32>} : memref<1x8x32xf32, #tpu.memory_space<vmem>>, vector<1x8x32xf32>,
    } else {
    }
    return
  }
  func.func @transform_0(%arg0: i32, %arg1: i32) -> (i32, i32, i32) {
    %c0_i32 = arith.constant 0 : i32
    %c0_i32_0 = arith.constant 0 : i32
    %c0_i32_1 = arith.constant 0 : i32
    return %arg0, %c0_i32, %c0_i32_0 : i32, i32, i32
  }
  func.func @transform_1(%arg0: i32, %arg1: i32) -> (i32, i32, i32) {
    %c0_i32 = arith.constant 0 : i32
    %c0_i32_0 = arith.constant 0 : i32
    %c0_i32_1 = arith.constant 0 : i32
    return %arg0, %c0_i32, %c0_i32_0 : i32, i32, i32
  }
  func.func @transform_2(%arg0: i32, %arg1: i32) -> (i32, i32, i32) {
    %c0_i32 = arith.constant 0 : i32
    %c0_i32_0 = arith.constant 0 : i32
    %c0_i32_1 = arith.constant 0 : i32
    return %arg1, %c0_i32, %c0_i32_0 : i32, i32, i32
  }
  func.func @transform_3(%arg0: i32, %arg1: i32) -> (i32, i32, i32) {
    %c0_i32 = arith.constant 0 : i32
    %c0_i32_0 = arith.constant 0 : i32
    %c0_i32_1 = arith.constant 0 : i32
    return %arg1, %c0_i32, %c0_i32_0 : i32, i32, i32
  }
  func.func @transform_4(%arg0: i32, %arg1: i32) -> (i32, i32, i32) {
    %c0_i32 = arith.constant 0 : i32
    %c0_i32_0 = arith.constant 0 : i32
    %c0_i32_1 = arith.constant 0 : i32
    return %arg1, %c0_i32, %c0_i32_0 : i32, i32, i32
  }
  func.func @transform_5(%arg0: i32, %arg1: i32) -> (i32, i32, i32) {
    %c0_i32 = arith.constant 0 : i32
    %c0_i32_0 = arith.constant 0 : i32
    %c0_i32_1 = arith.constant 0 : i32
    return %arg1, %c0_i32, %c0_i32_0 : i32, i32, i32
  }
  func.func @transform_6(%arg0: i32, %arg1: i32) -> (i32, i32, i32) {
    %c0_i32 = arith.constant 0 : i32
    %c0_i32_0 = arith.constant 0 : i32
    %c0_i32_1 = arith.constant 0 : i32
    return %arg1, %c0_i32, %c0_i32_0 : i32, i32, i32
  }
  func.func @transform_7(%arg0: i32, %arg1: i32) -> (i32, i32, i32) {
    %c0_i32 = arith.constant 0 : i32
    %c0_i32_0 = arith.constant 0 : i32
    %c0_i32_1 = arith.constant 0 : i32
    return %arg1, %c0_i32, %c0_i32_0 : i32, i32, i32
  }
  func.func @transform_8(%arg0: i32, %arg1: i32) -> (i32, i32, i32) {
    %c0_i32 = arith.constant 0 : i32
    %c0_i32_0 = arith.constant 0 : i32
    %c0_i32_1 = arith.constant 0 : i32
    return %arg1, %c0_i32, %c0_i32_0 : i32, i32, i32
  }
  func.func @transform_9(%arg0: i32, %arg1: i32) -> (i32, i32, i32) {
    %c0_i32 = arith.constant 0 : i32
    %c0_i32_0 = arith.constant 0 : i32
    %c0_i32_1 = arith.constant 0 : i32
    return %arg1, %c0_i32, %c0_i32_0 : i32, i32, i32
  }
  func.func @transform_10(%arg0: i32, %arg1: i32) -> (i32, i32, i32) {
    %c0_i32 = arith.constant 0 : i32
    %c0_i32_0 = arith.constant 0 : i32
    %c0_i32_1 = arith.constant 0 : i32
    return %arg1, %c0_i32, %c0_i32_0 : i32, i32, i32
  }
  func.func @transform_11(%arg0: i32, %arg1: i32) -> (i32, i32, i32) {
    %c0_i32 = arith.constant 0 : i32
    %c0_i32_0 = arith.constant 0 : i32
    %c0_i32_1 = arith.constant 0 : i32
    return %arg1, %c0_i32, %c0_i32_0 : i32, i32, i32
  }
  func.func @transform_12(%arg0: i32, %arg1: i32) -> (i32, i32, i32) {
    %c0_i32 = arith.constant 0 : i32
    %c0_i32_0 = arith.constant 0 : i32
    %c0_i32_1 = arith.constant 0 : i32
    return %arg1, %c0_i32, %c0_i32_0 : i32, i32, i32
  }
  func.func @transform_13(%arg0: i32, %arg1: i32) -> (i32, i32, i32) {
    %c0_i32 = arith.constant 0 : i32
    %c0_i32_0 = arith.constant 0 : i32
    %c0_i32_1 = arith.constant 0 : i32
    return %arg1, %c0_i32, %c0_i32_0 : i32, i32, i32
  }
  func.func @transform_14(%arg0: i32, %arg1: i32) -> (i32, i32, i32) {
    %c0_i32 = arith.constant 0 : i32
    %c0_i32_0 = arith.constant 0 : i32
    %c0_i32_1 = arith.constant 0 : i32
    return %arg1, %c0_i32, %c0_i32_0 : i32, i32, i32
  }
  func.func @transform_15(%arg0: i32, %arg1: i32) -> (i32, i32, i32) {
    %c0_i32 = arith.constant 0 : i32
    %c0_i32_0 = arith.constant 0 : i32
    %c0_i32_1 = arith.constant 0 : i32
    return %arg1, %c0_i32, %c0_i32_0 : i32, i32, i32
  }
  func.func @transform_16(%arg0: i32, %arg1: i32) -> (i32, i32, i32) {
    %c0_i32 = arith.constant 0 : i32
    %c0_i32_0 = arith.constant 0 : i32
    %c0_i32_1 = arith.constant 0 : i32
    return %arg1, %c0_i32, %c0_i32_0 : i32, i32, i32
  }
  func.func @transform_17(%arg0: i32, %arg1: i32) -> (i32, i32, i32) {
    %c0_i32 = arith.constant 0 : i32
    %c0_i32_0 = arith.constant 0 : i32
    %c0_i32_1 = arith.constant 0 : i32
    return %arg1, %c0_i32, %c0_i32_0 : i32, i32, i32
  }
  func.func @transform_18(%arg0: i32, %arg1: i32) -> (i32, i32, i32) {
    %c0_i32 = arith.constant 0 : i32
    %c0_i32_0 = arith.constant 0 : i32
    %c0_i32_1 = arith.constant 0 : i32
    return %arg1, %c0_i32, %c0_i32_0 : i32, i32, i32
  }
  func.func @transform_19(%arg0: i32, %arg1: i32) -> (i32, i32, i32) {
    %c0_i32 = arith.constant 0 : i32
    %c0_i32_0 = arith.constant 0 : i32
    %c0_i32_1 = arith.constant 0 : i32
    return %arg1, %c0_i32, %c0_i32_0 : i32, i32, i32
  }
  func.func @transform_20(%arg0: i32, %arg1: i32) -> (i32, i32) {
    %c0_i32 = arith.constant 0 : i32
    %c0_i32_0 = arith.constant 0 : i32
    %c0_i32_1 = arith.constant 0 : i32
    return %c0_i32, %c0_i32_0 : i32, i32
  }
  func.func @transform_21(%arg0: i32, %arg1: i32) -> (i32, i32) {
    %c0_i32 = arith.constant 0 : i32
    %c0_i32_0 = arith.constant 0 : i32
    %c0_i32_1 = arith.constant 0 : i32
    return %c0_i32, %c0_i32_0 : i32, i32
  }
  func.func @transform_22(%arg0: i32, %arg1: i32) -> (i32, i32, i32) {
    %c0_i32 = arith.constant 0 : i32
    %c0_i32_0 = arith.constant 0 : i32
    %c0_i32_1 = arith.constant 0 : i32
    return %arg0, %c0_i32, %c0_i32_0 : i32, i32, i32
  }
}

</mosaic_0001>

<llo_original>
// kernel: tpu_custom_call.1
$region0: #{tpu_custom_call.1}
  #allocation0 [shape = 'u32[]', space=smem, size = 0x4, offset = 0x4, fixed_abs, tag = 'smem constant byte address 0x4 - core index']
  #allocation1 [shape = 'u32[144,128]{1,0:T(1,128)}', space=vmem, size = 0x12000, scoped, tag = 'internal scratch']
  #allocation2 [shape = 'f32[8,32]{1,0:T(8,128)}', space=vmem, size = 0x1000, scoped, tag = 'scratch operand']
  %s0 = inlined_call_operand.hbm [shape: f32[2,8,32], index: 0, kind: input, shape index: {}]
  %s1 = inlined_call_operand.hbm [shape: f32[2,16,32], index: 1, kind: input, shape index: {}]
  %s2 = inlined_call_operand.vmem [shape: f32[2,1,32], index: 2, kind: input, shape index: {}]
  %s3 = inlined_call_operand.vmem [shape: f32[2,1,32], index: 3, kind: input, shape index: {}]
  %s4 = inlined_call_operand.vmem [shape: f32[2,32,32], index: 4, kind: input, shape index: {}]
  %s5 = inlined_call_operand.vmem [shape: f32[2,32,32], index: 5, kind: input, shape index: {}]
  %s6 = inlined_call_operand.vmem [shape: f32[2,32,32], index: 6, kind: input, shape index: {}]
  %s7 = inlined_call_operand.vmem [shape: f32[2,32,32], index: 7, kind: input, shape index: {}]
  %s8 = inlined_call_operand.hbm [shape: f32[2,1,32], index: 8, kind: input, shape index: {}]
  %s9 = inlined_call_operand.hbm [shape: f32[2,1,32], index: 9, kind: input, shape index: {}]
  %s10 = inlined_call_operand.vmem [shape: f32[2,32,32], index: 10, kind: input, shape index: {}]
  %s11 = inlined_call_operand.hbm [shape: f32[2,32,32], index: 11, kind: input, shape index: {}]
  %s12 = inlined_call_operand.hbm [shape: f32[2,32,32], index: 12, kind: input, shape index: {}]
  %s13 = inlined_call_operand.hbm [shape: f32[2,32,32], index: 13, kind: input, shape index: {}]
  %s14 = inlined_call_operand.hbm [shape: f32[2,1,32], index: 14, kind: input, shape index: {}]
  %s15 = inlined_call_operand.hbm [shape: f32[2,1,32], index: 15, kind: input, shape index: {}]
  %s16 = inlined_call_operand.hbm [shape: f32[2,32,128], index: 16, kind: input, shape index: {}]
  %s17 = inlined_call_operand.hbm [shape: f32[2,1,128], index: 17, kind: input, shape index: {}]
  %s18 = inlined_call_operand.vmem [shape: f32[2,128,32], index: 18, kind: input, shape index: {}]
  %s19 = inlined_call_operand.hbm [shape: f32[2,1,32], index: 19, kind: input, shape index: {}]
  %s20 = inlined_call_operand.vmem [shape: f32[1,32], index: 20, kind: input, shape index: {}]
  %s21 = inlined_call_operand.vmem [shape: f32[1,32], index: 21, kind: input, shape index: {}]
  %s22 = inlined_call_operand.hbm [shape: f32[2,8,32], index: 22, kind: output, shape index: {}]
  %s23 = sld [smem:[#allocation0]]
  $region177: #{tpu_custom_call.1} parent=0
    _
  %s25 = ssub.s32 1, %s23
  %s26 = scalar_select 0, %s25, %s23
  $region1: #{tpu_custom_call.1} parent=0
    #allocation3 [shape = 'u8[8192]{0}', space=vmem, size = 0x2000, scoped, tag = 'input window, operand 0']
    #allocation4 [shape = 's32[2]{0}', space=sflag, size = 0x8, scoped, tag = 'scoped memory for tpu_custom_call.1']
    #allocation5 [shape = 's32[2]{0}', space=sflag, size = 0x8, scoped, tag = 'scoped memory for tpu_custom_call.1']
    #allocation6 [shape = 'u8[16384]{0}', space=vmem, size = 0x4000, scoped, tag = 'input window, operand 1']
    #allocation7 [shape = 's32[2]{0}', space=sflag, size = 0x8, scoped, tag = 'scoped memory for tpu_custom_call.1']
    #allocation8 [shape = 'u8[1024]{0}', space=vmem, size = 0x400, scoped, tag = 'input window, operand 8']
    #allocation9 [shape = 'u8[1024]{0}', space=vmem, size = 0x400, scoped, tag = 'input window, operand 9']
    #allocation10 [shape = 's32[2]{0}', space=sflag, size = 0x8, scoped, tag = 'scoped memory for tpu_custom_call.1']
    #allocation11 [shape = 'u8[32768]{0}', space=vmem, size = 0x8000, scoped, tag = 'input window, operand 11']
    #allocation12 [shape = 'u8[32768]{0}', space=vmem, size = 0x8000, scoped, tag = 'input window, operand 12']
    #allocation13 [shape = 's32[2]{0}', space=sflag, size = 0x8, scoped, tag = 'scoped memory for tpu_custom_call.1']
    #allocation14 [shape = 'u8[32768]{0}', space=vmem, size = 0x8000, scoped, tag = 'input window, operand 13']
    #allocation15 [shape = 'u8[1024]{0}', space=vmem, size = 0x400, scoped, tag = 'input window, operand 14']
    #allocation16 [shape = 's32[2]{0}', space=sflag, size = 0x8, scoped, tag = 'scoped memory for tpu_custom_call.1']
    #allocation17 [shape = 'u8[1024]{0}', space=vmem, size = 0x400, scoped, tag = 'input window, operand 15']
    #allocation18 [shape = 'u8[32768]{0}', space=vmem, size = 0x8000, scoped, tag = 'input window, operand 16']
    #allocation19 [shape = 's32[2]{0}', space=sflag, size = 0x8, scoped, tag = 'scoped memory for tpu_custom_call.1']
    #allocation20 [shape = 'u8[1024]{0}', space=vmem, size = 0x400, scoped, tag = 'input window, operand 17']
    #allocation21 [shape = 'u8[1024]{0}', space=vmem, size = 0x400, scoped, tag = 'input window, operand 19']
    #allocation22 [shape = 's32[2]{0}', space=sflag, size = 0x8, scoped, tag = 'scoped memory for tpu_custom_call.1']
    #allocation23 [shape = 'u8[8192]{0}', space=vmem, size = 0x2000, scoped, tag = 'output window, operand 0']
    %27 = vsyncpa [#allocation4], 0
    %s28 = scalar_lea.sflag [#allocation4], 1
    %29 = vsyncpa %s28, 0
    %30 = vsyncpa [#allocation7], 0
    %s31 = scalar_lea.sflag [#allocation7], 1
    %32 = vsyncpa %s31, 0
    %33 = vsyncpa [#allocation10], 0
    %s34 = scalar_lea.sflag [#allocation10], 1
    %35 = vsyncpa %s34, 0
    %36 = vsyncpa [#allocation13], 0
    %s37 = scalar_lea.sflag [#allocation13], 1
    %38 = vsyncpa %s37, 0
    %39 = vsyncpa [#allocation16], 0
    %s40 = scalar_lea.sflag [#allocation16], 1
    %41 = vsyncpa %s40, 0
    %42 = vsyncpa [#allocation19], 0
    %s43 = scalar_lea.sflag [#allocation19], 1
    %44 = vsyncpa %s43, 0
    %45 = vsyncpa [#allocation22], 0
    %s46 = scalar_lea.sflag [#allocation22], 1
    %47 = vsyncpa %s46, 0
    %48 = vsyncpa [#allocation5], 0
    %s49 = scalar_lea.sflag [#allocation5], 1
    %50 = vsyncpa %s49, 0
    loop: start=0, step=1, limit=6
    $region2: #{tpu_custom_call.1} parent=1 // loop_pre_header
      _
    $region3: #{tpu_custom_call.1} parent=1 // loop_header
      %s52 = sphi 0, %s56
      %p53 = scmp.ge.s32.totalorder %s52, 6
      %s59 = sphi 0, %s71
      %s60 = sphi 0, %s67
      %s61 = sphi 0, %s59
      %s62 = sphi 0, %s60
      %s63 = sphi 0, %s61
      %s64 = sphi 0, %s62
      %s74 = sphi 0, %s76
      %s77 = sphi 0, %s74
      %s78 = sphi 0, %s77
      %s94 = sphi 0, %s78
      %s100 = sphi 0, %s102
      %s103 = sphi 0, %s100
      %s104 = sphi 0, %s103
      %s120 = sphi 0, %s104
      %s126 = sphi 0, %s128
      %s129 = sphi 0, %s126
      %s130 = sphi 0, %s129
      %s146 = sphi 0, %s130
      %s152 = sphi 0, %s154
      %s155 = sphi 0, %s152
      %s156 = sphi 0, %s155
      %s172 = sphi 0, %s156
      %s178 = sphi 0, %s180
      %s181 = sphi 0, %s178
      %s182 = sphi 0, %s181
      %s198 = sphi 0, %s182
      %s204 = sphi 0, %s206
      %s207 = sphi 0, %s204
      %s208 = sphi 0, %s207
      %s224 = sphi 0, %s208
      %s230 = sphi 0, %s232
      %s233 = sphi 0, %s230
      %s234 = sphi 0, %s233
      %s250 = sphi 0, %s234
      %s256 = sphi 0, %s258
      %s259 = sphi 0, %s256
      %s260 = sphi 0, %s259
      %s276 = sphi 0, %s260
      %s282 = sphi 0, %s284
      %s285 = sphi 0, %s282
      %s286 = sphi 0, %s285
      %s302 = sphi 0, %s286
      %s308 = sphi 0, %s310
      %s311 = sphi 0, %s308
      %s312 = sphi 0, %s311
      %s328 = sphi 0, %s312
      %s334 = sphi 0, %s336
      %s337 = sphi 0, %s334
      %s338 = sphi 0, %s337
      %s354 = sphi 0, %s338
      %s360 = sphi 0, %s362
      %s363 = sphi 0, %s360
      %s364 = sphi 0, %s363
      %s380 = sphi 0, %s364
      %s386 = sphi 0, %s388
      %s389 = sphi 0, %s386
      %s390 = sphi 0, %s389
      %s406 = sphi 0, %s390
      %s412 = sphi 0, %s414
      %s415 = sphi 0, %s412
      %s416 = sphi 0, %s415
      %s432 = sphi 0, %s416
      %s438 = sphi 0, %s440
      %s441 = sphi 0, %s438
      %s442 = sphi 0, %s441
      %s458 = sphi 0, %s442
      %s464 = sphi 0, %s466
      %s467 = sphi 0, %s464
      %s468 = sphi 0, %s467
      %s484 = sphi 0, %s468
      %s490 = sphi 0, %s492
      %s493 = sphi 0, %s490
      %s494 = sphi 0, %s493
      %s510 = sphi 0, %s494
      %s516 = sphi 0, %s518
      %s519 = sphi 0, %s516
      %s520 = sphi 0, %s519
      %s536 = sphi 0, %s520
      %s542 = sphi 0, %s544
      %s545 = sphi 0, %s542
      %s546 = sphi 0, %s545
      %s562 = sphi 0, %s546
      %s568 = sphi 0, %s570
      %s571 = sphi 0, %s568
      %s572 = sphi 0, %s571
      %s588 = sphi 0, %s572
      %s592 = sphi 0, %s592
      %s594 = sphi 0, %s592
      %s595 = sphi 0, %s594
      %s609 = sphi 0, %s595
      %s613 = sphi 0, %s613
      %s615 = sphi 0, %s613
      %s616 = sphi 0, %s615
      %s630 = sphi 0, %s616
      %s636 = sphi 0, %s638
      %s639 = sphi 0, %s636
      %s640 = sphi 0, %s639
      %s656 = sphi 0, %s640
    $region4: #{tpu_custom_call.1} parent=1 // loop_header_branch
      %55 = sbr.rel (%p53) target = $region8
    $region5: #{tpu_custom_call.1} parent=1 // loop_body
      %s57 = ssub.s32 %s52, 1
      %s58 = ssub.s32 %s52, 2
      %s65 = sadd.s32 1, %s60
      %p66 = scmp.ge.s32.totalorder %s65, 2
      %s67 = scalar_select %p66, 0, %s65
      %s68 = sadd.s32 1, %s59
      %s69 = scalar_select %p66, %s68, %s59
      %p70 = scmp.ge.s32.totalorder %s69, 2
      %s71 = scalar_select %p70, 0, %s69
      %s72 = ssub.s32 %s59, %s71
      %p73 = scmp.eq.s32.totalorder %s72, 0
      %s75 = sadd.s32 %s74, 1
      %s76 = scalar_select %p73, %s74, %s75
      %p79 = pneg %p73
      %p80 = scmp.eq.s32.totalorder %s52, 3
      %p81 = por %p79, %p80
      %p82 = scmp.ne.s32.totalorder %s74, %s77
      %p83 = scmp.eq.s32.totalorder %s52, 0
      %p84 = por %p82, %p83
      %p85 = scmp.ne.s32.totalorder %s74, %s77
      %p86 = scmp.eq.s32.totalorder %s57, 3
      %p87 = por %p85, %p86
      %p88 = scmp.ne.s32.totalorder %s77, %s78
      %p89 = scmp.eq.s32.totalorder %s57, 0
      %p90 = por %p88, %p89
      %p91 = scmp.ne.s32.totalorder %s77, %s78
      %p92 = scmp.eq.s32.totalorder %s58, 3
      %p93 = por %p91, %p92
      %p95 = scmp.ne.s32.totalorder %s78, %s94
      %p96 = scmp.eq.s32.totalorder %s58, 0
      %p97 = por %p95, %p96
      %s98 = ssub.s32 %s59, %s71
      %p99 = scmp.eq.s32.totalorder %s98, 0
      %s101 = sadd.s32 %s100, 1
      %s102 = scalar_select %p99, %s100, %s101
      %p105 = pneg %p99
      %p106 = scmp.eq.s32.totalorder %s52, 3
      %p107 = por %p105, %p106
      %p108 = scmp.ne.s32.totalorder %s100, %s103
      %p109 = scmp.eq.s32.totalorder %s52, 0
      %p110 = por %p108, %p109
      %p111 = scmp.ne.s32.totalorder %s100, %s103
      %p112 = scmp.eq.s32.totalorder %s57, 3
      %p113 = por %p111, %p112
      %p114 = scmp.ne.s32.totalorder %s103, %s104
      %p115 = scmp.eq.s32.totalorder %s57, 0
      %p116 = por %p114, %p115
      %p117 = scmp.ne.s32.totalorder %s103, %s104
      %p118 = scmp.eq.s32.totalorder %s58, 3
      %p119 = por %p117, %p118
      %p121 = scmp.ne.s32.totalorder %s104, %s120
      %p122 = scmp.eq.s32.totalorder %s58, 0
      %p123 = por %p121, %p122
      %s124 = ssub.s32 %s60, %s67
      %p125 = scmp.eq.s32.totalorder %s124, 0
      %s127 = sadd.s32 %s126, 1
      %s128 = scalar_select %p125, %s126, %s127
      %p131 = pneg %p125
      %p132 = scmp.eq.s32.totalorder %s52, 3
      %p133 = por %p131, %p132
      %p134 = scmp.ne.s32.totalorder %s126, %s129
      %p135 = scmp.eq.s32.totalorder %s52, 0
      %p136 = por %p134, %p135
      %p137 = scmp.ne.s32.totalorder %s126, %s129
      %p138 = scmp.eq.s32.totalorder %s57, 3
      %p139 = por %p137, %p138
      %p140 = scmp.ne.s32.totalorder %s129, %s130
      %p141 = scmp.eq.s32.totalorder %s57, 0
      %p142 = por %p140, %p141
      %p143 = scmp.ne.s32.totalorder %s129, %s130
      %p144 = scmp.eq.s32.totalorder %s58, 3
      %p145 = por %p143, %p144
      %p147 = scmp.ne.s32.totalorder %s130, %s146
      %p148 = scmp.eq.s32.totalorder %s58, 0
      %p149 = por %p147, %p148
      %s150 = ssub.s32 %s60, %s67
      %p151 = scmp.eq.s32.totalorder %s150, 0
      %s153 = sadd.s32 %s152, 1
      %s154 = scalar_select %p151, %s152, %s153
      %p157 = pneg %p151
      %p158 = scmp.eq.s32.totalorder %s52, 3
      %p159 = por %p157, %p158
      %p160 = scmp.ne.s32.totalorder %s152, %s155
      %p161 = scmp.eq.s32.totalorder %s52, 0
      %p162 = por %p160, %p161
      %p163 = scmp.ne.s32.totalorder %s152, %s155
      %p164 = scmp.eq.s32.totalorder %s57, 3
      %p165 = por %p163, %p164
      %p166 = scmp.ne.s32.totalorder %s155, %s156
      %p167 = scmp.eq.s32.totalorder %s57, 0
      %p168 = por %p166, %p167
      %p169 = scmp.ne.s32.totalorder %s155, %s156
      %p170 = scmp.eq.s32.totalorder %s58, 3
      %p171 = por %p169, %p170
      %p173 = scmp.ne.s32.totalorder %s156, %s172
      %p174 = scmp.eq.s32.totalorder %s58, 0
      %p175 = por %p173, %p174
      %s176 = ssub.s32 %s60, %s67
      %p177 = scmp.eq.s32.totalorder %s176, 0
      %s179 = sadd.s32 %s178, 1
      %s180 = scalar_select %p177, %s178, %s179
      %p183 = pneg %p177
      %p184 = scmp.eq.s32.totalorder %s52, 3
      %p185 = por %p183, %p184
      %p186 = scmp.ne.s32.totalorder %s178, %s181
      %p187 = scmp.eq.s32.totalorder %s52, 0
      %p188 = por %p186, %p187
      %p189 = scmp.ne.s32.totalorder %s178, %s181
      %p190 = scmp.eq.s32.totalorder %s57, 3
      %p191 = por %p189, %p190
      %p192 = scmp.ne.s32.totalorder %s181, %s182
      %p193 = scmp.eq.s32.totalorder %s57, 0
      %p194 = por %p192, %p193
      %p195 = scmp.ne.s32.totalorder %s181, %s182
      %p196 = scmp.eq.s32.totalorder %s58, 3
      %p197 = por %p195, %p196
      %p199 = scmp.ne.s32.totalorder %s182, %s198
      %p200 = scmp.eq.s32.totalorder %s58, 0
      %p201 = por %p199, %p200
      %s202 = ssub.s32 %s60, %s67
      %p203 = scmp.eq.s32.totalorder %s202, 0
      %s205 = sadd.s32 %s204, 1
      %s206 = scalar_select %p203, %s204, %s205
      %p209 = pneg %p203
      %p210 = scmp.eq.s32.totalorder %s52, 3
      %p211 = por %p209, %p210
      %p212 = scmp.ne.s32.totalorder %s204, %s207
      %p213 = scmp.eq.s32.totalorder %s52, 0
      %p214 = por %p212, %p213
      %p215 = scmp.ne.s32.totalorder %s204, %s207
      %p216 = scmp.eq.s32.totalorder %s57, 3
      %p217 = por %p215, %p216
      %p218 = scmp.ne.s32.totalorder %s207, %s208
      %p219 = scmp.eq.s32.totalorder %s57, 0
      %p220 = por %p218, %p219
      %p221 = scmp.ne.s32.totalorder %s207, %s208
      %p222 = scmp.eq.s32.totalorder %s58, 3
      %p223 = por %p221, %p222
      %p225 = scmp.ne.s32.totalorder %s208, %s224
      %p226 = scmp.eq.s32.totalorder %s58, 0
      %p227 = por %p225, %p226
      %s228 = ssub.s32 %s60, %s67
      %p229 = scmp.eq.s32.totalorder %s228, 0
      %s231 = sadd.s32 %s230, 1
      %s232 = scalar_select %p229, %s230, %s231
      %p235 = pneg %p229
      %p236 = scmp.eq.s32.totalorder %s52, 3
      %p237 = por %p235, %p236
      %p238 = scmp.ne.s32.totalorder %s230, %s233
      %p239 = scmp.eq.s32.totalorder %s52, 0
      %p240 = por %p238, %p239
      %p241 = scmp.ne.s32.totalorder %s230, %s233
      %p242 = scmp.eq.s32.totalorder %s57, 3
      %p243 = por %p241, %p242
      %p244 = scmp.ne.s32.totalorder %s233, %s234
      %p245 = scmp.eq.s32.totalorder %s57, 0
      %p246 = por %p244, %p245
      %p247 = scmp.ne.s32.totalorder %s233, %s234
      %p248 = scmp.eq.s32.totalorder %s58, 3
      %p249 = por %p247, %p248
      %p251 = scmp.ne.s32.totalorder %s234, %s250
      %p252 = scmp.eq.s32.totalorder %s58, 0
      %p253 = por %p251, %p252
      %s254 = ssub.s32 %s60, %s67
      %p255 = scmp.eq.s32.totalorder %s254, 0
      %s257 = sadd.s32 %s256, 1
      %s258 = scalar_select %p255, %s256, %s257
      %p261 = pneg %p255
      %p262 = scmp.eq.s32.totalorder %s52, 3
      %p263 = por %p261, %p262
      %p264 = scmp.ne.s32.totalorder %s256, %s259
      %p265 = scmp.eq.s32.totalorder %s52, 0
      %p266 = por %p264, %p265
      %p267 = scmp.ne.s32.totalorder %s256, %s259
      %p268 = scmp.eq.s32.totalorder %s57, 3
      %p269 = por %p267, %p268
      %p270 = scmp.ne.s32.totalorder %s259, %s260
      %p271 = scmp.eq.s32.totalorder %s57, 0
      %p272 = por %p270, %p271
      %p273 = scmp.ne.s32.totalorder %s259, %s260
      %p274 = scmp.eq.s32.totalorder %s58, 3
      %p275 = por %p273, %p274
      %p277 = scmp.ne.s32.totalorder %s260, %s276
      %p278 = scmp.eq.s32.totalorder %s58, 0
      %p279 = por %p277, %p278
      %s280 = ssub.s32 %s60, %s67
      %p281 = scmp.eq.s32.totalorder %s280, 0
      %s283 = sadd.s32 %s282, 1
      %s284 = scalar_select %p281, %s282, %s283
      %p287 = pneg %p281
      %p288 = scmp.eq.s32.totalorder %s52, 3
      %p289 = por %p287, %p288
      %p290 = scmp.ne.s32.totalorder %s282, %s285
      %p291 = scmp.eq.s32.totalorder %s52, 0
      %p292 = por %p290, %p291
      %p293 = scmp.ne.s32.totalorder %s282, %s285
      %p294 = scmp.eq.s32.totalorder %s57, 3
      %p295 = por %p293, %p294
      %p296 = scmp.ne.s32.totalorder %s285, %s286
      %p297 = scmp.eq.s32.totalorder %s57, 0
      %p298 = por %p296, %p297
      %p299 = scmp.ne.s32.totalorder %s285, %s286
      %p300 = scmp.eq.s32.totalorder %s58, 3
      %p301 = por %p299, %p300
      %p303 = scmp.ne.s32.totalorder %s286, %s302
      %p304 = scmp.eq.s32.totalorder %s58, 0
      %p305 = por %p303, %p304
      %s306 = ssub.s32 %s60, %s67
      %p307 = scmp.eq.s32.totalorder %s306, 0
      %s309 = sadd.s32 %s308, 1
      %s310 = scalar_select %p307, %s308, %s309
      %p313 = pneg %p307
      %p314 = scmp.eq.s32.totalorder %s52, 3
      %p315 = por %p313, %p314
      %p316 = scmp.ne.s32.totalorder %s308, %s311
      %p317 = scmp.eq.s32.totalorder %s52, 0
      %p318 = por %p316, %p317
      %p319 = scmp.ne.s32.totalorder %s308, %s311
      %p320 = scmp.eq.s32.totalorder %s57, 3
      %p321 = por %p319, %p320
      %p322 = scmp.ne.s32.totalorder %s311, %s312
      %p323 = scmp.eq.s32.totalorder %s57, 0
      %p324 = por %p322, %p323
      %p325 = scmp.ne.s32.totalorder %s311, %s312
      %p326 = scmp.eq.s32.totalorder %s58, 3
      %p327 = por %p325, %p326
      %p329 = scmp.ne.s32.totalorder %s312, %s328
      %p330 = scmp.eq.s32.totalorder %s58, 0
      %p331 = por %p329, %p330
      %s332 = ssub.s32 %s60, %s67
      %p333 = scmp.eq.s32.totalorder %s332, 0
      %s335 = sadd.s32 %s334, 1
      %s336 = scalar_select %p333, %s334, %s335
      %p339 = pneg %p333
      %p340 = scmp.eq.s32.totalorder %s52, 3
      %p341 = por %p339, %p340
      %p342 = scmp.ne.s32.totalorder %s334, %s337
      %p343 = scmp.eq.s32.totalorder %s52, 0
      %p344 = por %p342, %p343
      %p345 = scmp.ne.s32.totalorder %s334, %s337
      %p346 = scmp.eq.s32.totalorder %s57, 3
      %p347 = por %p345, %p346
      %p348 = scmp.ne.s32.totalorder %s337, %s338
      %p349 = scmp.eq.s32.totalorder %s57, 0
      %p350 = por %p348, %p349
      %p351 = scmp.ne.s32.totalorder %s337, %s338
      %p352 = scmp.eq.s32.totalorder %s58, 3
      %p353 = por %p351, %p352
      %p355 = scmp.ne.s32.totalorder %s338, %s354
      %p356 = scmp.eq.s32.totalorder %s58, 0
      %p357 = por %p355, %p356
      %s358 = ssub.s32 %s60, %s67
      %p359 = scmp.eq.s32.totalorder %s358, 0
      %s361 = sadd.s32 %s360, 1
      %s362 = scalar_select %p359, %s360, %s361
      %p365 = pneg %p359
      %p366 = scmp.eq.s32.totalorder %s52, 3
      %p367 = por %p365, %p366
      %p368 = scmp.ne.s32.totalorder %s360, %s363
      %p369 = scmp.eq.s32.totalorder %s52, 0
      %p370 = por %p368, %p369
      %p371 = scmp.ne.s32.totalorder %s360, %s363
      %p372 = scmp.eq.s32.totalorder %s57, 3
      %p373 = por %p371, %p372
      %p374 = scmp.ne.s32.totalorder %s363, %s364
      %p375 = scmp.eq.s32.totalorder %s57, 0
      %p376 = por %p374, %p375
      %p377 = scmp.ne.s32.totalorder %s363, %s364
      %p378 = scmp.eq.s32.totalorder %s58, 3
      %p379 = por %p377, %p378
      %p381 = scmp.ne.s32.totalorder %s364, %s380
      %p382 = scmp.eq.s32.totalorder %s58, 0
      %p383 = por %p381, %p382
      %s384 = ssub.s32 %s60, %s67
      %p385 = scmp.eq.s32.totalorder %s384, 0
      %s387 = sadd.s32 %s386, 1
      %s388 = scalar_select %p385, %s386, %s387
      %p391 = pneg %p385
      %p392 = scmp.eq.s32.totalorder %s52, 3
      %p393 = por %p391, %p392
      %p394 = scmp.ne.s32.totalorder %s386, %s389
      %p395 = scmp.eq.s32.totalorder %s52, 0
      %p396 = por %p394, %p395
      %p397 = scmp.ne.s32.totalorder %s386, %s389
      %p398 = scmp.eq.s32.totalorder %s57, 3
      %p399 = por %p397, %p398
      %p400 = scmp.ne.s32.totalorder %s389, %s390
      %p401 = scmp.eq.s32.totalorder %s57, 0
      %p402 = por %p400, %p401
      %p403 = scmp.ne.s32.totalorder %s389, %s390
      %p404 = scmp.eq.s32.totalorder %s58, 3
      %p405 = por %p403, %p404
      %p407 = scmp.ne.s32.totalorder %s390, %s406
      %p408 = scmp.eq.s32.totalorder %s58, 0
      %p409 = por %p407, %p408
      %s410 = ssub.s32 %s60, %s67
      %p411 = scmp.eq.s32.totalorder %s410, 0
      %s413 = sadd.s32 %s412, 1
      %s414 = scalar_select %p411, %s412, %s413
      %p417 = pneg %p411
      %p418 = scmp.eq.s32.totalorder %s52, 3
      %p419 = por %p417, %p418
      %p420 = scmp.ne.s32.totalorder %s412, %s415
      %p421 = scmp.eq.s32.totalorder %s52, 0
      %p422 = por %p420, %p421
      %p423 = scmp.ne.s32.totalorder %s412, %s415
      %p424 = scmp.eq.s32.totalorder %s57, 3
      %p425 = por %p423, %p424
      %p426 = scmp.ne.s32.totalorder %s415, %s416
      %p427 = scmp.eq.s32.totalorder %s57, 0
      %p428 = por %p426, %p427
      %p429 = scmp.ne.s32.totalorder %s415, %s416
      %p430 = scmp.eq.s32.totalorder %s58, 3
      %p431 = por %p429, %p430
      %p433 = scmp.ne.s32.totalorder %s416, %s432
      %p434 = scmp.eq.s32.totalorder %s58, 0
      %p435 = por %p433, %p434
      %s436 = ssub.s32 %s60, %s67
      %p437 = scmp.eq.s32.totalorder %s436, 0
      %s439 = sadd.s32 %s438, 1
      %s440 = scalar_select %p437, %s438, %s439
      %p443 = pneg %p437
      %p444 = scmp.eq.s32.totalorder %s52, 3
      %p445 = por %p443, %p444
      %p446 = scmp.ne.s32.totalorder %s438, %s441
      %p447 = scmp.eq.s32.totalorder %s52, 0
      %p448 = por %p446, %p447
      %p449 = scmp.ne.s32.totalorder %s438, %s441
      %p450 = scmp.eq.s32.totalorder %s57, 3
      %p451 = por %p449, %p450
      %p452 = scmp.ne.s32.totalorder %s441, %s442
      %p453 = scmp.eq.s32.totalorder %s57, 0
      %p454 = por %p452, %p453
      %p455 = scmp.ne.s32.totalorder %s441, %s442
      %p456 = scmp.eq.s32.totalorder %s58, 3
      %p457 = por %p455, %p456
      %p459 = scmp.ne.s32.totalorder %s442, %s458
      %p460 = scmp.eq.s32.totalorder %s58, 0
      %p461 = por %p459, %p460
      %s462 = ssub.s32 %s60, %s67
      %p463 = scmp.eq.s32.totalorder %s462, 0
      %s465 = sadd.s32 %s464, 1
      %s466 = scalar_select %p463, %s464, %s465
      %p469 = pneg %p463
      %p470 = scmp.eq.s32.totalorder %s52, 3
      %p471 = por %p469, %p470
      %p472 = scmp.ne.s32.totalorder %s464, %s467
      %p473 = scmp.eq.s32.totalorder %s52, 0
      %p474 = por %p472, %p473
      %p475 = scmp.ne.s32.totalorder %s464, %s467
      %p476 = scmp.eq.s32.totalorder %s57, 3
      %p477 = por %p475, %p476
      %p478 = scmp.ne.s32.totalorder %s467, %s468
      %p479 = scmp.eq.s32.totalorder %s57, 0
      %p480 = por %p478, %p479
      %p481 = scmp.ne.s32.totalorder %s467, %s468
      %p482 = scmp.eq.s32.totalorder %s58, 3
      %p483 = por %p481, %p482
      %p485 = scmp.ne.s32.totalorder %s468, %s484
      %p486 = scmp.eq.s32.totalorder %s58, 0
      %p487 = por %p485, %p486
      %s488 = ssub.s32 %s60, %s67
      %p489 = scmp.eq.s32.totalorder %s488, 0
      %s491 = sadd.s32 %s490, 1
      %s492 = scalar_select %p489, %s490, %s491
      %p495 = pneg %p489
      %p496 = scmp.eq.s32.totalorder %s52, 3
      %p497 = por %p495, %p496
      %p498 = scmp.ne.s32.totalorder %s490, %s493
      %p499 = scmp.eq.s32.totalorder %s52, 0
      %p500 = por %p498, %p499
      %p501 = scmp.ne.s32.totalorder %s490, %s493
      %p502 = scmp.eq.s32.totalorder %s57, 3
      %p503 = por %p501, %p502
      %p504 = scmp.ne.s32.totalorder %s493, %s494
      %p505 = scmp.eq.s32.totalorder %s57, 0
      %p506 = por %p504, %p505
      %p507 = scmp.ne.s32.totalorder %s493, %s494
      %p508 = scmp.eq.s32.totalorder %s58, 3
      %p509 = por %p507, %p508
      %p511 = scmp.ne.s32.totalorder %s494, %s510
      %p512 = scmp.eq.s32.totalorder %s58, 0
      %p513 = por %p511, %p512
      %s514 = ssub.s32 %s60, %s67
      %p515 = scmp.eq.s32.totalorder %s514, 0
      %s517 = sadd.s32 %s516, 1
      %s518 = scalar_select %p515, %s516, %s517
      %p521 = pneg %p515
      %p522 = scmp.eq.s32.totalorder %s52, 3
      %p523 = por %p521, %p522
      %p524 = scmp.ne.s32.totalorder %s516, %s519
      %p525 = scmp.eq.s32.totalorder %s52, 0
      %p526 = por %p524, %p525
      %p527 = scmp.ne.s32.totalorder %s516, %s519
      %p528 = scmp.eq.s32.totalorder %s57, 3
      %p529 = por %p527, %p528
      %p530 = scmp.ne.s32.totalorder %s519, %s520
      %p531 = scmp.eq.s32.totalorder %s57, 0
      %p532 = por %p530, %p531
      %p533 = scmp.ne.s32.totalorder %s519, %s520
      %p534 = scmp.eq.s32.totalorder %s58, 3
      %p535 = por %p533, %p534
      %p537 = scmp.ne.s32.totalorder %s520, %s536
      %p538 = scmp.eq.s32.totalorder %s58, 0
      %p539 = por %p537, %p538
      %s540 = ssub.s32 %s60, %s67
      %p541 = scmp.eq.s32.totalorder %s540, 0
      %s543 = sadd.s32 %s542, 1
      %s544 = scalar_select %p541, %s542, %s543
      %p547 = pneg %p541
      %p548 = scmp.eq.s32.totalorder %s52, 3
      %p549 = por %p547, %p548
      %p550 = scmp.ne.s32.totalorder %s542, %s545
      %p551 = scmp.eq.s32.totalorder %s52, 0
      %p552 = por %p550, %p551
      %p553 = scmp.ne.s32.totalorder %s542, %s545
      %p554 = scmp.eq.s32.totalorder %s57, 3
      %p555 = por %p553, %p554
      %p556 = scmp.ne.s32.totalorder %s545, %s546
      %p557 = scmp.eq.s32.totalorder %s57, 0
      %p558 = por %p556, %p557
      %p559 = scmp.ne.s32.totalorder %s545, %s546
      %p560 = scmp.eq.s32.totalorder %s58, 3
      %p561 = por %p559, %p560
      %p563 = scmp.ne.s32.totalorder %s546, %s562
      %p564 = scmp.eq.s32.totalorder %s58, 0
      %p565 = por %p563, %p564
      %s566 = ssub.s32 %s60, %s67
      %p567 = scmp.eq.s32.totalorder %s566, 0
      %s569 = sadd.s32 %s568, 1
      %s570 = scalar_select %p567, %s568, %s569
      %p573 = pneg %p567
      %p574 = scmp.eq.s32.totalorder %s52, 3
      %p575 = por %p573, %p574
      %p576 = scmp.ne.s32.totalorder %s568, %s571
      %p577 = scmp.eq.s32.totalorder %s52, 0
      %p578 = por %p576, %p577
      %p579 = scmp.ne.s32.totalorder %s568, %s571
      %p580 = scmp.eq.s32.totalorder %s57, 3
      %p581 = por %p579, %p580
      %p582 = scmp.ne.s32.totalorder %s571, %s572
      %p583 = scmp.eq.s32.totalorder %s57, 0
      %p584 = por %p582, %p583
      %p585 = scmp.ne.s32.totalorder %s571, %s572
      %p586 = scmp.eq.s32.totalorder %s58, 3
      %p587 = por %p585, %p586
      %p589 = scmp.ne.s32.totalorder %s572, %s588
      %p590 = scmp.eq.s32.totalorder %s58, 0
      %p591 = por %p589, %p590
      %s593 = sadd.s32 %s592, 1
      %p596 = scmp.eq.s32.totalorder %s52, 3
      %p597 = scmp.ne.s32.totalorder %s592, %s594
      %p598 = scmp.eq.s32.totalorder %s52, 0
      %p599 = por %p597, %p598
      %p600 = scmp.ne.s32.totalorder %s592, %s594
      %p601 = scmp.eq.s32.totalorder %s57, 3
      %p602 = por %p600, %p601
      %p603 = scmp.ne.s32.totalorder %s594, %s595
      %p604 = scmp.eq.s32.totalorder %s57, 0
      %p605 = por %p603, %p604
      %p606 = scmp.ne.s32.totalorder %s594, %s595
      %p607 = scmp.eq.s32.totalorder %s58, 3
      %p608 = por %p606, %p607
      %p610 = scmp.ne.s32.totalorder %s595, %s609
      %p611 = scmp.eq.s32.totalorder %s58, 0
      %p612 = por %p610, %p611
      %s614 = sadd.s32 %s613, 1
      %p617 = scmp.eq.s32.totalorder %s52, 3
      %p618 = scmp.ne.s32.totalorder %s613, %s615
      %p619 = scmp.eq.s32.totalorder %s52, 0
      %p620 = por %p618, %p619
      %p621 = scmp.ne.s32.totalorder %s613, %s615
      %p622 = scmp.eq.s32.totalorder %s57, 3
      %p623 = por %p621, %p622
      %p624 = scmp.ne.s32.totalorder %s615, %s616
      %p625 = scmp.eq.s32.totalorder %s57, 0
      %p626 = por %p624, %p625
      %p627 = scmp.ne.s32.totalorder %s615, %s616
      %p628 = scmp.eq.s32.totalorder %s58, 3
      %p629 = por %p627, %p628
      %p631 = scmp.ne.s32.totalorder %s616, %s630
      %p632 = scmp.eq.s32.totalorder %s58, 0
      %p633 = por %p631, %p632
      %s634 = ssub.s32 %s59, %s71
      %p635 = scmp.eq.s32.totalorder %s634, 0
      %s637 = sadd.s32 %s636, 1
      %s638 = scalar_select %p635, %s636, %s637
      %p641 = pneg %p635
      %p642 = scmp.eq.s32.totalorder %s52, 3
      %p643 = por %p641, %p642
      %p644 = scmp.ne.s32.totalorder %s636, %s639
      %p645 = scmp.eq.s32.totalorder %s52, 0
      %p646 = por %p644, %p645
      %p647 = scmp.ne.s32.totalorder %s636, %s639
      %p648 = scmp.eq.s32.totalorder %s57, 3
      %p649 = por %p647, %p648
      %p650 = scmp.ne.s32.totalorder %s639, %s640
      %p651 = scmp.eq.s32.totalorder %s57, 0
      %p652 = por %p650, %p651
      %p653 = scmp.ne.s32.totalorder %s639, %s640
      %p654 = scmp.eq.s32.totalorder %s58, 3
      %p655 = por %p653, %p654
      %p657 = scmp.ne.s32.totalorder %s640, %s656
      %p658 = scmp.eq.s32.totalorder %s58, 0
      %p659 = por %p657, %p658
      %p660 = scmp.le.s32.totalorder 1, %s52
      %p661 = scmp.lt.s32.totalorder %s52, 5
      %p662 = pnand %p660, %p661
      %p663 = pneg %p662
      // Predicated region
      $region9: #{tpu_custom_call.1} parent=5 // pred_check
        _
      $region10: #{tpu_custom_call.1} parent=5 // pred_check_branch
        %665 = sbr.rel (%p662) target = $region12
      $region11: #{tpu_custom_call.1} parent=5 // pred_region
        %s666 = ssub.s32 %s52, 1
        // Predicated region
        $region13: #{tpu_custom_call.1} parent=11 // pred_check
          %p667 = pneg %p605
        $region14: #{tpu_custom_call.1} parent=11 // pred_check_branch
          %669 = sbr.rel (%p667) target = $region16
        $region15: #{tpu_custom_call.1} parent=11 // pred_region
          _
        $region16: #{tpu_custom_call.1} parent=11 // pred_fallthru
          _
        // Predicated region
        $region17: #{tpu_custom_call.1} parent=11 // pred_check
          %p670 = pneg %p626
        $region18: #{tpu_custom_call.1} parent=11 // pred_check_branch
          %672 = sbr.rel (%p670) target = $region20
        $region19: #{tpu_custom_call.1} parent=11 // pred_region
          _
        $region20: #{tpu_custom_call.1} parent=11 // pred_fallthru
          _
      $region12: #{tpu_custom_call.1} parent=5 // pred_fallthru
        _
      %p673 = scmp.lt.s32.totalorder %s52, 4
      // Predicated region
      $region21: #{tpu_custom_call.1} parent=5 // pred_check
        %p674 = pneg %p673
      $region22: #{tpu_custom_call.1} parent=5 // pred_check_branch
        %676 = sbr.rel (%p674) target = $region24
      $region23: #{tpu_custom_call.1} parent=5 // pred_region
        // Predicated region
        $region25: #{tpu_custom_call.1} parent=23 // pred_check
          %p677 = pneg %p84
        $region26: #{tpu_custom_call.1} parent=23 // pred_check_branch
          %679 = sbr.rel (%p677) target = $region28
        $region27: #{tpu_custom_call.1} parent=23 // pred_region
          %s680 = sand.u32 %s74, 1
          %s681 = scalar_lea.sflag [#allocation4], %s680
          %s682 = sand.u32 %s74, 1
          %s683 = smul.addr %s682, 8
          %s684 = scalar_lea.vmem [#allocation3], %s683
          %s686 = ssub.s32 128, 128
          %687 = vsyncadd %s681, %s686
          %s688 = smul.addr %s59, 128
          %s689 = scalar_lea.hbm %s0, %s688
          %s691 = sshll.u32 %s684, 4
          %s692 = int_to_ptr.vmem [resolvable:$true] %s691
          %694 = dma.hbm_to_vmem [thread:$0]  %s689, 128, %s692, %s681
        $region28: #{tpu_custom_call.1} parent=23 // pred_fallthru
          _
        // Predicated region
        $region29: #{tpu_custom_call.1} parent=23 // pred_check
          %p695 = pneg %p110
        $region30: #{tpu_custom_call.1} parent=23 // pred_check_branch
          %697 = sbr.rel (%p695) target = $region32
        $region31: #{tpu_custom_call.1} parent=23 // pred_region
          %s698 = sand.u32 %s52, 1
          %s699 = scalar_lea.sflag [#allocation7], %s698
          %s700 = sand.u32 %s100, 1
          %s701 = smul.addr %s700, 16
          %s702 = scalar_lea.vmem [#allocation6], %s701
          %s704 = ssub.s32 256, 256
          %705 = vsyncadd %s699, %s704
          %s706 = smul.addr %s59, 2
          %s707 = smul.addr %s706, 128
          %s708 = scalar_lea.hbm %s1, %s707
          %s709 = sshll.u32 %s702, 4
          %s710 = int_to_ptr.vmem [resolvable:$true] %s709
          %715 = dma.hbm_to_vmem [thread:$0]  %s708, 256, %s710, %s699, 128, 128, 8
        $region32: #{tpu_custom_call.1} parent=23 // pred_fallthru
          _
        // Predicated region
        $region33: #{tpu_custom_call.1} parent=23 // pred_check
          %p716 = pneg %p136
        $region34: #{tpu_custom_call.1} parent=23 // pred_check_branch
          %718 = sbr.rel (%p716) target = $region36
        $region35: #{tpu_custom_call.1} parent=23 // pred_region
          %p719 = scmp.lt.s32.totalorder %s60, 1
          %s720 = scalar_select %p719, %s60, 1
          %s721 = scalar_lea.vmem %s2, %s720
        $region36: #{tpu_custom_call.1} parent=23 // pred_fallthru
          _
        // Predicated region
        $region37: #{tpu_custom_call.1} parent=23 // pred_check
          %p722 = pneg %p162
        $region38: #{tpu_custom_call.1} parent=23 // pred_check_branch
          %724 = sbr.rel (%p722) target = $region40
        $region39: #{tpu_custom_call.1} parent=23 // pred_region
          %p725 = scmp.lt.s32.totalorder %s60, 1
          %s726 = scalar_select %p725, %s60, 1
          %s727 = scalar_lea.vmem %s3, %s726
        $region40: #{tpu_custom_call.1} parent=23 // pred_fallthru
          _
        // Predicated region
        $region41: #{tpu_custom_call.1} parent=23 // pred_check
          %p728 = pneg %p188
        $region42: #{tpu_custom_call.1} parent=23 // pred_check_branch
          %730 = sbr.rel (%p728) target = $region44
        $region43: #{tpu_custom_call.1} parent=23 // pred_region
          %p731 = scmp.lt.s32.totalorder %s60, 1
          %s732 = scalar_select %p731, %s60, 1
          %s733 = smul.addr %s732, 4
          %s734 = smul.addr %s733, 8
          %s735 = scalar_lea.vmem %s4, %s734
        $region44: #{tpu_custom_call.1} parent=23 // pred_fallthru
          _
        // Predicated region
        $region45: #{tpu_custom_call.1} parent=23 // pred_check
          %p736 = pneg %p214
        $region46: #{tpu_custom_call.1} parent=23 // pred_check_branch
          %738 = sbr.rel (%p736) target = $region48
        $region47: #{tpu_custom_call.1} parent=23 // pred_region
          %p739 = scmp.lt.s32.totalorder %s60, 1
          %s740 = scalar_select %p739, %s60, 1
          %s741 = smul.addr %s740, 4
          %s742 = smul.addr %s741, 8
          %s743 = scalar_lea.vmem %s5, %s742
        $region48: #{tpu_custom_call.1} parent=23 // pred_fallthru
          _
        // Predicated region
        $region49: #{tpu_custom_call.1} parent=23 // pred_check
          %p744 = pneg %p240
        $region50: #{tpu_custom_call.1} parent=23 // pred_check_branch
          %746 = sbr.rel (%p744) target = $region52
        $region51: #{tpu_custom_call.1} parent=23 // pred_region
          %p747 = scmp.lt.s32.totalorder %s60, 1
          %s748 = scalar_select %p747, %s60, 1
          %s749 = smul.addr %s748, 4
          %s750 = smul.addr %s749, 8
          %s751 = scalar_lea.vmem %s6, %s750
        $region52: #{tpu_custom_call.1} parent=23 // pred_fallthru
          _
        // Predicated region
        $region53: #{tpu_custom_call.1} parent=23 // pred_check
          %p752 = pneg %p266
        $region54: #{tpu_custom_call.1} parent=23 // pred_check_branch
          %754 = sbr.rel (%p752) target = $region56
        $region55: #{tpu_custom_call.1} parent=23 // pred_region
          %p755 = scmp.lt.s32.totalorder %s60, 1
          %s756 = scalar_select %p755, %s60, 1
          %s757 = smul.addr %s756, 4
          %s758 = smul.addr %s757, 8
          %s759 = scalar_lea.vmem %s7, %s758
        $region56: #{tpu_custom_call.1} parent=23 // pred_fallthru
          _
        // Predicated region
        $region57: #{tpu_custom_call.1} parent=23 // pred_check
          %p760 = pneg %p292
        $region58: #{tpu_custom_call.1} parent=23 // pred_check_branch
          %762 = sbr.rel (%p760) target = $region60
        $region59: #{tpu_custom_call.1} parent=23 // pred_region
          %s763 = sand.u32 %s52, 1
          %s764 = scalar_lea.sflag [#allocation7], %s763
          %s765 = sand.u32 %s282, 1
          %s766 = scalar_lea.vmem [#allocation8], %s765
          %s768 = ssub.s32 16, 16
          %769 = vsyncadd %s764, %s768
          %s770 = smul.addr %s60, 16
          %s771 = scalar_lea.hbm %s8, %s770
          %s773 = sshll.u32 %s766, 4
          %s774 = int_to_ptr.vmem [resolvable:$true] %s773
          %776 = dma.hbm_to_vmem [thread:$0]  %s771, 16, %s774, %s764
        $region60: #{tpu_custom_call.1} parent=23 // pred_fallthru
          _
        // Predicated region
        $region61: #{tpu_custom_call.1} parent=23 // pred_check
          %p777 = pneg %p318
        $region62: #{tpu_custom_call.1} parent=23 // pred_check_branch
          %779 = sbr.rel (%p777) target = $region64
        $region63: #{tpu_custom_call.1} parent=23 // pred_region
          %s780 = sand.u32 %s52, 1
          %s781 = scalar_lea.sflag [#allocation10], %s780
          %s782 = sand.u32 %s308, 1
          %s783 = scalar_lea.vmem [#allocation9], %s782
          %s785 = ssub.s32 16, 16
          %786 = vsyncadd %s781, %s785
          %s787 = smul.addr %s60, 16
          %s788 = scalar_lea.hbm %s9, %s787
          %s790 = sshll.u32 %s783, 4
          %s791 = int_to_ptr.vmem [resolvable:$true] %s790
          %793 = dma.hbm_to_vmem [thread:$0]  %s788, 16, %s791, %s781
        $region64: #{tpu_custom_call.1} parent=23 // pred_fallthru
          _
        // Predicated region
        $region65: #{tpu_custom_call.1} parent=23 // pred_check
          %p794 = pneg %p344
        $region66: #{tpu_custom_call.1} parent=23 // pred_check_branch
          %796 = sbr.rel (%p794) target = $region68
        $region67: #{tpu_custom_call.1} parent=23 // pred_region
          %p797 = scmp.lt.s32.totalorder %s60, 1
          %s798 = scalar_select %p797, %s60, 1
          %s799 = smul.addr %s798, 4
          %s800 = smul.addr %s799, 8
          %s801 = scalar_lea.vmem %s10, %s800
        $region68: #{tpu_custom_call.1} parent=23 // pred_fallthru
          _
        // Predicated region
        $region69: #{tpu_custom_call.1} parent=23 // pred_check
          %p802 = pneg %p370
        $region70: #{tpu_custom_call.1} parent=23 // pred_check_branch
          %804 = sbr.rel (%p802) target = $region72
        $region71: #{tpu_custom_call.1} parent=23 // pred_region
          %s805 = sand.u32 %s52, 1
          %s806 = scalar_lea.sflag [#allocation10], %s805
          %s807 = sand.u32 %s360, 1
          %s808 = smul.addr %s807, 32
          %s809 = scalar_lea.vmem [#allocation11], %s808
          %s811 = ssub.s32 512, 512
          %812 = vsyncadd %s806, %s811
          %s813 = smul.addr %s60, 4
          %s814 = smul.addr %s813, 128
          %s815 = scalar_lea.hbm %s11, %s814
          %s816 = sshll.u32 %s809, 4
          %s817 = int_to_ptr.vmem [resolvable:$true] %s816
          %822 = dma.hbm_to_vmem [thread:$0]  %s815, 512, %s817, %s806, 128, 128, 8
        $region72: #{tpu_custom_call.1} parent=23 // pred_fallthru
          _
        // Predicated region
        $region73: #{tpu_custom_call.1} parent=23 // pred_check
          %p823 = pneg %p396
        $region74: #{tpu_custom_call.1} parent=23 // pred_check_branch
          %825 = sbr.rel (%p823) target = $region76
        $region75: #{tpu_custom_call.1} parent=23 // pred_region
          %s826 = sand.u32 %s52, 1
          %s827 = scalar_lea.sflag [#allocation13], %s826
          %s828 = sand.u32 %s386, 1
          %s829 = smul.addr %s828, 32
          %s830 = scalar_lea.vmem [#allocation12], %s829
          %s832 = ssub.s32 512, 512
          %833 = vsyncadd %s827, %s832
          %s834 = smul.addr %s60, 4
          %s835 = smul.addr %s834, 128
          %s836 = scalar_lea.hbm %s12, %s835
          %s837 = sshll.u32 %s830, 4
          %s838 = int_to_ptr.vmem [resolvable:$true] %s837
          %843 = dma.hbm_to_vmem [thread:$0]  %s836, 512, %s838, %s827, 128, 128, 8
        $region76: #{tpu_custom_call.1} parent=23 // pred_fallthru
          _
        // Predicated region
        $region77: #{tpu_custom_call.1} parent=23 // pred_check
          %p844 = pneg %p422
        $region78: #{tpu_custom_call.1} parent=23 // pred_check_branch
          %846 = sbr.rel (%p844) target = $region80
        $region79: #{tpu_custom_call.1} parent=23 // pred_region
          %s847 = sand.u32 %s52, 1
          %s848 = scalar_lea.sflag [#allocation13], %s847
          %s849 = sand.u32 %s412, 1
          %s850 = smul.addr %s849, 32
          %s851 = scalar_lea.vmem [#allocation14], %s850
          %s853 = ssub.s32 512, 512
          %854 = vsyncadd %s848, %s853
          %s855 = smul.addr %s60, 4
          %s856 = smul.addr %s855, 128
          %s857 = scalar_lea.hbm %s13, %s856
          %s858 = sshll.u32 %s851, 4
          %s859 = int_to_ptr.vmem [resolvable:$true] %s858
          %864 = dma.hbm_to_vmem [thread:$0]  %s857, 512, %s859, %s848, 128, 128, 8
        $region80: #{tpu_custom_call.1} parent=23 // pred_fallthru
          _
        // Predicated region
        $region81: #{tpu_custom_call.1} parent=23 // pred_check
          %p865 = pneg %p448
        $region82: #{tpu_custom_call.1} parent=23 // pred_check_branch
          %867 = sbr.rel (%p865) target = $region84
        $region83: #{tpu_custom_call.1} parent=23 // pred_region
          %s868 = sand.u32 %s52, 1
          %s869 = scalar_lea.sflag [#allocation16], %s868
          %s870 = sand.u32 %s438, 1
          %s871 = scalar_lea.vmem [#allocation15], %s870
          %s873 = ssub.s32 16, 16
          %874 = vsyncadd %s869, %s873
          %s875 = smul.addr %s60, 16
          %s876 = scalar_lea.hbm %s14, %s875
          %s878 = sshll.u32 %s871, 4
          %s879 = int_to_ptr.vmem [resolvable:$true] %s878
          %881 = dma.hbm_to_vmem [thread:$0]  %s876, 16, %s879, %s869
        $region84: #{tpu_custom_call.1} parent=23 // pred_fallthru
          _
        // Predicated region
        $region85: #{tpu_custom_call.1} parent=23 // pred_check
          %p882 = pneg %p474
        $region86: #{tpu_custom_call.1} parent=23 // pred_check_branch
          %884 = sbr.rel (%p882) target = $region88
        $region87: #{tpu_custom_call.1} parent=23 // pred_region
          %s885 = sand.u32 %s52, 1
          %s886 = scalar_lea.sflag [#allocation16], %s885
          %s887 = sand.u32 %s464, 1
          %s888 = scalar_lea.vmem [#allocation17], %s887
          %s890 = ssub.s32 16, 16
          %891 = vsyncadd %s886, %s890
          %s892 = smul.addr %s60, 16
          %s893 = scalar_lea.hbm %s15, %s892
          %s895 = sshll.u32 %s888, 4
          %s896 = int_to_ptr.vmem [resolvable:$true] %s895
          %898 = dma.hbm_to_vmem [thread:$0]  %s893, 16, %s896, %s886
        $region88: #{tpu_custom_call.1} parent=23 // pred_fallthru
          _
        // Predicated region
        $region89: #{tpu_custom_call.1} parent=23 // pred_check
          %p899 = pneg %p500
        $region90: #{tpu_custom_call.1} parent=23 // pred_check_branch
          %901 = sbr.rel (%p899) target = $region92
        $region91: #{tpu_custom_call.1} parent=23 // pred_region
          %s902 = sand.u32 %s52, 1
          %s903 = scalar_lea.sflag [#allocation19], %s902
          %s904 = sand.u32 %s490, 1
          %s905 = smul.addr %s904, 32
          %s906 = scalar_lea.vmem [#allocation18], %s905
          %s908 = ssub.s32 512, 512
          %909 = vsyncadd %s903, %s908
          %s910 = smul.addr %s60, 4
          %s911 = smul.addr %s910, 128
          %s912 = scalar_lea.hbm %s16, %s911
          %s913 = sshll.u32 %s906, 4
          %s914 = int_to_ptr.vmem [resolvable:$true] %s913
          %919 = dma.hbm_to_vmem [thread:$0]  %s912, 512, %s914, %s903, 128, 128, 8
        $region92: #{tpu_custom_call.1} parent=23 // pred_fallthru
          _
        // Predicated region
        $region93: #{tpu_custom_call.1} parent=23 // pred_check
          %p920 = pneg %p526
        $region94: #{tpu_custom_call.1} parent=23 // pred_check_branch
          %922 = sbr.rel (%p920) target = $region96
        $region95: #{tpu_custom_call.1} parent=23 // pred_region
          %s923 = sand.u32 %s52, 1
          %s924 = scalar_lea.sflag [#allocation19], %s923
          %s925 = sand.u32 %s516, 1
          %s926 = scalar_lea.vmem [#allocation20], %s925
          %s928 = ssub.s32 16, 16
          %929 = vsyncadd %s924, %s928
          %s930 = smul.addr %s60, 16
          %s931 = scalar_lea.hbm %s17, %s930
          %s933 = sshll.u32 %s926, 4
          %s934 = int_to_ptr.vmem [resolvable:$true] %s933
          %936 = dma.hbm_to_vmem [thread:$0]  %s931, 16, %s934, %s924
        $region96: #{tpu_custom_call.1} parent=23 // pred_fallthru
          _
        // Predicated region
        $region97: #{tpu_custom_call.1} parent=23 // pred_check
          %p937 = pneg %p552
        $region98: #{tpu_custom_call.1} parent=23 // pred_check_branch
          %939 = sbr.rel (%p937) target = $region100
        $region99: #{tpu_custom_call.1} parent=23 // pred_region
          %p940 = scmp.lt.s32.totalorder %s60, 1
          %s941 = scalar_select %p940, %s60, 1
          %s942 = smul.addr %s941, 16
          %s943 = smul.addr %s942, 8
          %s944 = scalar_lea.vmem %s18, %s943
        $region100: #{tpu_custom_call.1} parent=23 // pred_fallthru
          _
        // Predicated region
        $region101: #{tpu_custom_call.1} parent=23 // pred_check
          %p945 = pneg %p578
        $region102: #{tpu_custom_call.1} parent=23 // pred_check_branch
          %947 = sbr.rel (%p945) target = $region104
        $region103: #{tpu_custom_call.1} parent=23 // pred_region
          %s948 = sand.u32 %s568, 1
          %s949 = scalar_lea.sflag [#allocation22], %s948
          %s950 = sand.u32 %s568, 1
          %s951 = scalar_lea.vmem [#allocation21], %s950
          %s953 = ssub.s32 16, 16
          %954 = vsyncadd %s949, %s953
          %s955 = smul.addr %s60, 16
          %s956 = scalar_lea.hbm %s19, %s955
          %s958 = sshll.u32 %s951, 4
          %s959 = int_to_ptr.vmem [resolvable:$true] %s958
          %961 = dma.hbm_to_vmem [thread:$0]  %s956, 16, %s959, %s949
        $region104: #{tpu_custom_call.1} parent=23 // pred_fallthru
          _
      $region24: #{tpu_custom_call.1} parent=5 // pred_fallthru
        _
      %p962 = scmp.le.s32.totalorder 1, %s52
      %p963 = scmp.lt.s32.totalorder %s52, 5
      %p964 = pnand %p962, %p963
      %p965 = pneg %p964
      // Predicated region
      $region105: #{tpu_custom_call.1} parent=5 // pred_check
        _
      $region106: #{tpu_custom_call.1} parent=5 // pred_check_branch
        %967 = sbr.rel (%p964) target = $region108
      $region107: #{tpu_custom_call.1} parent=5 // pred_region
        %s968 = ssub.s32 %s52, 1
        %s969 = sand.u32 %s77, 1
        %s970 = scalar_lea.sflag [#allocation4], %s969
        %s971 = sand.u32 %s77, 1
        %s972 = smul.addr %s971, 8
        %s973 = scalar_lea.vmem [#allocation3], %s972
        // Predicated region
        $region109: #{tpu_custom_call.1} parent=107 // pred_check
          %p974 = pneg %p90
        $region110: #{tpu_custom_call.1} parent=107 // pred_check_branch
          %976 = sbr.rel (%p974) target = $region112
        $region111: #{tpu_custom_call.1} parent=107 // pred_region
          %977 = dma.done %s970, 128
        $region112: #{tpu_custom_call.1} parent=107 // pred_fallthru
          _
        %s978 = sand.u32 %s57, 1
        %s979 = scalar_lea.sflag [#allocation7], %s978
        %s980 = sand.u32 %s103, 1
        %s981 = smul.addr %s980, 16
        %s982 = scalar_lea.vmem [#allocation6], %s981
        // Predicated region
        $region113: #{tpu_custom_call.1} parent=107 // pred_check
          %p983 = pneg %p116
        $region114: #{tpu_custom_call.1} parent=107 // pred_check_branch
          %985 = sbr.rel (%p983) target = $region116
        $region115: #{tpu_custom_call.1} parent=107 // pred_region
          %986 = dma.done %s979, 256
        $region116: #{tpu_custom_call.1} parent=107 // pred_fallthru
          _
        %s987 = sand.u32 %s57, 1
        %s988 = scalar_lea.sflag [#allocation7], %s987
        %s989 = sand.u32 %s285, 1
        %s990 = scalar_lea.vmem [#allocation8], %s989
        // Predicated region
        $region117: #{tpu_custom_call.1} parent=107 // pred_check
          %p991 = pneg %p298
        $region118: #{tpu_custom_call.1} parent=107 // pred_check_branch
          %993 = sbr.rel (%p991) target = $region120
        $region119: #{tpu_custom_call.1} parent=107 // pred_region
          %994 = dma.done %s988, 16
        $region120: #{tpu_custom_call.1} parent=107 // pred_fallthru
          _
        %s995 = sand.u32 %s57, 1
        %s996 = scalar_lea.sflag [#allocation10], %s995
        %s997 = sand.u32 %s311, 1
        %s998 = scalar_lea.vmem [#allocation9], %s997
        // Predicated region
        $region121: #{tpu_custom_call.1} parent=107 // pred_check
          %p999 = pneg %p324
        $region122: #{tpu_custom_call.1} parent=107 // pred_check_branch
          %1001 = sbr.rel (%p999) target = $region124
        $region123: #{tpu_custom_call.1} parent=107 // pred_region
          %1002 = dma.done %s996, 16
        $region124: #{tpu_custom_call.1} parent=107 // pred_fallthru
          _
        %s1003 = sand.u32 %s57, 1
        %s1004 = scalar_lea.sflag [#allocation10], %s1003
        %s1005 = sand.u32 %s363, 1
        %s1006 = smul.addr %s1005, 32
        %s1007 = scalar_lea.vmem [#allocation11], %s1006
        // Predicated region
        $region125: #{tpu_custom_call.1} parent=107 // pred_check
          %p1008 = pneg %p376
        $region126: #{tpu_custom_call.1} parent=107 // pred_check_branch
          %1010 = sbr.rel (%p1008) target = $region128
        $region127: #{tpu_custom_call.1} parent=107 // pred_region
          %1011 = dma.done %s1004, 512
        $region128: #{tpu_custom_call.1} parent=107 // pred_fallthru
          _
        %s1012 = sand.u32 %s57, 1
        %s1013 = scalar_lea.sflag [#allocation13], %s1012
        %s1014 = sand.u32 %s389, 1
        %s1015 = smul.addr %s1014, 32
        %s1016 = scalar_lea.vmem [#allocation12], %s1015
        // Predicated region
        $region129: #{tpu_custom_call.1} parent=107 // pred_check
          %p1017 = pneg %p402
        $region130: #{tpu_custom_call.1} parent=107 // pred_check_branch
          %1019 = sbr.rel (%p1017) target = $region132
        $region131: #{tpu_custom_call.1} parent=107 // pred_region
          %1020 = dma.done %s1013, 512
        $region132: #{tpu_custom_call.1} parent=107 // pred_fallthru
          _
        %s1021 = sand.u32 %s57, 1
        %s1022 = scalar_lea.sflag [#allocation13], %s1021
        %s1023 = sand.u32 %s415, 1
        %s1024 = smul.addr %s1023, 32
        %s1025 = scalar_lea.vmem [#allocation14], %s1024
        // Predicated region
        $region133: #{tpu_custom_call.1} parent=107 // pred_check
          %p1026 = pneg %p428
        $region134: #{tpu_custom_call.1} parent=107 // pred_check_branch
          %1028 = sbr.rel (%p1026) target = $region136
        $region135: #{tpu_custom_call.1} parent=107 // pred_region
          %1029 = dma.done %s1022, 512
        $region136: #{tpu_custom_call.1} parent=107 // pred_fallthru
          _
        %s1030 = sand.u32 %s57, 1
        %s1031 = scalar_lea.sflag [#allocation16], %s1030
        %s1032 = sand.u32 %s441, 1
        %s1033 = scalar_lea.vmem [#allocation15], %s1032
        // Predicated region
        $region137: #{tpu_custom_call.1} parent=107 // pred_check
          %p1034 = pneg %p454
        $region138: #{tpu_custom_call.1} parent=107 // pred_check_branch
          %1036 = sbr.rel (%p1034) target = $region140
        $region139: #{tpu_custom_call.1} parent=107 // pred_region
          %1037 = dma.done %s1031, 16
        $region140: #{tpu_custom_call.1} parent=107 // pred_fallthru
          _
        %s1038 = sand.u32 %s57, 1
        %s1039 = scalar_lea.sflag [#allocation16], %s1038
        %s1040 = sand.u32 %s467, 1
        %s1041 = scalar_lea.vmem [#allocation17], %s1040
        // Predicated region
        $region141: #{tpu_custom_call.1} parent=107 // pred_check
          %p1042 = pneg %p480
        $region142: #{tpu_custom_call.1} parent=107 // pred_check_branch
          %1044 = sbr.rel (%p1042) target = $region144
        $region143: #{tpu_custom_call.1} parent=107 // pred_region
          %1045 = dma.done %s1039, 16
        $region144: #{tpu_custom_call.1} parent=107 // pred_fallthru
          _
        %s1046 = sand.u32 %s57, 1
        %s1047 = scalar_lea.sflag [#allocation19], %s1046
        %s1048 = sand.u32 %s493, 1
        %s1049 = smul.addr %s1048, 32
        %s1050 = scalar_lea.vmem [#allocation18], %s1049
        // Predicated region
        $region145: #{tpu_custom_call.1} parent=107 // pred_check
          %p1051 = pneg %p506
        $region146: #{tpu_custom_call.1} parent=107 // pred_check_branch
          %1053 = sbr.rel (%p1051) target = $region148
        $region147: #{tpu_custom_call.1} parent=107 // pred_region
          %1054 = dma.done %s1047, 512
        $region148: #{tpu_custom_call.1} parent=107 // pred_fallthru
          _
        %s1055 = sand.u32 %s57, 1
        %s1056 = scalar_lea.sflag [#allocation19], %s1055
        %s1057 = sand.u32 %s519, 1
        %s1058 = scalar_lea.vmem [#allocation20], %s1057
        // Predicated region
        $region149: #{tpu_custom_call.1} parent=107 // pred_check
          %p1059 = pneg %p532
        $region150: #{tpu_custom_call.1} parent=107 // pred_check_branch
          %1061 = sbr.rel (%p1059) target = $region152
        $region151: #{tpu_custom_call.1} parent=107 // pred_region
          %1062 = dma.done %s1056, 16
        $region152: #{tpu_custom_call.1} parent=107 // pred_fallthru
          _
        %s1063 = sand.u32 %s571, 1
        %s1064 = scalar_lea.sflag [#allocation22], %s1063
        %s1065 = sand.u32 %s571, 1
        %s1066 = scalar_lea.vmem [#allocation21], %s1065
        // Predicated region
        $region153: #{tpu_custom_call.1} parent=107 // pred_check
          %p1067 = pneg %p584
        $region154: #{tpu_custom_call.1} parent=107 // pred_check_branch
          %1069 = sbr.rel (%p1067) target = $region156
        $region155: #{tpu_custom_call.1} parent=107 // pred_region
          %1070 = dma.done %s1064, 16
        $region156: #{tpu_custom_call.1} parent=107 // pred_fallthru
          _
        %s1071 = sand.u32 %s77, 1
        %s1072 = scalar_lea.sflag [#allocation4], %s1071
        %s1073 = sand.u32 %s77, 1
        %s1074 = smul.addr %s1073, 8
        %s1075 = scalar_lea.vmem [#allocation3], %s1074
        %p1076 = pneg %p90
        %p1077 = pneg %p87
        %s1078 = sand.u32 %s57, 1
        %s1079 = scalar_lea.sflag [#allocation7], %s1078
        %s1080 = sand.u32 %s103, 1
        %s1081 = smul.addr %s1080, 16
        %s1082 = scalar_lea.vmem [#allocation6], %s1081
        %p1083 = pneg %p116
        %p1084 = pneg %p113
        %p1085 = scmp.lt.s32.totalorder %s62, 1
        %s1086 = scalar_select %p1085, %s62, 1
        %s1087 = scalar_lea.vmem %s2, %s1086
        %p1088 = pneg %p142
        %p1089 = pneg %p139
        %p1090 = scmp.lt.s32.totalorder %s62, 1
        %s1091 = scalar_select %p1090, %s62, 1
        %s1092 = scalar_lea.vmem %s3, %s1091
        %p1093 = pneg %p168
        %p1094 = pneg %p165
        %p1095 = scmp.lt.s32.totalorder %s62, 1
        %s1096 = scalar_select %p1095, %s62, 1
        %s1097 = smul.addr %s1096, 4
        %s1098 = smul.addr %s1097, 8
        %s1099 = scalar_lea.vmem %s4, %s1098
        %p1100 = pneg %p194
        %p1101 = pneg %p191
        %p1102 = scmp.lt.s32.totalorder %s62, 1
        %s1103 = scalar_select %p1102, %s62, 1
        %s1104 = smul.addr %s1103, 4
        %s1105 = smul.addr %s1104, 8
        %s1106 = scalar_lea.vmem %s5, %s1105
        %p1107 = pneg %p220
        %p1108 = pneg %p217
        %p1109 = scmp.lt.s32.totalorder %s62, 1
        %s1110 = scalar_select %p1109, %s62, 1
        %s1111 = smul.addr %s1110, 4
        %s1112 = smul.addr %s1111, 8
        %s1113 = scalar_lea.vmem %s6, %s1112
        %p1114 = pneg %p246
        %p1115 = pneg %p243
        %p1116 = scmp.lt.s32.totalorder %s62, 1
        %s1117 = scalar_select %p1116, %s62, 1
        %s1118 = smul.addr %s1117, 4
        %s1119 = smul.addr %s1118, 8
        %s1120 = scalar_lea.vmem %s7, %s1119
        %p1121 = pneg %p272
        %p1122 = pneg %p269
        %s1123 = sand.u32 %s57, 1
        %s1124 = scalar_lea.sflag [#allocation7], %s1123
        %s1125 = sand.u32 %s285, 1
        %s1126 = scalar_lea.vmem [#allocation8], %s1125
        %p1127 = pneg %p298
        %p1128 = pneg %p295
        %s1129 = sand.u32 %s57, 1
        %s1130 = scalar_lea.sflag [#allocation10], %s1129
        %s1131 = sand.u32 %s311, 1
        %s1132 = scalar_lea.vmem [#allocation9], %s1131
        %p1133 = pneg %p324
        %p1134 = pneg %p321
        %p1135 = scmp.lt.s32.totalorder %s62, 1
        %s1136 = scalar_select %p1135, %s62, 1
        %s1137 = smul.addr %s1136, 4
        %s1138 = smul.addr %s1137, 8
        %s1139 = scalar_lea.vmem %s10, %s1138
        %p1140 = pneg %p350
        %p1141 = pneg %p347
        %s1142 = sand.u32 %s57, 1
        %s1143 = scalar_lea.sflag [#allocation10], %s1142
        %s1144 = sand.u32 %s363, 1
        %s1145 = smul.addr %s1144, 32
        %s1146 = scalar_lea.vmem [#allocation11], %s1145
        %p1147 = pneg %p376
        %p1148 = pneg %p373
        %s1149 = sand.u32 %s57, 1
        %s1150 = scalar_lea.sflag [#allocation13], %s1149
        %s1151 = sand.u32 %s389, 1
        %s1152 = smul.addr %s1151, 32
        %s1153 = scalar_lea.vmem [#allocation12], %s1152
        %p1154 = pneg %p402
        %p1155 = pneg %p399
        %s1156 = sand.u32 %s57, 1
        %s1157 = scalar_lea.sflag [#allocation13], %s1156
        %s1158 = sand.u32 %s415, 1
        %s1159 = smul.addr %s1158, 32
        %s1160 = scalar_lea.vmem [#allocation14], %s1159
        %p1161 = pneg %p428
        %p1162 = pneg %p425
        %s1163 = sand.u32 %s57, 1
        %s1164 = scalar_lea.sflag [#allocation16], %s1163
        %s1165 = sand.u32 %s441, 1
        %s1166 = scalar_lea.vmem [#allocation15], %s1165
        %p1167 = pneg %p454
        %p1168 = pneg %p451
        %s1169 = sand.u32 %s57, 1
        %s1170 = scalar_lea.sflag [#allocation16], %s1169
        %s1171 = sand.u32 %s467, 1
        %s1172 = scalar_lea.vmem [#allocation17], %s1171
        %p1173 = pneg %p480
        %p1174 = pneg %p477
        %s1175 = sand.u32 %s57, 1
        %s1176 = scalar_lea.sflag [#allocation19], %s1175
        %s1177 = sand.u32 %s493, 1
        %s1178 = smul.addr %s1177, 32
        %s1179 = scalar_lea.vmem [#allocation18], %s1178
        %p1180 = pneg %p506
        %p1181 = pneg %p503
        %s1182 = sand.u32 %s57, 1
        %s1183 = scalar_lea.sflag [#allocation19], %s1182
        %s1184 = sand.u32 %s519, 1
        %s1185 = scalar_lea.vmem [#allocation20], %s1184
        %p1186 = pneg %p532
        %p1187 = pneg %p529
        %p1188 = scmp.lt.s32.totalorder %s62, 1
        %s1189 = scalar_select %p1188, %s62, 1
        %s1190 = smul.addr %s1189, 16
        %s1191 = smul.addr %s1190, 8
        %s1192 = scalar_lea.vmem %s18, %s1191
        %p1193 = pneg %p558
        %p1194 = pneg %p555
        %s1195 = sand.u32 %s571, 1
        %s1196 = scalar_lea.sflag [#allocation22], %s1195
        %s1197 = sand.u32 %s571, 1
        %s1198 = scalar_lea.vmem [#allocation21], %s1197
        %p1199 = pneg %p584
        %p1200 = pneg %p581
        %p1201 = pneg %p605
        %p1202 = pneg %p602
        %p1203 = pneg %p626
        %p1204 = pneg %p623
        %p1205 = pneg %p652
        %p1206 = pneg %p649
        %s1207 = sand.u32 %s639, 1
        %s1208 = scalar_lea.sflag [#allocation5], %s1207
        %s1209 = sand.u32 %s639, 1
        %s1210 = smul.addr %s1209, 8
        %s1211 = scalar_lea.vmem [#allocation23], %s1210
        %p1212 = scmp.lt.s32.totalorder %s62, 1
        %s1213 = scalar_select %p1212, %s62, 1
        %s1214 = scalar_lea.vmem %s2, %s1213
        %p1215 = scmp.lt.s32.totalorder %s62, 1
        %s1216 = scalar_select %p1215, %s62, 1
        %s1217 = scalar_lea.vmem %s3, %s1216
        %p1218 = scmp.lt.s32.totalorder %s62, 1
        %s1219 = scalar_select %p1218, %s62, 1
        %s1220 = smul.addr %s1219, 4
        %s1221 = smul.addr %s1220, 8
        %s1222 = scalar_lea.vmem %s4, %s1221
        %p1223 = scmp.lt.s32.totalorder %s62, 1
        %s1224 = scalar_select %p1223, %s62, 1
        %s1225 = smul.addr %s1224, 4
        %s1226 = smul.addr %s1225, 8
        %s1227 = scalar_lea.vmem %s5, %s1226
        %p1228 = scmp.lt.s32.totalorder %s62, 1
        %s1229 = scalar_select %p1228, %s62, 1
        %s1230 = smul.addr %s1229, 4
        %s1231 = smul.addr %s1230, 8
        %s1232 = scalar_lea.vmem %s6, %s1231
        %p1233 = scmp.lt.s32.totalorder %s62, 1
        %s1234 = scalar_select %p1233, %s62, 1
        %s1235 = smul.addr %s1234, 4
        %s1236 = smul.addr %s1235, 8
        %s1237 = scalar_lea.vmem %s7, %s1236
        %p1238 = scmp.lt.s32.totalorder %s62, 1
        %s1239 = scalar_select %p1238, %s62, 1
        %s1240 = smul.addr %s1239, 4
        %s1241 = smul.addr %s1240, 8
        %s1242 = scalar_lea.vmem %s10, %s1241
        %p1243 = scmp.lt.s32.totalorder %s62, 1
        %s1244 = scalar_select %p1243, %s62, 1
        %s1245 = smul.addr %s1244, 16
        %s1246 = smul.addr %s1245, 8
        %s1247 = scalar_lea.vmem %s18, %s1246
        %p1248 = scmp.eq.s32.totalorder %s62, 0
        // Predicated region
        $region157: #{tpu_custom_call.1} parent=107 // pred_check
          %p1249 = pneg %p1248
        $region158: #{tpu_custom_call.1} parent=107 // pred_check_branch
          %1251 = sbr.rel (%p1249) target = $region160
        $region159: #{tpu_custom_call.1} parent=107 // pred_region
          %v1252 = vld [vmem:[%s973] sm:$0xff]
          %vm1253 = vcmask 261120
          %1254 = vst.msk [vmem:[#allocation2] sm:$0xff] %vm1253, %v1252
        $region160: #{tpu_custom_call.1} parent=107 // pred_fallthru
          _
        %v1255 = vld [vmem:[#allocation2] sm:$0xff]
        %v1256 = vld [vmem:[%s982] sm:$0xff]
        %v1257 = vld [vmem:[%s982 + $0x8] sm:$0xff]
        %v1258 = vlaneseq
        %v1259 = vshrl.u32 %v1258, 7
        %v1260 = vlaneseq
        %v1261 = vand.u32 %v1260, 127
        %vm1262 = vcmp.gt.s32.totalorder %v1261, %v1259
        %v1263 = vsel %vm1262, -1e+30, 0.0
        %v1264 = vld [vmem:[%s1214] sm:$0x1]
        %v1265 = vld [vmem:[%s1217] sm:$0x1]
        %vm1266 = vcmask 261120
        %v1267 = vsel %vm1266, %v1255, 0.0
        %1268 = vadd.xlane.f32.xlu0 %v1267
        %v1269 = vpop.xlane.xlu0 %1268
        %v1270 = vrcp.pop 32.0
        %v1271 = vmul.f32 %v1269, %v1270
        %v1272 = vsub.f32 %v1255, %v1271
        %v1273 = vmul.f32 %v1272, %v1272
        %v1274 = vsel %vm1266, %v1273, 0.0
        %1275 = vadd.xlane.f32.xlu0 %v1274
        %v1276 = vpop.xlane.xlu0 %1275
        %v1277 = vmul.f32 %v1276, %v1270
        %v1278 = vadd.f32 %v1277, 1e-05
        %v1279 = vrsqrt.pop %v1278
        %v1280 = vmul.f32 %v1272, %v1279
        %v1282 = vlaneseq
        %v1283 = vshrl.u32 %v1282, 7
        %v1284 = vsub.s32 0, %v1283
        %v1285 = vrot.slane %v1264, %v1284
        %v1287 = vmul.f32 %v1280, %v1285
        %v1289 = vlaneseq
        %v1290 = vshrl.u32 %v1289, 7
        %v1291 = vsub.s32 0, %v1290
        %v1292 = vrot.slane %v1265, %v1291
        %v1294 = vadd.f32 %v1287, %v1292
        %v1295 = vld [vmem:[%s1222] sm:$0xff]
        %v1296 = vld [vmem:[%s1222 + $0x8] sm:$0xff]
        %v1297 = vld [vmem:[%s1222 + $0x10] sm:$0xff]
        %v1298 = vld [vmem:[%s1222 + $0x18] sm:$0xff]
        %v1299 = vld [vmem:[%s1227] sm:$0xff]
        %v1300 = vld [vmem:[%s1227 + $0x8] sm:$0xff]
        %v1301 = vld [vmem:[%s1227 + $0x10] sm:$0xff]
        %v1302 = vld [vmem:[%s1227 + $0x18] sm:$0xff]
        %v1303 = vld [vmem:[%s1232] sm:$0xff]
        %v1304 = vld [vmem:[%s1232 + $0x8] sm:$0xff]
        %v1305 = vld [vmem:[%s1232 + $0x10] sm:$0xff]
        %v1306 = vld [vmem:[%s1232 + $0x18] sm:$0xff]
        %v1307 = vld [vmem:[%s1237] sm:$0xff]
        %v1308 = vld [vmem:[%s1237 + $0x8] sm:$0xff]
        %v1309 = vld [vmem:[%s1237 + $0x10] sm:$0xff]
        %v1310 = vld [vmem:[%s1237 + $0x18] sm:$0xff]
        %v1312 = vsel %vm1266, %v1294, 0
        %1314 = vmatprep.subr.mxu0 0.0
        %1315 = vmatpush1.msra.mxu0 %v1295
        %1316 = vmatprep.subr.mxu0 0.0
        %1317 = vmatpush1.msra.mxu0 %v1296
        %1318 = vmatprep.subr.mxu0 0.0
        %1319 = vmatpush1.msra.mxu0 %v1297
        %1320 = vmatprep.subr.mxu0 0.0
        %1321 = vmatpush1.msra.mxu0 %v1298
        %1322 = vmatprep.subr.mxu0 0.0
        %1323 = vmatpush1.msra.mxu0 0.0
        %1324 = vmatprep.subr.mxu0 0.0
        %1325 = vmatpush1.msra.mxu0 0.0
        %1326 = vmatprep.subr.mxu0 0.0
        %1327 = vmatpush1.msra.mxu0 0.0
        %1328 = vmatprep.subr.mxu0 0.0
        %1329 = vmatpush1.msra.mxu0 0.0
        %1330 = vmatprep.subr.mxu0 0.0
        %1331 = vmatpush1.msra.mxu0 0.0
        %1332 = vmatprep.subr.mxu0 0.0
        %1333 = vmatpush1.msra.mxu0 0.0
        %1334 = vmatprep.subr.mxu0 0.0
        %1335 = vmatpush1.msra.mxu0 0.0
        %1336 = vmatprep.subr.mxu0 0.0
        %1337 = vmatpush1.msra.mxu0 0.0
        %1338 = vmatprep.subr.mxu0 0.0
        %1339 = vmatpush1.msra.mxu0 0.0
        %1340 = vmatprep.subr.mxu0 0.0
        %1341 = vmatpush1.msra.mxu0 0.0
        %1342 = vmatprep.subr.mxu0 0.0
        %1343 = vmatpush1.msra.mxu0 0.0
        %1344 = vmatprep.subr.mxu0 0.0
        %1345 = vmatpush1.msra.mxu0 0.0
        %1346 = vmatprep.subr.mxu0 0.0
        %1347 = vmatpush1.msra.mxu0 0.0
        %1348 = vmatprep.subr.mxu0 0.0
        %1349 = vmatpush1.msra.mxu0 0.0
        %1350 = vmatprep.subr.mxu0 0.0
        %1351 = vmatpush1.msra.mxu0 0.0
        %1352 = vmatprep.subr.mxu0 0.0
        %1353 = vmatpush1.msra.mxu0 0.0
        %1354 = vmatprep.subr.mxu0 0.0
        %1355 = vmatpush1.msra.mxu0 0.0
        %1356 = vmatprep.subr.mxu0 0.0
        %1357 = vmatpush1.msra.mxu0 0.0
        %1358 = vmatprep.subr.mxu0 0.0
        %1359 = vmatpush1.msra.mxu0 0.0
        %1360 = vmatprep.subr.mxu0 0.0
        %1361 = vmatpush1.msra.mxu0 0.0
        %1362 = vmatprep.subr.mxu0 0.0
        %1363 = vmatpush1.msra.mxu0 0.0
        %1364 = vmatprep.subr.mxu0 0.0
        %1365 = vmatpush1.msra.mxu0 0.0
        %1366 = vmatprep.subr.mxu0 0.0
        %1367 = vmatpush1.msra.mxu0 0.0
        %1368 = vmatprep.subr.mxu0 0.0
        %1369 = vmatpush1.msra.mxu0 0.0
        %1370 = vmatprep.subr.mxu0 0.0
        %1371 = vmatpush1.msra.mxu0 0.0
        %1372 = vmatprep.subr.mxu0 0.0
        %1373 = vmatpush1.msra.mxu0 0.0
        %1374 = vmatprep.subr.mxu0 0.0
        %1375 = vmatpush1.msra.mxu0 0.0
        %1376 = vmatprep.subr.mxu0 0.0
        %1377 = vmatpush1.msra.mxu0 0.0
        %1378 = vmatprep.mubr.f32.mxu0 0.0
        %1379 = vmatmul.mubr.f32.gmra.mrb[0].mxu0 %v1312
        %v1380 = vpop.f32.mrb[0].mxu0
        %v1381 = vadd.f32 0.0, %v1380
        %v1382 = vpop.f32.mrb[0].mxu0
        %1383 = vdwg.mxu0
        %1384 = vmatprep.subr.mxu0 0.0
        %1385 = vmatpush1.msra.mxu0 %v1299
        %1386 = vmatprep.subr.mxu0 0.0
        %1387 = vmatpush1.msra.mxu0 %v1300
        %1388 = vmatprep.subr.mxu0 0.0
        %1389 = vmatpush1.msra.mxu0 %v1301
        %1390 = vmatprep.subr.mxu0 0.0
        %1391 = vmatpush1.msra.mxu0 %v1302
        %1392 = vmatprep.subr.mxu0 0.0
        %1393 = vmatpush1.msra.mxu0 0.0
        %1394 = vmatprep.subr.mxu0 0.0
        %1395 = vmatpush1.msra.mxu0 0.0
        %1396 = vmatprep.subr.mxu0 0.0
        %1397 = vmatpush1.msra.mxu0 0.0
        %1398 = vmatprep.subr.mxu0 0.0
        %1399 = vmatpush1.msra.mxu0 0.0
        %1400 = vmatprep.subr.mxu0 0.0
        %1401 = vmatpush1.msra.mxu0 0.0
        %1402 = vmatprep.subr.mxu0 0.0
        %1403 = vmatpush1.msra.mxu0 0.0
        %1404 = vmatprep.subr.mxu0 0.0
        %1405 = vmatpush1.msra.mxu0 0.0
        %1406 = vmatprep.subr.mxu0 0.0
        %1407 = vmatpush1.msra.mxu0 0.0
        %1408 = vmatprep.subr.mxu0 0.0
        %1409 = vmatpush1.msra.mxu0 0.0
        %1410 = vmatprep.subr.mxu0 0.0
        %1411 = vmatpush1.msra.mxu0 0.0
        %1412 = vmatprep.subr.mxu0 0.0
        %1413 = vmatpush1.msra.mxu0 0.0
        %1414 = vmatprep.subr.mxu0 0.0
        %1415 = vmatpush1.msra.mxu0 0.0
        %1416 = vmatprep.subr.mxu0 0.0
        %1417 = vmatpush1.msra.mxu0 0.0
        %1418 = vmatprep.subr.mxu0 0.0
        %1419 = vmatpush1.msra.mxu0 0.0
        %1420 = vmatprep.subr.mxu0 0.0
        %1421 = vmatpush1.msra.mxu0 0.0
        %1422 = vmatprep.subr.mxu0 0.0
        %1423 = vmatpush1.msra.mxu0 0.0
        %1424 = vmatprep.subr.mxu0 0.0
        %1425 = vmatpush1.msra.mxu0 0.0
        %1426 = vmatprep.subr.mxu0 0.0
        %1427 = vmatpush1.msra.mxu0 0.0
        %1428 = vmatprep.subr.mxu0 0.0
        %1429 = vmatpush1.msra.mxu0 0.0
        %1430 = vmatprep.subr.mxu0 0.0
        %1431 = vmatpush1.msra.mxu0 0.0
        %1432 = vmatprep.subr.mxu0 0.0
        %1433 = vmatpush1.msra.mxu0 0.0
        %1434 = vmatprep.subr.mxu0 0.0
        %1435 = vmatpush1.msra.mxu0 0.0
        %1436 = vmatprep.subr.mxu0 0.0
        %1437 = vmatpush1.msra.mxu0 0.0
        %1438 = vmatprep.subr.mxu0 0.0
        %1439 = vmatpush1.msra.mxu0 0.0
        %1440 = vmatprep.subr.mxu0 0.0
        %1441 = vmatpush1.msra.mxu0 0.0
        %1442 = vmatprep.subr.mxu0 0.0
        %1443 = vmatpush1.msra.mxu0 0.0
        %1444 = vmatprep.subr.mxu0 0.0
        %1445 = vmatpush1.msra.mxu0 0.0
        %1446 = vmatprep.subr.mxu0 0.0
        %1447 = vmatpush1.msra.mxu0 0.0
        %1448 = vmatprep.mubr.f32.mxu0 0.0
        %1449 = vmatmul.mubr.f32.gmra.mrb[0].mxu0 %v1312
        %v1450 = vpop.f32.mrb[0].mxu0
        %v1451 = vadd.f32 0.0, %v1450
        %v1452 = vpop.f32.mrb[0].mxu0
        %1453 = vdwg.mxu0
        %1454 = vmatprep.subr.mxu0 0.0
        %1455 = vmatpush1.msra.mxu0 %v1303
        %1456 = vmatprep.subr.mxu0 0.0
        %1457 = vmatpush1.msra.mxu0 %v1304
        %1458 = vmatprep.subr.mxu0 0.0
        %1459 = vmatpush1.msra.mxu0 %v1305
        %1460 = vmatprep.subr.mxu0 0.0
        %1461 = vmatpush1.msra.mxu0 %v1306
        %1462 = vmatprep.subr.mxu0 0.0
        %1463 = vmatpush1.msra.mxu0 0.0
        %1464 = vmatprep.subr.mxu0 0.0
        %1465 = vmatpush1.msra.mxu0 0.0
        %1466 = vmatprep.subr.mxu0 0.0
        %1467 = vmatpush1.msra.mxu0 0.0
        %1468 = vmatprep.subr.mxu0 0.0
        %1469 = vmatpush1.msra.mxu0 0.0
        %1470 = vmatprep.subr.mxu0 0.0
        %1471 = vmatpush1.msra.mxu0 0.0
        %1472 = vmatprep.subr.mxu0 0.0
        %1473 = vmatpush1.msra.mxu0 0.0
        %1474 = vmatprep.subr.mxu0 0.0
        %1475 = vmatpush1.msra.mxu0 0.0
        %1476 = vmatprep.subr.mxu0 0.0
        %1477 = vmatpush1.msra.mxu0 0.0
        %1478 = vmatprep.subr.mxu0 0.0
        %1479 = vmatpush1.msra.mxu0 0.0
        %1480 = vmatprep.subr.mxu0 0.0
        %1481 = vmatpush1.msra.mxu0 0.0
        %1482 = vmatprep.subr.mxu0 0.0
        %1483 = vmatpush1.msra.mxu0 0.0
        %1484 = vmatprep.subr.mxu0 0.0
        %1485 = vmatpush1.msra.mxu0 0.0
        %1486 = vmatprep.subr.mxu0 0.0
        %1487 = vmatpush1.msra.mxu0 0.0
        %1488 = vmatprep.subr.mxu0 0.0
        %1489 = vmatpush1.msra.mxu0 0.0
        %1490 = vmatprep.subr.mxu0 0.0
        %1491 = vmatpush1.msra.mxu0 0.0
        %1492 = vmatprep.subr.mxu0 0.0
        %1493 = vmatpush1.msra.mxu0 0.0
        %1494 = vmatprep.subr.mxu0 0.0
        %1495 = vmatpush1.msra.mxu0 0.0
        %1496 = vmatprep.subr.mxu0 0.0
        %1497 = vmatpush1.msra.mxu0 0.0
        %1498 = vmatprep.subr.mxu0 0.0
        %1499 = vmatpush1.msra.mxu0 0.0
        %1500 = vmatprep.subr.mxu0 0.0
        %1501 = vmatpush1.msra.mxu0 0.0
        %1502 = vmatprep.subr.mxu0 0.0
        %1503 = vmatpush1.msra.mxu0 0.0
        %1504 = vmatprep.subr.mxu0 0.0
        %1505 = vmatpush1.msra.mxu0 0.0
        %1506 = vmatprep.subr.mxu0 0.0
        %1507 = vmatpush1.msra.mxu0 0.0
        %1508 = vmatprep.subr.mxu0 0.0
        %1509 = vmatpush1.msra.mxu0 0.0
        %1510 = vmatprep.subr.mxu0 0.0
        %1511 = vmatpush1.msra.mxu0 0.0
        %1512 = vmatprep.subr.mxu0 0.0
        %1513 = vmatpush1.msra.mxu0 0.0
        %1514 = vmatprep.subr.mxu0 0.0
        %1515 = vmatpush1.msra.mxu0 0.0
        %1516 = vmatprep.subr.mxu0 0.0
        %1517 = vmatpush1.msra.mxu0 0.0
        %1518 = vmatprep.mubr.f32.mxu0 0.0
        %1519 = vmatmul.mubr.f32.gmra.mrb[0].mxu0 %v1312
        %v1520 = vpop.f32.mrb[0].mxu0
        %v1521 = vadd.f32 0.0, %v1520
        %v1522 = vpop.f32.mrb[0].mxu0
        %1523 = vdwg.mxu0
        %1525 = vrot.lane.b32.xlu0 %v1381, 120
        %v1526 = vpop.permute.xlu0 %1525
        %1527 = vrot.lane.b32.xlu0 %v1381, 112
        %v1528 = vpop.permute.xlu0 %1527
        %1529 = vrot.lane.b32.xlu0 %v1381, 104
        %v1530 = vpop.permute.xlu0 %1529
        %1532 = vrot.lane.b32.xlu0 %v1451, 120
        %v1533 = vpop.permute.xlu0 %1532
        %1534 = vrot.lane.b32.xlu0 %v1451, 112
        %v1535 = vpop.permute.xlu0 %1534
        %1536 = vrot.lane.b32.xlu0 %v1451, 104
        %v1537 = vpop.permute.xlu0 %1536
        %1539 = vrot.lane.b32.xlu0 %v1521, 120
        %v1540 = vpop.permute.xlu0 %1539
        %1542 = vrot.lane.b32.xlu0 %v1521, 112
        %v1543 = vpop.permute.xlu0 %1542
        %1545 = vrot.lane.b32.xlu0 %v1521, 104
        %v1546 = vpop.permute.xlu0 %1545
        %vm1548 = vcmask 64512
        %v1549 = vsel %vm1548, %v1381, 0
        %v1551 = vsel %vm1548, %v1451, 0
        %1553 = vmatprep.subr.mxu0 0.0
        %1554 = vmatpush1.xpose.msra.mxu0 %v1551
        %1555 = vmatprep.subr.mxu0 0.0
        %1556 = vmatpush1.xpose.msra.mxu0 0.0
        %1557 = vmatprep.subr.mxu0 0.0
        %1558 = vmatpush1.xpose.msra.mxu0 0.0
        %1559 = vmatprep.subr.mxu0 0.0
        %1560 = vmatpush1.xpose.msra.mxu0 0.0
        %1561 = vmatprep.subr.mxu0 0.0
        %1562 = vmatpush1.xpose.msra.mxu0 0.0
        %1563 = vmatprep.subr.mxu0 0.0
        %1564 = vmatpush1.xpose.msra.mxu0 0.0
        %1565 = vmatprep.subr.mxu0 0.0
        %1566 = vmatpush1.xpose.msra.mxu0 0.0
        %1567 = vmatprep.subr.mxu0 0.0
        %1568 = vmatpush1.xpose.msra.mxu0 0.0
        %1569 = vmatprep.subr.mxu0 0.0
        %1570 = vmatpush1.xpose.msra.mxu0 0.0
        %1571 = vmatprep.subr.mxu0 0.0
        %1572 = vmatpush1.xpose.msra.mxu0 0.0
        %1573 = vmatprep.subr.mxu0 0.0
        %1574 = vmatpush1.xpose.msra.mxu0 0.0
        %1575 = vmatprep.subr.mxu0 0.0
        %1576 = vmatpush1.xpose.msra.mxu0 0.0
        %1577 = vmatprep.subr.mxu0 0.0
        %1578 = vmatpush1.xpose.msra.mxu0 0.0
        %1579 = vmatprep.subr.mxu0 0.0
        %1580 = vmatpush1.xpose.msra.mxu0 0.0
        %1581 = vmatprep.subr.mxu0 0.0
        %1582 = vmatpush1.xpose.msra.mxu0 0.0
        %1583 = vmatprep.subr.mxu0 0.0
        %1584 = vmatpush1.xpose.msra.mxu0 0.0
        %1585 = vmatprep.subr.mxu0 0.0
        %1586 = vmatpush1.xpose.msra.mxu0 0.0
        %1587 = vmatprep.subr.mxu0 0.0
        %1588 = vmatpush1.xpose.msra.mxu0 0.0
        %1589 = vmatprep.subr.mxu0 0.0
        %1590 = vmatpush1.xpose.msra.mxu0 0.0
        %1591 = vmatprep.subr.mxu0 0.0
        %1592 = vmatpush1.xpose.msra.mxu0 0.0
        %1593 = vmatprep.subr.mxu0 0.0
        %1594 = vmatpush1.xpose.msra.mxu0 0.0
        %1595 = vmatprep.subr.mxu0 0.0
        %1596 = vmatpush1.xpose.msra.mxu0 0.0
        %1597 = vmatprep.subr.mxu0 0.0
        %1598 = vmatpush1.xpose.msra.mxu0 0.0
        %1599 = vmatprep.subr.mxu0 0.0
        %1600 = vmatpush1.xpose.msra.mxu0 0.0
        %1601 = vmatprep.subr.mxu0 0.0
        %1602 = vmatpush1.xpose.msra.mxu0 0.0
        %1603 = vmatprep.subr.mxu0 0.0
        %1604 = vmatpush1.xpose.msra.mxu0 0.0
        %1605 = vmatprep.subr.mxu0 0.0
        %1606 = vmatpush1.xpose.msra.mxu0 0.0
        %1607 = vmatprep.subr.mxu0 0.0
        %1608 = vmatpush1.xpose.msra.mxu0 0.0
        %1609 = vmatprep.subr.mxu0 0.0
        %1610 = vmatpush1.xpose.msra.mxu0 0.0
        %1611 = vmatprep.subr.mxu0 0.0
        %1612 = vmatpush1.xpose.msra.mxu0 0.0
        %1613 = vmatprep.subr.mxu0 0.0
        %1614 = vmatpush1.xpose.msra.mxu0 0.0
        %1615 = vmatprep.subr.mxu0 0.0
        %1616 = vmatpush1.xpose.msra.mxu0 0.0
        %1617 = vmatprep.mubr.f32.mxu0 0.0
        %1618 = vmatmul.mubr.f32.gmra.mrb[0].mxu0 %v1549
        %v1619 = vpop.f32.mrb[0].mxu0
        %v1620 = vadd.f32 %v1263, %v1619
        %v1621 = vpop.f32.mrb[0].mxu0
        %1622 = vdwg.mxu0
        %v1623 = vsel %vm1548, %v1526, 0
        %v1625 = vsel %vm1548, %v1533, 0
        %1627 = vmatprep.subr.mxu0 0.0
        %1628 = vmatpush1.xpose.msra.mxu0 %v1625
        %1629 = vmatprep.subr.mxu0 0.0
        %1630 = vmatpush1.xpose.msra.mxu0 0.0
        %1631 = vmatprep.subr.mxu0 0.0
        %1632 = vmatpush1.xpose.msra.mxu0 0.0
        %1633 = vmatprep.subr.mxu0 0.0
        %1634 = vmatpush1.xpose.msra.mxu0 0.0
        %1635 = vmatprep.subr.mxu0 0.0
        %1636 = vmatpush1.xpose.msra.mxu0 0.0
        %1637 = vmatprep.subr.mxu0 0.0
        %1638 = vmatpush1.xpose.msra.mxu0 0.0
        %1639 = vmatprep.subr.mxu0 0.0
        %1640 = vmatpush1.xpose.msra.mxu0 0.0
        %1641 = vmatprep.subr.mxu0 0.0
        %1642 = vmatpush1.xpose.msra.mxu0 0.0
        %1643 = vmatprep.subr.mxu0 0.0
        %1644 = vmatpush1.xpose.msra.mxu0 0.0
        %1645 = vmatprep.subr.mxu0 0.0
        %1646 = vmatpush1.xpose.msra.mxu0 0.0
        %1647 = vmatprep.subr.mxu0 0.0
        %1648 = vmatpush1.xpose.msra.mxu0 0.0
        %1649 = vmatprep.subr.mxu0 0.0
        %1650 = vmatpush1.xpose.msra.mxu0 0.0
        %1651 = vmatprep.subr.mxu0 0.0
        %1652 = vmatpush1.xpose.msra.mxu0 0.0
        %1653 = vmatprep.subr.mxu0 0.0
        %1654 = vmatpush1.xpose.msra.mxu0 0.0
        %1655 = vmatprep.subr.mxu0 0.0
        %1656 = vmatpush1.xpose.msra.mxu0 0.0
        %1657 = vmatprep.subr.mxu0 0.0
        %1658 = vmatpush1.xpose.msra.mxu0 0.0
        %1659 = vmatprep.subr.mxu0 0.0
        %1660 = vmatpush1.xpose.msra.mxu0 0.0
        %1661 = vmatprep.subr.mxu0 0.0
        %1662 = vmatpush1.xpose.msra.mxu0 0.0
        %1663 = vmatprep.subr.mxu0 0.0
        %1664 = vmatpush1.xpose.msra.mxu0 0.0
        %1665 = vmatprep.subr.mxu0 0.0
        %1666 = vmatpush1.xpose.msra.mxu0 0.0
        %1667 = vmatprep.subr.mxu0 0.0
        %1668 = vmatpush1.xpose.msra.mxu0 0.0
        %1669 = vmatprep.subr.mxu0 0.0
        %1670 = vmatpush1.xpose.msra.mxu0 0.0
        %1671 = vmatprep.subr.mxu0 0.0
        %1672 = vmatpush1.xpose.msra.mxu0 0.0
        %1673 = vmatprep.subr.mxu0 0.0
        %1674 = vmatpush1.xpose.msra.mxu0 0.0
        %1675 = vmatprep.subr.mxu0 0.0
        %1676 = vmatpush1.xpose.msra.mxu0 0.0
        %1677 = vmatprep.subr.mxu0 0.0
        %1678 = vmatpush1.xpose.msra.mxu0 0.0
        %1679 = vmatprep.subr.mxu0 0.0
        %1680 = vmatpush1.xpose.msra.mxu0 0.0
        %1681 = vmatprep.subr.mxu0 0.0
        %1682 = vmatpush1.xpose.msra.mxu0 0.0
        %1683 = vmatprep.subr.mxu0 0.0
        %1684 = vmatpush1.xpose.msra.mxu0 0.0
        %1685 = vmatprep.subr.mxu0 0.0
        %1686 = vmatpush1.xpose.msra.mxu0 0.0
        %1687 = vmatprep.subr.mxu0 0.0
        %1688 = vmatpush1.xpose.msra.mxu0 0.0
        %1689 = vmatprep.subr.mxu0 0.0
        %1690 = vmatpush1.xpose.msra.mxu0 0.0
        %1691 = vmatprep.mubr.f32.mxu0 0.0
        %1692 = vmatmul.mubr.f32.gmra.mrb[0].mxu0 %v1623
        %v1693 = vpop.f32.mrb[0].mxu0
        %v1694 = vadd.f32 %v1263, %v1693
        %v1695 = vpop.f32.mrb[0].mxu0
        %1696 = vdwg.mxu0
        %v1697 = vsel %vm1548, %v1528, 0
        %v1699 = vsel %vm1548, %v1535, 0
        %1701 = vmatprep.subr.mxu0 0.0
        %1702 = vmatpush1.xpose.msra.mxu0 %v1699
        %1703 = vmatprep.subr.mxu0 0.0
        %1704 = vmatpush1.xpose.msra.mxu0 0.0
        %1705 = vmatprep.subr.mxu0 0.0
        %1706 = vmatpush1.xpose.msra.mxu0 0.0
        %1707 = vmatprep.subr.mxu0 0.0
        %1708 = vmatpush1.xpose.msra.mxu0 0.0
        %1709 = vmatprep.subr.mxu0 0.0
        %1710 = vmatpush1.xpose.msra.mxu0 0.0
        %1711 = vmatprep.subr.mxu0 0.0
        %1712 = vmatpush1.xpose.msra.mxu0 0.0
        %1713 = vmatprep.subr.mxu0 0.0
        %1714 = vmatpush1.xpose.msra.mxu0 0.0
        %1715 = vmatprep.subr.mxu0 0.0
        %1716 = vmatpush1.xpose.msra.mxu0 0.0
        %1717 = vmatprep.subr.mxu0 0.0
        %1718 = vmatpush1.xpose.msra.mxu0 0.0
        %1719 = vmatprep.subr.mxu0 0.0
        %1720 = vmatpush1.xpose.msra.mxu0 0.0
        %1721 = vmatprep.subr.mxu0 0.0
        %1722 = vmatpush1.xpose.msra.mxu0 0.0
        %1723 = vmatprep.subr.mxu0 0.0
        %1724 = vmatpush1.xpose.msra.mxu0 0.0
        %1725 = vmatprep.subr.mxu0 0.0
        %1726 = vmatpush1.xpose.msra.mxu0 0.0
        %1727 = vmatprep.subr.mxu0 0.0
        %1728 = vmatpush1.xpose.msra.mxu0 0.0
        %1729 = vmatprep.subr.mxu0 0.0
        %1730 = vmatpush1.xpose.msra.mxu0 0.0
        %1731 = vmatprep.subr.mxu0 0.0
        %1732 = vmatpush1.xpose.msra.mxu0 0.0
        %1733 = vmatprep.subr.mxu0 0.0
        %1734 = vmatpush1.xpose.msra.mxu0 0.0
        %1735 = vmatprep.subr.mxu0 0.0
        %1736 = vmatpush1.xpose.msra.mxu0 0.0
        %1737 = vmatprep.subr.mxu0 0.0
        %1738 = vmatpush1.xpose.msra.mxu0 0.0
        %1739 = vmatprep.subr.mxu0 0.0
        %1740 = vmatpush1.xpose.msra.mxu0 0.0
        %1741 = vmatprep.subr.mxu0 0.0
        %1742 = vmatpush1.xpose.msra.mxu0 0.0
        %1743 = vmatprep.subr.mxu0 0.0
        %1744 = vmatpush1.xpose.msra.mxu0 0.0
        %1745 = vmatprep.subr.mxu0 0.0
        %1746 = vmatpush1.xpose.msra.mxu0 0.0
        %1747 = vmatprep.subr.mxu0 0.0
        %1748 = vmatpush1.xpose.msra.mxu0 0.0
        %1749 = vmatprep.subr.mxu0 0.0
        %1750 = vmatpush1.xpose.msra.mxu0 0.0
        %1751 = vmatprep.subr.mxu0 0.0
        %1752 = vmatpush1.xpose.msra.mxu0 0.0
        %1753 = vmatprep.subr.mxu0 0.0
        %1754 = vmatpush1.xpose.msra.mxu0 0.0
        %1755 = vmatprep.subr.mxu0 0.0
        %1756 = vmatpush1.xpose.msra.mxu0 0.0
        %1757 = vmatprep.subr.mxu0 0.0
        %1758 = vmatpush1.xpose.msra.mxu0 0.0
        %1759 = vmatprep.subr.mxu0 0.0
        %1760 = vmatpush1.xpose.msra.mxu0 0.0
        %1761 = vmatprep.subr.mxu0 0.0
        %1762 = vmatpush1.xpose.msra.mxu0 0.0
        %1763 = vmatprep.subr.mxu0 0.0
        %1764 = vmatpush1.xpose.msra.mxu0 0.0
        %1765 = vmatprep.mubr.f32.mxu0 0.0
        %1766 = vmatmul.mubr.f32.gmra.mrb[0].mxu0 %v1697
        %v1767 = vpop.f32.mrb[0].mxu0
        %v1768 = vadd.f32 %v1263, %v1767
        %v1769 = vpop.f32.mrb[0].mxu0
        %1770 = vdwg.mxu0
        %v1771 = vsel %vm1548, %v1530, 0
        %v1773 = vsel %vm1548, %v1537, 0
        %1775 = vmatprep.subr.mxu0 0.0
        %1776 = vmatpush1.xpose.msra.mxu0 %v1773
        %1777 = vmatprep.subr.mxu0 0.0
        %1778 = vmatpush1.xpose.msra.mxu0 0.0
        %1779 = vmatprep.subr.mxu0 0.0
        %1780 = vmatpush1.xpose.msra.mxu0 0.0
        %1781 = vmatprep.subr.mxu0 0.0
        %1782 = vmatpush1.xpose.msra.mxu0 0.0
        %1783 = vmatprep.subr.mxu0 0.0
        %1784 = vmatpush1.xpose.msra.mxu0 0.0
        %1785 = vmatprep.subr.mxu0 0.0
        %1786 = vmatpush1.xpose.msra.mxu0 0.0
        %1787 = vmatprep.subr.mxu0 0.0
        %1788 = vmatpush1.xpose.msra.mxu0 0.0
        %1789 = vmatprep.subr.mxu0 0.0
        %1790 = vmatpush1.xpose.msra.mxu0 0.0
        %1791 = vmatprep.subr.mxu0 0.0
        %1792 = vmatpush1.xpose.msra.mxu0 0.0
        %1793 = vmatprep.subr.mxu0 0.0
        %1794 = vmatpush1.xpose.msra.mxu0 0.0
        %1795 = vmatprep.subr.mxu0 0.0
        %1796 = vmatpush1.xpose.msra.mxu0 0.0
        %1797 = vmatprep.subr.mxu0 0.0
        %1798 = vmatpush1.xpose.msra.mxu0 0.0
        %1799 = vmatprep.subr.mxu0 0.0
        %1800 = vmatpush1.xpose.msra.mxu0 0.0
        %1801 = vmatprep.subr.mxu0 0.0
        %1802 = vmatpush1.xpose.msra.mxu0 0.0
        %1803 = vmatprep.subr.mxu0 0.0
        %1804 = vmatpush1.xpose.msra.mxu0 0.0
        %1805 = vmatprep.subr.mxu0 0.0
        %1806 = vmatpush1.xpose.msra.mxu0 0.0
        %1807 = vmatprep.subr.mxu0 0.0
        %1808 = vmatpush1.xpose.msra.mxu0 0.0
        %1809 = vmatprep.subr.mxu0 0.0
        %1810 = vmatpush1.xpose.msra.mxu0 0.0
        %1811 = vmatprep.subr.mxu0 0.0
        %1812 = vmatpush1.xpose.msra.mxu0 0.0
        %1813 = vmatprep.subr.mxu0 0.0
        %1814 = vmatpush1.xpose.msra.mxu0 0.0
        %1815 = vmatprep.subr.mxu0 0.0
        %1816 = vmatpush1.xpose.msra.mxu0 0.0
        %1817 = vmatprep.subr.mxu0 0.0
        %1818 = vmatpush1.xpose.msra.mxu0 0.0
        %1819 = vmatprep.subr.mxu0 0.0
        %1820 = vmatpush1.xpose.msra.mxu0 0.0
        %1821 = vmatprep.subr.mxu0 0.0
        %1822 = vmatpush1.xpose.msra.mxu0 0.0
        %1823 = vmatprep.subr.mxu0 0.0
        %1824 = vmatpush1.xpose.msra.mxu0 0.0
        %1825 = vmatprep.subr.mxu0 0.0
        %1826 = vmatpush1.xpose.msra.mxu0 0.0
        %1827 = vmatprep.subr.mxu0 0.0
        %1828 = vmatpush1.xpose.msra.mxu0 0.0
        %1829 = vmatprep.subr.mxu0 0.0
        %1830 = vmatpush1.xpose.msra.mxu0 0.0
        %1831 = vmatprep.subr.mxu0 0.0
        %1832 = vmatpush1.xpose.msra.mxu0 0.0
        %1833 = vmatprep.subr.mxu0 0.0
        %1834 = vmatpush1.xpose.msra.mxu0 0.0
        %1835 = vmatprep.subr.mxu0 0.0
        %1836 = vmatpush1.xpose.msra.mxu0 0.0
        %1837 = vmatprep.subr.mxu0 0.0
        %1838 = vmatpush1.xpose.msra.mxu0 0.0
        %1839 = vmatprep.mubr.f32.mxu0 0.0
        %1840 = vmatmul.mubr.f32.gmra.mrb[0].mxu0 %v1771
        %v1841 = vpop.f32.mrb[0].mxu0
        %v1842 = vadd.f32 %v1263, %v1841
        %v1843 = vpop.f32.mrb[0].mxu0
        %1844 = vdwg.mxu0
        %v1845 = vsel %vm1548, %v1620, -inf
        %1846 = vmax.xlane.f32.xlu0 %v1845
        %v1847 = vpop.xlane.xlu0 %1846
        %v1848 = vsel %vm1548, %v1694, -inf
        %1849 = vmax.xlane.f32.xlu0 %v1848
        %v1850 = vpop.xlane.xlu0 %1849
        %v1851 = vsel %vm1548, %v1768, -inf
        %1852 = vmax.xlane.f32.xlu0 %v1851
        %v1853 = vpop.xlane.xlu0 %1852
        %v1854 = vsel %vm1548, %v1842, -inf
        %1855 = vmax.xlane.f32.xlu0 %v1854
        %v1856 = vpop.xlane.xlu0 %1855
        %v1857 = vsub.f32 %v1620, %v1847
        %v1858 = vsub.f32 %v1694, %v1850
        %v1859 = vsub.f32 %v1768, %v1853
        %v1860 = vsub.f32 %v1842, %v1856
        %v1861 = vmul.f32 %v1857, 1.442695
        %v1862 = vpow.pop %v1861
        %v1863 = vmul.f32 %v1858, 1.442695
        %v1864 = vpow.pop %v1863
        %v1865 = vmul.f32 %v1859, 1.442695
        %v1866 = vpow.pop %v1865
        %v1867 = vmul.f32 %v1860, 1.442695
        %v1868 = vpow.pop %v1867
        %v1869 = vsel %vm1548, %v1862, 0.0
        %1870 = vadd.xlane.f32.xlu0 %v1869
        %v1871 = vpop.xlane.xlu0 %1870
        %v1872 = vsel %vm1548, %v1864, 0.0
        %1873 = vadd.xlane.f32.xlu0 %v1872
        %v1874 = vpop.xlane.xlu0 %1873
        %v1875 = vsel %vm1548, %v1866, 0.0
        %1876 = vadd.xlane.f32.xlu0 %v1875
        %v1877 = vpop.xlane.xlu0 %1876
        %v1878 = vsel %vm1548, %v1868, 0.0
        %1879 = vadd.xlane.f32.xlu0 %v1878
        %v1880 = vpop.xlane.xlu0 %1879
        %v1881 = vrcp.pop %v1871
        %v1882 = vmul.f32 %v1862, %v1881
        %v1883 = vrcp.pop %v1874
        %v1884 = vmul.f32 %v1864, %v1883
        %v1885 = vrcp.pop %v1877
        %v1886 = vmul.f32 %v1866, %v1885
        %v1887 = vrcp.pop %v1880
        %v1888 = vmul.f32 %v1868, %v1887
        %v1890 = vsel %vm1548, %v1882, 0
        %1892 = vmatprep.subr.mxu0 0.0
        %1893 = vmatpush1.msra.mxu0 %v1521
        %1894 = vmatprep.subr.mxu0 0.0
        %1895 = vmatpush1.msra.mxu0 0.0
        %1896 = vmatprep.subr.mxu0 0.0
        %1897 = vmatpush1.msra.mxu0 0.0
        %1898 = vmatprep.subr.mxu0 0.0
        %1899 = vmatpush1.msra.mxu0 0.0
        %1900 = vmatprep.subr.mxu0 0.0
        %1901 = vmatpush1.msra.mxu0 0.0
        %1902 = vmatprep.subr.mxu0 0.0
        %1903 = vmatpush1.msra.mxu0 0.0
        %1904 = vmatprep.subr.mxu0 0.0
        %1905 = vmatpush1.msra.mxu0 0.0
        %1906 = vmatprep.subr.mxu0 0.0
        %1907 = vmatpush1.msra.mxu0 0.0
        %1908 = vmatprep.subr.mxu0 0.0
        %1909 = vmatpush1.msra.mxu0 0.0
        %1910 = vmatprep.subr.mxu0 0.0
        %1911 = vmatpush1.msra.mxu0 0.0
        %1912 = vmatprep.subr.mxu0 0.0
        %1913 = vmatpush1.msra.mxu0 0.0
        %1914 = vmatprep.subr.mxu0 0.0
        %1915 = vmatpush1.msra.mxu0 0.0
        %1916 = vmatprep.subr.mxu0 0.0
        %1917 = vmatpush1.msra.mxu0 0.0
        %1918 = vmatprep.subr.mxu0 0.0
        %1919 = vmatpush1.msra.mxu0 0.0
        %1920 = vmatprep.subr.mxu0 0.0
        %1921 = vmatpush1.msra.mxu0 0.0
        %1922 = vmatprep.subr.mxu0 0.0
        %1923 = vmatpush1.msra.mxu0 0.0
        %1924 = vmatprep.subr.mxu0 0.0
        %1925 = vmatpush1.msra.mxu0 0.0
        %1926 = vmatprep.subr.mxu0 0.0
        %1927 = vmatpush1.msra.mxu0 0.0
        %1928 = vmatprep.subr.mxu0 0.0
        %1929 = vmatpush1.msra.mxu0 0.0
        %1930 = vmatprep.subr.mxu0 0.0
        %1931 = vmatpush1.msra.mxu0 0.0
        %1932 = vmatprep.subr.mxu0 0.0
        %1933 = vmatpush1.msra.mxu0 0.0
        %1934 = vmatprep.subr.mxu0 0.0
        %1935 = vmatpush1.msra.mxu0 0.0
        %1936 = vmatprep.subr.mxu0 0.0
        %1937 = vmatpush1.msra.mxu0 0.0
        %1938 = vmatprep.subr.mxu0 0.0
        %1939 = vmatpush1.msra.mxu0 0.0
        %1940 = vmatprep.subr.mxu0 0.0
        %1941 = vmatpush1.msra.mxu0 0.0
        %1942 = vmatprep.subr.mxu0 0.0
        %1943 = vmatpush1.msra.mxu0 0.0
        %1944 = vmatprep.subr.mxu0 0.0
        %1945 = vmatpush1.msra.mxu0 0.0
        %1946 = vmatprep.subr.mxu0 0.0
        %1947 = vmatpush1.msra.mxu0 0.0
        %1948 = vmatprep.subr.mxu0 0.0
        %1949 = vmatpush1.msra.mxu0 0.0
        %1950 = vmatprep.subr.mxu0 0.0
        %1951 = vmatpush1.msra.mxu0 0.0
        %1952 = vmatprep.subr.mxu0 0.0
        %1953 = vmatpush1.msra.mxu0 0.0
        %1954 = vmatprep.subr.mxu0 0.0
        %1955 = vmatpush1.msra.mxu0 0.0
        %1956 = vmatprep.mubr.f32.mxu0 0.0
        %1957 = vmatmul.mubr.f32.gmra.mrb[0].mxu0 %v1890
        %v1958 = vpop.f32.mrb[0].mxu0
        %v1959 = vadd.f32 0.0, %v1958
        %v1960 = vpop.f32.mrb[0].mxu0
        %1961 = vdwg.mxu0
        %v1963 = vsel %vm1548, %v1884, 0
        %1965 = vmatprep.subr.mxu0 0.0
        %1966 = vmatpush1.msra.mxu0 %v1540
        %1967 = vmatprep.subr.mxu0 0.0
        %1968 = vmatpush1.msra.mxu0 0.0
        %1969 = vmatprep.subr.mxu0 0.0
        %1970 = vmatpush1.msra.mxu0 0.0
        %1971 = vmatprep.subr.mxu0 0.0
        %1972 = vmatpush1.msra.mxu0 0.0
        %1973 = vmatprep.subr.mxu0 0.0
        %1974 = vmatpush1.msra.mxu0 0.0
        %1975 = vmatprep.subr.mxu0 0.0
        %1976 = vmatpush1.msra.mxu0 0.0
        %1977 = vmatprep.subr.mxu0 0.0
        %1978 = vmatpush1.msra.mxu0 0.0
        %1979 = vmatprep.subr.mxu0 0.0
        %1980 = vmatpush1.msra.mxu0 0.0
        %1981 = vmatprep.subr.mxu0 0.0
        %1982 = vmatpush1.msra.mxu0 0.0
        %1983 = vmatprep.subr.mxu0 0.0
        %1984 = vmatpush1.msra.mxu0 0.0
        %1985 = vmatprep.subr.mxu0 0.0
        %1986 = vmatpush1.msra.mxu0 0.0
        %1987 = vmatprep.subr.mxu0 0.0
        %1988 = vmatpush1.msra.mxu0 0.0
        %1989 = vmatprep.subr.mxu0 0.0
        %1990 = vmatpush1.msra.mxu0 0.0
        %1991 = vmatprep.subr.mxu0 0.0
        %1992 = vmatpush1.msra.mxu0 0.0
        %1993 = vmatprep.subr.mxu0 0.0
        %1994 = vmatpush1.msra.mxu0 0.0
        %1995 = vmatprep.subr.mxu0 0.0
        %1996 = vmatpush1.msra.mxu0 0.0
        %1997 = vmatprep.subr.mxu0 0.0
        %1998 = vmatpush1.msra.mxu0 0.0
        %1999 = vmatprep.subr.mxu0 0.0
        %2000 = vmatpush1.msra.mxu0 0.0
        %2001 = vmatprep.subr.mxu0 0.0
        %2002 = vmatpush1.msra.mxu0 0.0
        %2003 = vmatprep.subr.mxu0 0.0
        %2004 = vmatpush1.msra.mxu0 0.0
        %2005 = vmatprep.subr.mxu0 0.0
        %2006 = vmatpush1.msra.mxu0 0.0
        %2007 = vmatprep.subr.mxu0 0.0
        %2008 = vmatpush1.msra.mxu0 0.0
        %2009 = vmatprep.subr.mxu0 0.0
        %2010 = vmatpush1.msra.mxu0 0.0
        %2011 = vmatprep.subr.mxu0 0.0
        %2012 = vmatpush1.msra.mxu0 0.0
        %2013 = vmatprep.subr.mxu0 0.0
        %2014 = vmatpush1.msra.mxu0 0.0
        %2015 = vmatprep.subr.mxu0 0.0
        %2016 = vmatpush1.msra.mxu0 0.0
        %2017 = vmatprep.subr.mxu0 0.0
        %2018 = vmatpush1.msra.mxu0 0.0
        %2019 = vmatprep.subr.mxu0 0.0
        %2020 = vmatpush1.msra.mxu0 0.0
        %2021 = vmatprep.subr.mxu0 0.0
        %2022 = vmatpush1.msra.mxu0 0.0
        %2023 = vmatprep.subr.mxu0 0.0
        %2024 = vmatpush1.msra.mxu0 0.0
        %2025 = vmatprep.subr.mxu0 0.0
        %2026 = vmatpush1.msra.mxu0 0.0
        %2027 = vmatprep.subr.mxu0 0.0
        %2028 = vmatpush1.msra.mxu0 0.0
        %2029 = vmatprep.mubr.f32.mxu0 0.0
        %2030 = vmatmul.mubr.f32.gmra.mrb[0].mxu0 %v1963
        %v2031 = vpop.f32.mrb[0].mxu0
        %v2032 = vadd.f32 0.0, %v2031
        %v2033 = vpop.f32.mrb[0].mxu0
        %2034 = vdwg.mxu0
        %v2036 = vsel %vm1548, %v1886, 0
        %2038 = vmatprep.subr.mxu0 0.0
        %2039 = vmatpush1.msra.mxu0 %v1543
        %2040 = vmatprep.subr.mxu0 0.0
        %2041 = vmatpush1.msra.mxu0 0.0
        %2042 = vmatprep.subr.mxu0 0.0
        %2043 = vmatpush1.msra.mxu0 0.0
        %2044 = vmatprep.subr.mxu0 0.0
        %2045 = vmatpush1.msra.mxu0 0.0
        %2046 = vmatprep.subr.mxu0 0.0
        %2047 = vmatpush1.msra.mxu0 0.0
        %2048 = vmatprep.subr.mxu0 0.0
        %2049 = vmatpush1.msra.mxu0 0.0
        %2050 = vmatprep.subr.mxu0 0.0
        %2051 = vmatpush1.msra.mxu0 0.0
        %2052 = vmatprep.subr.mxu0 0.0
        %2053 = vmatpush1.msra.mxu0 0.0
        %2054 = vmatprep.subr.mxu0 0.0
        %2055 = vmatpush1.msra.mxu0 0.0
        %2056 = vmatprep.subr.mxu0 0.0
        %2057 = vmatpush1.msra.mxu0 0.0
        %2058 = vmatprep.subr.mxu0 0.0
        %2059 = vmatpush1.msra.mxu0 0.0
        %2060 = vmatprep.subr.mxu0 0.0
        %2061 = vmatpush1.msra.mxu0 0.0
        %2062 = vmatprep.subr.mxu0 0.0
        %2063 = vmatpush1.msra.mxu0 0.0
        %2064 = vmatprep.subr.mxu0 0.0
        %2065 = vmatpush1.msra.mxu0 0.0
        %2066 = vmatprep.subr.mxu0 0.0
        %2067 = vmatpush1.msra.mxu0 0.0
        %2068 = vmatprep.subr.mxu0 0.0
        %2069 = vmatpush1.msra.mxu0 0.0
        %2070 = vmatprep.subr.mxu0 0.0
        %2071 = vmatpush1.msra.mxu0 0.0
        %2072 = vmatprep.subr.mxu0 0.0
        %2073 = vmatpush1.msra.mxu0 0.0
        %2074 = vmatprep.subr.mxu0 0.0
        %2075 = vmatpush1.msra.mxu0 0.0
        %2076 = vmatprep.subr.mxu0 0.0
        %2077 = vmatpush1.msra.mxu0 0.0
        %2078 = vmatprep.subr.mxu0 0.0
        %2079 = vmatpush1.msra.mxu0 0.0
        %2080 = vmatprep.subr.mxu0 0.0
        %2081 = vmatpush1.msra.mxu0 0.0
        %2082 = vmatprep.subr.mxu0 0.0
        %2083 = vmatpush1.msra.mxu0 0.0
        %2084 = vmatprep.subr.mxu0 0.0
        %2085 = vmatpush1.msra.mxu0 0.0
        %2086 = vmatprep.subr.mxu0 0.0
        %2087 = vmatpush1.msra.mxu0 0.0
        %2088 = vmatprep.subr.mxu0 0.0
        %2089 = vmatpush1.msra.mxu0 0.0
        %2090 = vmatprep.subr.mxu0 0.0
        %2091 = vmatpush1.msra.mxu0 0.0
        %2092 = vmatprep.subr.mxu0 0.0
        %2093 = vmatpush1.msra.mxu0 0.0
        %2094 = vmatprep.subr.mxu0 0.0
        %2095 = vmatpush1.msra.mxu0 0.0
        %2096 = vmatprep.subr.mxu0 0.0
        %2097 = vmatpush1.msra.mxu0 0.0
        %2098 = vmatprep.subr.mxu0 0.0
        %2099 = vmatpush1.msra.mxu0 0.0
        %2100 = vmatprep.subr.mxu0 0.0
        %2101 = vmatpush1.msra.mxu0 0.0
        %2102 = vmatprep.mubr.f32.mxu0 0.0
        %2103 = vmatmul.mubr.f32.gmra.mrb[0].mxu0 %v2036
        %v2104 = vpop.f32.mrb[0].mxu0
        %v2105 = vadd.f32 0.0, %v2104
        %v2106 = vpop.f32.mrb[0].mxu0
        %2107 = vdwg.mxu0
        %v2109 = vsel %vm1548, %v1888, 0
        %2111 = vmatprep.subr.mxu0 0.0
        %2112 = vmatpush1.msra.mxu0 %v1546
        %2113 = vmatprep.subr.mxu0 0.0
        %2114 = vmatpush1.msra.mxu0 0.0
        %2115 = vmatprep.subr.mxu0 0.0
        %2116 = vmatpush1.msra.mxu0 0.0
        %2117 = vmatprep.subr.mxu0 0.0
        %2118 = vmatpush1.msra.mxu0 0.0
        %2119 = vmatprep.subr.mxu0 0.0
        %2120 = vmatpush1.msra.mxu0 0.0
        %2121 = vmatprep.subr.mxu0 0.0
        %2122 = vmatpush1.msra.mxu0 0.0
        %2123 = vmatprep.subr.mxu0 0.0
        %2124 = vmatpush1.msra.mxu0 0.0
        %2125 = vmatprep.subr.mxu0 0.0
        %2126 = vmatpush1.msra.mxu0 0.0
        %2127 = vmatprep.subr.mxu0 0.0
        %2128 = vmatpush1.msra.mxu0 0.0
        %2129 = vmatprep.subr.mxu0 0.0
        %2130 = vmatpush1.msra.mxu0 0.0
        %2131 = vmatprep.subr.mxu0 0.0
        %2132 = vmatpush1.msra.mxu0 0.0
        %2133 = vmatprep.subr.mxu0 0.0
        %2134 = vmatpush1.msra.mxu0 0.0
        %2135 = vmatprep.subr.mxu0 0.0
        %2136 = vmatpush1.msra.mxu0 0.0
        %2137 = vmatprep.subr.mxu0 0.0
        %2138 = vmatpush1.msra.mxu0 0.0
        %2139 = vmatprep.subr.mxu0 0.0
        %2140 = vmatpush1.msra.mxu0 0.0
        %2141 = vmatprep.subr.mxu0 0.0
        %2142 = vmatpush1.msra.mxu0 0.0
        %2143 = vmatprep.subr.mxu0 0.0
        %2144 = vmatpush1.msra.mxu0 0.0
        %2145 = vmatprep.subr.mxu0 0.0
        %2146 = vmatpush1.msra.mxu0 0.0
        %2147 = vmatprep.subr.mxu0 0.0
        %2148 = vmatpush1.msra.mxu0 0.0
        %2149 = vmatprep.subr.mxu0 0.0
        %2150 = vmatpush1.msra.mxu0 0.0
        %2151 = vmatprep.subr.mxu0 0.0
        %2152 = vmatpush1.msra.mxu0 0.0
        %2153 = vmatprep.subr.mxu0 0.0
        %2154 = vmatpush1.msra.mxu0 0.0
        %2155 = vmatprep.subr.mxu0 0.0
        %2156 = vmatpush1.msra.mxu0 0.0
        %2157 = vmatprep.subr.mxu0 0.0
        %2158 = vmatpush1.msra.mxu0 0.0
        %2159 = vmatprep.subr.mxu0 0.0
        %2160 = vmatpush1.msra.mxu0 0.0
        %2161 = vmatprep.subr.mxu0 0.0
        %2162 = vmatpush1.msra.mxu0 0.0
        %2163 = vmatprep.subr.mxu0 0.0
        %2164 = vmatpush1.msra.mxu0 0.0
        %2165 = vmatprep.subr.mxu0 0.0
        %2166 = vmatpush1.msra.mxu0 0.0
        %2167 = vmatprep.subr.mxu0 0.0
        %2168 = vmatpush1.msra.mxu0 0.0
        %2169 = vmatprep.subr.mxu0 0.0
        %2170 = vmatpush1.msra.mxu0 0.0
        %2171 = vmatprep.subr.mxu0 0.0
        %2172 = vmatpush1.msra.mxu0 0.0
        %2173 = vmatprep.subr.mxu0 0.0
        %2174 = vmatpush1.msra.mxu0 0.0
        %2175 = vmatprep.mubr.f32.mxu0 0.0
        %2176 = vmatmul.mubr.f32.gmra.mrb[0].mxu0 %v2109
        %v2177 = vpop.f32.mrb[0].mxu0
        %v2178 = vadd.f32 0.0, %v2177
        %v2179 = vpop.f32.mrb[0].mxu0
        %2180 = vdwg.mxu0
        %2182 = vrot.lane.b32.xlu0 %v2032, 8
        %v2183 = vpop.permute.xlu0 %2182
        %2186 = vrot.lane.b32.xlu0 %v2105, 16
        %v2187 = vpop.permute.xlu0 %2186
        %2190 = vrot.lane.b32.xlu0 %v2178, 24
        %v2191 = vpop.permute.xlu0 %2190
        %v2193 = vsel %vm1548, %v1959, %v2183
        %vm2194 = vcmask 130048
        %v2195 = vsel %vm2194, %v2193, %v2187
        %vm2196 = vcmask 195584
        %v2197 = vsel %vm2196, %v2195, %v2191
        %v2199 = vsel %vm1266, %v2197, 0
        %2201 = vmatprep.subr.mxu0 0.0
        %2202 = vmatpush1.msra.mxu0 %v1307
        %2203 = vmatprep.subr.mxu0 0.0
        %2204 = vmatpush1.msra.mxu0 %v1308
        %2205 = vmatprep.subr.mxu0 0.0
        %2206 = vmatpush1.msra.mxu0 %v1309
        %2207 = vmatprep.subr.mxu0 0.0
        %2208 = vmatpush1.msra.mxu0 %v1310
        %2209 = vmatprep.subr.mxu0 0.0
        %2210 = vmatpush1.msra.mxu0 0.0
        %2211 = vmatprep.subr.mxu0 0.0
        %2212 = vmatpush1.msra.mxu0 0.0
        %2213 = vmatprep.subr.mxu0 0.0
        %2214 = vmatpush1.msra.mxu0 0.0
        %2215 = vmatprep.subr.mxu0 0.0
        %2216 = vmatpush1.msra.mxu0 0.0
        %2217 = vmatprep.subr.mxu0 0.0
        %2218 = vmatpush1.msra.mxu0 0.0
        %2219 = vmatprep.subr.mxu0 0.0
        %2220 = vmatpush1.msra.mxu0 0.0
        %2221 = vmatprep.subr.mxu0 0.0
        %2222 = vmatpush1.msra.mxu0 0.0
        %2223 = vmatprep.subr.mxu0 0.0
        %2224 = vmatpush1.msra.mxu0 0.0
        %2225 = vmatprep.subr.mxu0 0.0
        %2226 = vmatpush1.msra.mxu0 0.0
        %2227 = vmatprep.subr.mxu0 0.0
        %2228 = vmatpush1.msra.mxu0 0.0
        %2229 = vmatprep.subr.mxu0 0.0
        %2230 = vmatpush1.msra.mxu0 0.0
        %2231 = vmatprep.subr.mxu0 0.0
        %2232 = vmatpush1.msra.mxu0 0.0
        %2233 = vmatprep.subr.mxu0 0.0
        %2234 = vmatpush1.msra.mxu0 0.0
        %2235 = vmatprep.subr.mxu0 0.0
        %2236 = vmatpush1.msra.mxu0 0.0
        %2237 = vmatprep.subr.mxu0 0.0
        %2238 = vmatpush1.msra.mxu0 0.0
        %2239 = vmatprep.subr.mxu0 0.0
        %2240 = vmatpush1.msra.mxu0 0.0
        %2241 = vmatprep.subr.mxu0 0.0
        %2242 = vmatpush1.msra.mxu0 0.0
        %2243 = vmatprep.subr.mxu0 0.0
        %2244 = vmatpush1.msra.mxu0 0.0
        %2245 = vmatprep.subr.mxu0 0.0
        %2246 = vmatpush1.msra.mxu0 0.0
        %2247 = vmatprep.subr.mxu0 0.0
        %2248 = vmatpush1.msra.mxu0 0.0
        %2249 = vmatprep.subr.mxu0 0.0
        %2250 = vmatpush1.msra.mxu0 0.0
        %2251 = vmatprep.subr.mxu0 0.0
        %2252 = vmatpush1.msra.mxu0 0.0
        %2253 = vmatprep.subr.mxu0 0.0
        %2254 = vmatpush1.msra.mxu0 0.0
        %2255 = vmatprep.subr.mxu0 0.0
        %2256 = vmatpush1.msra.mxu0 0.0
        %2257 = vmatprep.subr.mxu0 0.0
        %2258 = vmatpush1.msra.mxu0 0.0
        %2259 = vmatprep.subr.mxu0 0.0
        %2260 = vmatpush1.msra.mxu0 0.0
        %2261 = vmatprep.subr.mxu0 0.0
        %2262 = vmatpush1.msra.mxu0 0.0
        %2263 = vmatprep.subr.mxu0 0.0
        %2264 = vmatpush1.msra.mxu0 0.0
        %2265 = vmatprep.mubr.f32.mxu0 0.0
        %2266 = vmatmul.mubr.f32.gmra.mrb[0].mxu0 %v2199
        %v2267 = vpop.f32.mrb[0].mxu0
        %v2268 = vadd.f32 0.0, %v2267
        %v2269 = vpop.f32.mrb[0].mxu0
        %2270 = vdwg.mxu0
        %s2271 = scalar_select %p1248, 1, 0
        %v2272 = vstv %s2271
        %vm2273 = vcmp.eq.s32.totalorder %v2272, 1
        %v2274 = vsel %vm2273, %v1294, %v1255
        %v2275 = vadd.f32 %v2274, %v2268
        %v2276 = vld [vmem:[%s990] sm:$0x1]
        %v2277 = vld [vmem:[%s998] sm:$0x1]
        %v2278 = vsel %vm1266, %v2275, 0.0
        %2279 = vadd.xlane.f32.xlu0 %v2278
        %v2280 = vpop.xlane.xlu0 %2279
        %v2281 = vmul.f32 %v2280, %v1270
        %v2282 = vsub.f32 %v2275, %v2281
        %v2283 = vmul.f32 %v2282, %v2282
        %v2284 = vsel %vm1266, %v2283, 0.0
        %2285 = vadd.xlane.f32.xlu0 %v2284
        %v2286 = vpop.xlane.xlu0 %2285
        %v2287 = vmul.f32 %v2286, %v1270
        %v2288 = vadd.f32 %v2287, 1e-05
        %v2289 = vrsqrt.pop %v2288
        %v2290 = vmul.f32 %v2282, %v2289
        %v2292 = vlaneseq
        %v2293 = vshrl.u32 %v2292, 7
        %v2294 = vsub.s32 0, %v2293
        %v2295 = vrot.slane %v2276, %v2294
        %v2297 = vmul.f32 %v2290, %v2295
        %v2299 = vlaneseq
        %v2300 = vshrl.u32 %v2299, 7
        %v2301 = vsub.s32 0, %v2300
        %v2302 = vrot.slane %v2277, %v2301
        %v2304 = vadd.f32 %v2297, %v2302
        %v2305 = vld [vmem:[%s1242] sm:$0xff]
        %v2306 = vld [vmem:[%s1242 + $0x8] sm:$0xff]
        %v2307 = vld [vmem:[%s1242 + $0x10] sm:$0xff]
        %v2308 = vld [vmem:[%s1242 + $0x18] sm:$0xff]
        %v2309 = vld [vmem:[%s1007] sm:$0xff]
        %v2310 = vld [vmem:[%s1007 + $0x8] sm:$0xff]
        %v2311 = vld [vmem:[%s1007 + $0x10] sm:$0xff]
        %v2312 = vld [vmem:[%s1007 + $0x18] sm:$0xff]
        %v2313 = vld [vmem:[%s1016] sm:$0xff]
        %v2314 = vld [vmem:[%s1016 + $0x8] sm:$0xff]
        %v2315 = vld [vmem:[%s1016 + $0x10] sm:$0xff]
        %v2316 = vld [vmem:[%s1016 + $0x18] sm:$0xff]
        %v2317 = vld [vmem:[%s1025] sm:$0xff]
        %v2318 = vld [vmem:[%s1025 + $0x8] sm:$0xff]
        %v2319 = vld [vmem:[%s1025 + $0x10] sm:$0xff]
        %v2320 = vld [vmem:[%s1025 + $0x18] sm:$0xff]
        %v2322 = vsel %vm1266, %v2304, 0
        %2324 = vmatprep.subr.mxu0 0.0
        %2325 = vmatpush1.msra.mxu0 %v2305
        %2326 = vmatprep.subr.mxu0 0.0
        %2327 = vmatpush1.msra.mxu0 %v2306
        %2328 = vmatprep.subr.mxu0 0.0
        %2329 = vmatpush1.msra.mxu0 %v2307
        %2330 = vmatprep.subr.mxu0 0.0
        %2331 = vmatpush1.msra.mxu0 %v2308
        %2332 = vmatprep.subr.mxu0 0.0
        %2333 = vmatpush1.msra.mxu0 0.0
        %2334 = vmatprep.subr.mxu0 0.0
        %2335 = vmatpush1.msra.mxu0 0.0
        %2336 = vmatprep.subr.mxu0 0.0
        %2337 = vmatpush1.msra.mxu0 0.0
        %2338 = vmatprep.subr.mxu0 0.0
        %2339 = vmatpush1.msra.mxu0 0.0
        %2340 = vmatprep.subr.mxu0 0.0
        %2341 = vmatpush1.msra.mxu0 0.0
        %2342 = vmatprep.subr.mxu0 0.0
        %2343 = vmatpush1.msra.mxu0 0.0
        %2344 = vmatprep.subr.mxu0 0.0
        %2345 = vmatpush1.msra.mxu0 0.0
        %2346 = vmatprep.subr.mxu0 0.0
        %2347 = vmatpush1.msra.mxu0 0.0
        %2348 = vmatprep.subr.mxu0 0.0
        %2349 = vmatpush1.msra.mxu0 0.0
        %2350 = vmatprep.subr.mxu0 0.0
        %2351 = vmatpush1.msra.mxu0 0.0
        %2352 = vmatprep.subr.mxu0 0.0
        %2353 = vmatpush1.msra.mxu0 0.0
        %2354 = vmatprep.subr.mxu0 0.0
        %2355 = vmatpush1.msra.mxu0 0.0
        %2356 = vmatprep.subr.mxu0 0.0
        %2357 = vmatpush1.msra.mxu0 0.0
        %2358 = vmatprep.subr.mxu0 0.0
        %2359 = vmatpush1.msra.mxu0 0.0
        %2360 = vmatprep.subr.mxu0 0.0
        %2361 = vmatpush1.msra.mxu0 0.0
        %2362 = vmatprep.subr.mxu0 0.0
        %2363 = vmatpush1.msra.mxu0 0.0
        %2364 = vmatprep.subr.mxu0 0.0
        %2365 = vmatpush1.msra.mxu0 0.0
        %2366 = vmatprep.subr.mxu0 0.0
        %2367 = vmatpush1.msra.mxu0 0.0
        %2368 = vmatprep.subr.mxu0 0.0
        %2369 = vmatpush1.msra.mxu0 0.0
        %2370 = vmatprep.subr.mxu0 0.0
        %2371 = vmatpush1.msra.mxu0 0.0
        %2372 = vmatprep.subr.mxu0 0.0
        %2373 = vmatpush1.msra.mxu0 0.0
        %2374 = vmatprep.subr.mxu0 0.0
        %2375 = vmatpush1.msra.mxu0 0.0
        %2376 = vmatprep.subr.mxu0 0.0
        %2377 = vmatpush1.msra.mxu0 0.0
        %2378 = vmatprep.subr.mxu0 0.0
        %2379 = vmatpush1.msra.mxu0 0.0
        %2380 = vmatprep.subr.mxu0 0.0
        %2381 = vmatpush1.msra.mxu0 0.0
        %2382 = vmatprep.subr.mxu0 0.0
        %2383 = vmatpush1.msra.mxu0 0.0
        %2384 = vmatprep.subr.mxu0 0.0
        %2385 = vmatpush1.msra.mxu0 0.0
        %2386 = vmatprep.subr.mxu0 0.0
        %2387 = vmatpush1.msra.mxu0 0.0
        %2388 = vmatprep.mubr.f32.mxu0 0.0
        %2389 = vmatmul.mubr.f32.gmra.mrb[0].mxu0 %v2322
        %v2390 = vpop.f32.mrb[0].mxu0
        %v2391 = vadd.f32 0.0, %v2390
        %v2392 = vpop.f32.mrb[0].mxu0
        %2393 = vdwg.mxu0
        %v2395 = vsel %vm1266, %v1256, 0
        %v2398 = vsel %vm1266, %v1257, 0
        %2400 = vmatprep.subr.mxu0 0.0
        %2401 = vmatpush1.msra.mxu0 %v2309
        %2402 = vmatprep.subr.mxu0 0.0
        %2403 = vmatpush1.msra.mxu0 %v2310
        %2404 = vmatprep.subr.mxu0 0.0
        %2405 = vmatpush1.msra.mxu0 %v2311
        %2406 = vmatprep.subr.mxu0 0.0
        %2407 = vmatpush1.msra.mxu0 %v2312
        %2408 = vmatprep.subr.mxu0 0.0
        %2409 = vmatpush1.msra.mxu0 0.0
        %2410 = vmatprep.subr.mxu0 0.0
        %2411 = vmatpush1.msra.mxu0 0.0
        %2412 = vmatprep.subr.mxu0 0.0
        %2413 = vmatpush1.msra.mxu0 0.0
        %2414 = vmatprep.subr.mxu0 0.0
        %2415 = vmatpush1.msra.mxu0 0.0
        %2416 = vmatprep.subr.mxu0 0.0
        %2417 = vmatpush1.msra.mxu0 0.0
        %2418 = vmatprep.subr.mxu0 0.0
        %2419 = vmatpush1.msra.mxu0 0.0
        %2420 = vmatprep.subr.mxu0 0.0
        %2421 = vmatpush1.msra.mxu0 0.0
        %2422 = vmatprep.subr.mxu0 0.0
        %2423 = vmatpush1.msra.mxu0 0.0
        %2424 = vmatprep.subr.mxu0 0.0
        %2425 = vmatpush1.msra.mxu0 0.0
        %2426 = vmatprep.subr.mxu0 0.0
        %2427 = vmatpush1.msra.mxu0 0.0
        %2428 = vmatprep.subr.mxu0 0.0
        %2429 = vmatpush1.msra.mxu0 0.0
        %2430 = vmatprep.subr.mxu0 0.0
        %2431 = vmatpush1.msra.mxu0 0.0
        %2432 = vmatprep.subr.mxu0 0.0
        %2433 = vmatpush1.msra.mxu0 0.0
        %2434 = vmatprep.subr.mxu0 0.0
        %2435 = vmatpush1.msra.mxu0 0.0
        %2436 = vmatprep.subr.mxu0 0.0
        %2437 = vmatpush1.msra.mxu0 0.0
        %2438 = vmatprep.subr.mxu0 0.0
        %2439 = vmatpush1.msra.mxu0 0.0
        %2440 = vmatprep.subr.mxu0 0.0
        %2441 = vmatpush1.msra.mxu0 0.0
        %2442 = vmatprep.subr.mxu0 0.0
        %2443 = vmatpush1.msra.mxu0 0.0
        %2444 = vmatprep.subr.mxu0 0.0
        %2445 = vmatpush1.msra.mxu0 0.0
        %2446 = vmatprep.subr.mxu0 0.0
        %2447 = vmatpush1.msra.mxu0 0.0
        %2448 = vmatprep.subr.mxu0 0.0
        %2449 = vmatpush1.msra.mxu0 0.0
        %2450 = vmatprep.subr.mxu0 0.0
        %2451 = vmatpush1.msra.mxu0 0.0
        %2452 = vmatprep.subr.mxu0 0.0
        %2453 = vmatpush1.msra.mxu0 0.0
        %2454 = vmatprep.subr.mxu0 0.0
        %2455 = vmatpush1.msra.mxu0 0.0
        %2456 = vmatprep.subr.mxu0 0.0
        %2457 = vmatpush1.msra.mxu0 0.0
        %2458 = vmatprep.subr.mxu0 0.0
        %2459 = vmatpush1.msra.mxu0 0.0
        %2460 = vmatprep.subr.mxu0 0.0
        %2461 = vmatpush1.msra.mxu0 0.0
        %2462 = vmatprep.subr.mxu0 0.0
        %2463 = vmatpush1.msra.mxu0 0.0
        %2464 = vmatprep.mubr.f32.mxu0 0.0
        %2465 = vmatmul.mubr.f32.gmra.mrb[0].mxu0 %v2395
        %v2466 = vpop.f32.mrb[0].mxu0
        %v2467 = vadd.f32 0.0, %v2466
        %v2468 = vpop.f32.mrb[0].mxu0
        %2469 = vmatprep.mubr.f32.mxu0 0.0
        %2470 = vmatmul.mubr.f32.gmra.mrb[0].mxu0 %v2398
        %v2471 = vpop.f32.mrb[0].mxu0
        %v2472 = vadd.f32 0.0, %v2471
        %v2473 = vpop.f32.mrb[0].mxu0
        %2474 = vdwg.mxu0
        %2475 = vmatprep.subr.mxu0 0.0
        %2476 = vmatpush1.msra.mxu0 %v2313
        %2477 = vmatprep.subr.mxu0 0.0
        %2478 = vmatpush1.msra.mxu0 %v2314
        %2479 = vmatprep.subr.mxu0 0.0
        %2480 = vmatpush1.msra.mxu0 %v2315
        %2481 = vmatprep.subr.mxu0 0.0
        %2482 = vmatpush1.msra.mxu0 %v2316
        %2483 = vmatprep.subr.mxu0 0.0
        %2484 = vmatpush1.msra.mxu0 0.0
        %2485 = vmatprep.subr.mxu0 0.0
        %2486 = vmatpush1.msra.mxu0 0.0
        %2487 = vmatprep.subr.mxu0 0.0
        %2488 = vmatpush1.msra.mxu0 0.0
        %2489 = vmatprep.subr.mxu0 0.0
        %2490 = vmatpush1.msra.mxu0 0.0
        %2491 = vmatprep.subr.mxu0 0.0
        %2492 = vmatpush1.msra.mxu0 0.0
        %2493 = vmatprep.subr.mxu0 0.0
        %2494 = vmatpush1.msra.mxu0 0.0
        %2495 = vmatprep.subr.mxu0 0.0
        %2496 = vmatpush1.msra.mxu0 0.0
        %2497 = vmatprep.subr.mxu0 0.0
        %2498 = vmatpush1.msra.mxu0 0.0
        %2499 = vmatprep.subr.mxu0 0.0
        %2500 = vmatpush1.msra.mxu0 0.0
        %2501 = vmatprep.subr.mxu0 0.0
        %2502 = vmatpush1.msra.mxu0 0.0
        %2503 = vmatprep.subr.mxu0 0.0
        %2504 = vmatpush1.msra.mxu0 0.0
        %2505 = vmatprep.subr.mxu0 0.0
        %2506 = vmatpush1.msra.mxu0 0.0
        %2507 = vmatprep.subr.mxu0 0.0
        %2508 = vmatpush1.msra.mxu0 0.0
        %2509 = vmatprep.subr.mxu0 0.0
        %2510 = vmatpush1.msra.mxu0 0.0
        %2511 = vmatprep.subr.mxu0 0.0
        %2512 = vmatpush1.msra.mxu0 0.0
        %2513 = vmatprep.subr.mxu0 0.0
        %2514 = vmatpush1.msra.mxu0 0.0
        %2515 = vmatprep.subr.mxu0 0.0
        %2516 = vmatpush1.msra.mxu0 0.0
        %2517 = vmatprep.subr.mxu0 0.0
        %2518 = vmatpush1.msra.mxu0 0.0
        %2519 = vmatprep.subr.mxu0 0.0
        %2520 = vmatpush1.msra.mxu0 0.0
        %2521 = vmatprep.subr.mxu0 0.0
        %2522 = vmatpush1.msra.mxu0 0.0
        %2523 = vmatprep.subr.mxu0 0.0
        %2524 = vmatpush1.msra.mxu0 0.0
        %2525 = vmatprep.subr.mxu0 0.0
        %2526 = vmatpush1.msra.mxu0 0.0
        %2527 = vmatprep.subr.mxu0 0.0
        %2528 = vmatpush1.msra.mxu0 0.0
        %2529 = vmatprep.subr.mxu0 0.0
        %2530 = vmatpush1.msra.mxu0 0.0
        %2531 = vmatprep.subr.mxu0 0.0
        %2532 = vmatpush1.msra.mxu0 0.0
        %2533 = vmatprep.subr.mxu0 0.0
        %2534 = vmatpush1.msra.mxu0 0.0
        %2535 = vmatprep.subr.mxu0 0.0
        %2536 = vmatpush1.msra.mxu0 0.0
        %2537 = vmatprep.subr.mxu0 0.0
        %2538 = vmatpush1.msra.mxu0 0.0
        %2539 = vmatprep.mubr.f32.mxu0 0.0
        %2540 = vmatmul.mubr.f32.gmra.mrb[0].mxu0 %v2395
        %v2541 = vpop.f32.mrb[0].mxu0
        %v2542 = vadd.f32 0.0, %v2541
        %v2543 = vpop.f32.mrb[0].mxu0
        %2544 = vmatprep.mubr.f32.mxu0 0.0
        %2545 = vmatmul.mubr.f32.gmra.mrb[0].mxu0 %v2398
        %v2546 = vpop.f32.mrb[0].mxu0
        %v2547 = vadd.f32 0.0, %v2546
        %v2548 = vpop.f32.mrb[0].mxu0
        %2549 = vdwg.mxu0
        %2551 = vrot.lane.b32.xlu0 %v2391, 120
        %v2552 = vpop.permute.xlu0 %2551
        %2553 = vrot.lane.b32.xlu0 %v2391, 112
        %v2554 = vpop.permute.xlu0 %2553
        %2555 = vrot.lane.b32.xlu0 %v2391, 104
        %v2556 = vpop.permute.xlu0 %2555
        %2559 = vrot.lane.b32.xlu0 %v2467, 120
        %v2560 = vpop.permute.xlu0 %2559
        %2561 = vrot.lane.b32.xlu0 %v2472, 120
        %v2562 = vpop.permute.xlu0 %2561
        %2563 = vrot.lane.b32.xlu0 %v2467, 112
        %v2564 = vpop.permute.xlu0 %2563
        %2565 = vrot.lane.b32.xlu0 %v2472, 112
        %v2566 = vpop.permute.xlu0 %2565
        %2567 = vrot.lane.b32.xlu0 %v2467, 104
        %v2568 = vpop.permute.xlu0 %2567
        %2569 = vrot.lane.b32.xlu0 %v2472, 104
        %v2570 = vpop.permute.xlu0 %2569
        %2573 = vrot.lane.b32.xlu0 %v2542, 120
        %v2574 = vpop.permute.xlu0 %2573
        %2575 = vrot.lane.b32.xlu0 %v2547, 120
        %v2576 = vpop.permute.xlu0 %2575
        %2579 = vrot.lane.b32.xlu0 %v2542, 112
        %v2580 = vpop.permute.xlu0 %2579
        %2581 = vrot.lane.b32.xlu0 %v2547, 112
        %v2582 = vpop.permute.xlu0 %2581
        %2585 = vrot.lane.b32.xlu0 %v2542, 104
        %v2586 = vpop.permute.xlu0 %2585
        %2587 = vrot.lane.b32.xlu0 %v2547, 104
        %v2588 = vpop.permute.xlu0 %2587
        %v2591 = vsel %vm1548, %v2391, 0
        %v2593 = vsel %vm1548, %v2467, 0
        %v2595 = vsel %vm1548, %v2472, 0
        %2597 = vmatprep.subr.mxu0 0.0
        %2598 = vmatpush1.xpose.msra.mxu0 %v2593
        %2599 = vmatprep.subr.mxu0 0.0
        %2600 = vmatpush1.xpose.msra.mxu0 %v2595
        %2601 = vmatprep.subr.mxu0 0.0
        %2602 = vmatpush1.xpose.msra.mxu0 0.0
        %2603 = vmatprep.subr.mxu0 0.0
        %2604 = vmatpush1.xpose.msra.mxu0 0.0
        %2605 = vmatprep.subr.mxu0 0.0
        %2606 = vmatpush1.xpose.msra.mxu0 0.0
        %2607 = vmatprep.subr.mxu0 0.0
        %2608 = vmatpush1.xpose.msra.mxu0 0.0
        %2609 = vmatprep.subr.mxu0 0.0
        %2610 = vmatpush1.xpose.msra.mxu0 0.0
        %2611 = vmatprep.subr.mxu0 0.0
        %2612 = vmatpush1.xpose.msra.mxu0 0.0
        %2613 = vmatprep.subr.mxu0 0.0
        %2614 = vmatpush1.xpose.msra.mxu0 0.0
        %2615 = vmatprep.subr.mxu0 0.0
        %2616 = vmatpush1.xpose.msra.mxu0 0.0
        %2617 = vmatprep.subr.mxu0 0.0
        %2618 = vmatpush1.xpose.msra.mxu0 0.0
        %2619 = vmatprep.subr.mxu0 0.0
        %2620 = vmatpush1.xpose.msra.mxu0 0.0
        %2621 = vmatprep.subr.mxu0 0.0
        %2622 = vmatpush1.xpose.msra.mxu0 0.0
        %2623 = vmatprep.subr.mxu0 0.0
        %2624 = vmatpush1.xpose.msra.mxu0 0.0
        %2625 = vmatprep.subr.mxu0 0.0
        %2626 = vmatpush1.xpose.msra.mxu0 0.0
        %2627 = vmatprep.subr.mxu0 0.0
        %2628 = vmatpush1.xpose.msra.mxu0 0.0
        %2629 = vmatprep.subr.mxu0 0.0
        %2630 = vmatpush1.xpose.msra.mxu0 0.0
        %2631 = vmatprep.subr.mxu0 0.0
        %2632 = vmatpush1.xpose.msra.mxu0 0.0
        %2633 = vmatprep.subr.mxu0 0.0
        %2634 = vmatpush1.xpose.msra.mxu0 0.0
        %2635 = vmatprep.subr.mxu0 0.0
        %2636 = vmatpush1.xpose.msra.mxu0 0.0
        %2637 = vmatprep.subr.mxu0 0.0
        %2638 = vmatpush1.xpose.msra.mxu0 0.0
        %2639 = vmatprep.subr.mxu0 0.0
        %2640 = vmatpush1.xpose.msra.mxu0 0.0
        %2641 = vmatprep.subr.mxu0 0.0
        %2642 = vmatpush1.xpose.msra.mxu0 0.0
        %2643 = vmatprep.subr.mxu0 0.0
        %2644 = vmatpush1.xpose.msra.mxu0 0.0
        %2645 = vmatprep.subr.mxu0 0.0
        %2646 = vmatpush1.xpose.msra.mxu0 0.0
        %2647 = vmatprep.subr.mxu0 0.0
        %2648 = vmatpush1.xpose.msra.mxu0 0.0
        %2649 = vmatprep.subr.mxu0 0.0
        %2650 = vmatpush1.xpose.msra.mxu0 0.0
        %2651 = vmatprep.subr.mxu0 0.0
        %2652 = vmatpush1.xpose.msra.mxu0 0.0
        %2653 = vmatprep.subr.mxu0 0.0
        %2654 = vmatpush1.xpose.msra.mxu0 0.0
        %2655 = vmatprep.subr.mxu0 0.0
        %2656 = vmatpush1.xpose.msra.mxu0 0.0
        %2657 = vmatprep.subr.mxu0 0.0
        %2658 = vmatpush1.xpose.msra.mxu0 0.0
        %2659 = vmatprep.subr.mxu0 0.0
        %2660 = vmatpush1.xpose.msra.mxu0 0.0
        %2661 = vmatprep.mubr.f32.mxu0 0.0
        %2662 = vmatmul.mubr.f32.gmra.mrb[0].mxu0 %v2591
        %v2663 = vpop.f32.mrb[0].mxu0
        %v2664 = vadd.f32 0.0, %v2663
        %v2665 = vpop.f32.mrb[0].mxu0
        %2666 = vdwg.mxu0
        %v2667 = vsel %vm1548, %v2552, 0
        %v2669 = vsel %vm1548, %v2560, 0
        %v2671 = vsel %vm1548, %v2562, 0
        %2673 = vmatprep.subr.mxu0 0.0
        %2674 = vmatpush1.xpose.msra.mxu0 %v2669
        %2675 = vmatprep.subr.mxu0 0.0
        %2676 = vmatpush1.xpose.msra.mxu0 %v2671
        %2677 = vmatprep.subr.mxu0 0.0
        %2678 = vmatpush1.xpose.msra.mxu0 0.0
        %2679 = vmatprep.subr.mxu0 0.0
        %2680 = vmatpush1.xpose.msra.mxu0 0.0
        %2681 = vmatprep.subr.mxu0 0.0
        %2682 = vmatpush1.xpose.msra.mxu0 0.0
        %2683 = vmatprep.subr.mxu0 0.0
        %2684 = vmatpush1.xpose.msra.mxu0 0.0
        %2685 = vmatprep.subr.mxu0 0.0
        %2686 = vmatpush1.xpose.msra.mxu0 0.0
        %2687 = vmatprep.subr.mxu0 0.0
        %2688 = vmatpush1.xpose.msra.mxu0 0.0
        %2689 = vmatprep.subr.mxu0 0.0
        %2690 = vmatpush1.xpose.msra.mxu0 0.0
        %2691 = vmatprep.subr.mxu0 0.0
        %2692 = vmatpush1.xpose.msra.mxu0 0.0
        %2693 = vmatprep.subr.mxu0 0.0
        %2694 = vmatpush1.xpose.msra.mxu0 0.0
        %2695 = vmatprep.subr.mxu0 0.0
        %2696 = vmatpush1.xpose.msra.mxu0 0.0
        %2697 = vmatprep.subr.mxu0 0.0
        %2698 = vmatpush1.xpose.msra.mxu0 0.0
        %2699 = vmatprep.subr.mxu0 0.0
        %2700 = vmatpush1.xpose.msra.mxu0 0.0
        %2701 = vmatprep.subr.mxu0 0.0
        %2702 = vmatpush1.xpose.msra.mxu0 0.0
        %2703 = vmatprep.subr.mxu0 0.0
        %2704 = vmatpush1.xpose.msra.mxu0 0.0
        %2705 = vmatprep.subr.mxu0 0.0
        %2706 = vmatpush1.xpose.msra.mxu0 0.0
        %2707 = vmatprep.subr.mxu0 0.0
        %2708 = vmatpush1.xpose.msra.mxu0 0.0
        %2709 = vmatprep.subr.mxu0 0.0
        %2710 = vmatpush1.xpose.msra.mxu0 0.0
        %2711 = vmatprep.subr.mxu0 0.0
        %2712 = vmatpush1.xpose.msra.mxu0 0.0
        %2713 = vmatprep.subr.mxu0 0.0
        %2714 = vmatpush1.xpose.msra.mxu0 0.0
        %2715 = vmatprep.subr.mxu0 0.0
        %2716 = vmatpush1.xpose.msra.mxu0 0.0
        %2717 = vmatprep.subr.mxu0 0.0
        %2718 = vmatpush1.xpose.msra.mxu0 0.0
        %2719 = vmatprep.subr.mxu0 0.0
        %2720 = vmatpush1.xpose.msra.mxu0 0.0
        %2721 = vmatprep.subr.mxu0 0.0
        %2722 = vmatpush1.xpose.msra.mxu0 0.0
        %2723 = vmatprep.subr.mxu0 0.0
        %2724 = vmatpush1.xpose.msra.mxu0 0.0
        %2725 = vmatprep.subr.mxu0 0.0
        %2726 = vmatpush1.xpose.msra.mxu0 0.0
        %2727 = vmatprep.subr.mxu0 0.0
        %2728 = vmatpush1.xpose.msra.mxu0 0.0
        %2729 = vmatprep.subr.mxu0 0.0
        %2730 = vmatpush1.xpose.msra.mxu0 0.0
        %2731 = vmatprep.subr.mxu0 0.0
        %2732 = vmatpush1.xpose.msra.mxu0 0.0
        %2733 = vmatprep.subr.mxu0 0.0
        %2734 = vmatpush1.xpose.msra.mxu0 0.0
        %2735 = vmatprep.subr.mxu0 0.0
        %2736 = vmatpush1.xpose.msra.mxu0 0.0
        %2737 = vmatprep.mubr.f32.mxu0 0.0
        %2738 = vmatmul.mubr.f32.gmra.mrb[0].mxu0 %v2667
        %v2739 = vpop.f32.mrb[0].mxu0
        %v2740 = vadd.f32 0.0, %v2739
        %v2741 = vpop.f32.mrb[0].mxu0
        %2742 = vdwg.mxu0
        %v2743 = vsel %vm1548, %v2554, 0
        %v2745 = vsel %vm1548, %v2564, 0
        %v2747 = vsel %vm1548, %v2566, 0
        %2749 = vmatprep.subr.mxu0 0.0
        %2750 = vmatpush1.xpose.msra.mxu0 %v2745
        %2751 = vmatprep.subr.mxu0 0.0
        %2752 = vmatpush1.xpose.msra.mxu0 %v2747
        %2753 = vmatprep.subr.mxu0 0.0
        %2754 = vmatpush1.xpose.msra.mxu0 0.0
        %2755 = vmatprep.subr.mxu0 0.0
        %2756 = vmatpush1.xpose.msra.mxu0 0.0
        %2757 = vmatprep.subr.mxu0 0.0
        %2758 = vmatpush1.xpose.msra.mxu0 0.0
        %2759 = vmatprep.subr.mxu0 0.0
        %2760 = vmatpush1.xpose.msra.mxu0 0.0
        %2761 = vmatprep.subr.mxu0 0.0
        %2762 = vmatpush1.xpose.msra.mxu0 0.0
        %2763 = vmatprep.subr.mxu0 0.0
        %2764 = vmatpush1.xpose.msra.mxu0 0.0
        %2765 = vmatprep.subr.mxu0 0.0
        %2766 = vmatpush1.xpose.msra.mxu0 0.0
        %2767 = vmatprep.subr.mxu0 0.0
        %2768 = vmatpush1.xpose.msra.mxu0 0.0
        %2769 = vmatprep.subr.mxu0 0.0
        %2770 = vmatpush1.xpose.msra.mxu0 0.0
        %2771 = vmatprep.subr.mxu0 0.0
        %2772 = vmatpush1.xpose.msra.mxu0 0.0
        %2773 = vmatprep.subr.mxu0 0.0
        %2774 = vmatpush1.xpose.msra.mxu0 0.0
        %2775 = vmatprep.subr.mxu0 0.0
        %2776 = vmatpush1.xpose.msra.mxu0 0.0
        %2777 = vmatprep.subr.mxu0 0.0
        %2778 = vmatpush1.xpose.msra.mxu0 0.0
        %2779 = vmatprep.subr.mxu0 0.0
        %2780 = vmatpush1.xpose.msra.mxu0 0.0
        %2781 = vmatprep.subr.mxu0 0.0
        %2782 = vmatpush1.xpose.msra.mxu0 0.0
        %2783 = vmatprep.subr.mxu0 0.0
        %2784 = vmatpush1.xpose.msra.mxu0 0.0
        %2785 = vmatprep.subr.mxu0 0.0
        %2786 = vmatpush1.xpose.msra.mxu0 0.0
        %2787 = vmatprep.subr.mxu0 0.0
        %2788 = vmatpush1.xpose.msra.mxu0 0.0
        %2789 = vmatprep.subr.mxu0 0.0
        %2790 = vmatpush1.xpose.msra.mxu0 0.0
        %2791 = vmatprep.subr.mxu0 0.0
        %2792 = vmatpush1.xpose.msra.mxu0 0.0
        %2793 = vmatprep.subr.mxu0 0.0
        %2794 = vmatpush1.xpose.msra.mxu0 0.0
        %2795 = vmatprep.subr.mxu0 0.0
        %2796 = vmatpush1.xpose.msra.mxu0 0.0
        %2797 = vmatprep.subr.mxu0 0.0
        %2798 = vmatpush1.xpose.msra.mxu0 0.0
        %2799 = vmatprep.subr.mxu0 0.0
        %2800 = vmatpush1.xpose.msra.mxu0 0.0
        %2801 = vmatprep.subr.mxu0 0.0
        %2802 = vmatpush1.xpose.msra.mxu0 0.0
        %2803 = vmatprep.subr.mxu0 0.0
        %2804 = vmatpush1.xpose.msra.mxu0 0.0
        %2805 = vmatprep.subr.mxu0 0.0
        %2806 = vmatpush1.xpose.msra.mxu0 0.0
        %2807 = vmatprep.subr.mxu0 0.0
        %2808 = vmatpush1.xpose.msra.mxu0 0.0
        %2809 = vmatprep.subr.mxu0 0.0
        %2810 = vmatpush1.xpose.msra.mxu0 0.0
        %2811 = vmatprep.subr.mxu0 0.0
        %2812 = vmatpush1.xpose.msra.mxu0 0.0
        %2813 = vmatprep.mubr.f32.mxu0 0.0
        %2814 = vmatmul.mubr.f32.gmra.mrb[0].mxu0 %v2743
        %v2815 = vpop.f32.mrb[0].mxu0
        %v2816 = vadd.f32 0.0, %v2815
        %v2817 = vpop.f32.mrb[0].mxu0
        %2818 = vdwg.mxu0
        %v2819 = vsel %vm1548, %v2556, 0
        %v2821 = vsel %vm1548, %v2568, 0
        %v2823 = vsel %vm1548, %v2570, 0
        %2825 = vmatprep.subr.mxu0 0.0
        %2826 = vmatpush1.xpose.msra.mxu0 %v2821
        %2827 = vmatprep.subr.mxu0 0.0
        %2828 = vmatpush1.xpose.msra.mxu0 %v2823
        %2829 = vmatprep.subr.mxu0 0.0
        %2830 = vmatpush1.xpose.msra.mxu0 0.0
        %2831 = vmatprep.subr.mxu0 0.0
        %2832 = vmatpush1.xpose.msra.mxu0 0.0
        %2833 = vmatprep.subr.mxu0 0.0
        %2834 = vmatpush1.xpose.msra.mxu0 0.0
        %2835 = vmatprep.subr.mxu0 0.0
        %2836 = vmatpush1.xpose.msra.mxu0 0.0
        %2837 = vmatprep.subr.mxu0 0.0
        %2838 = vmatpush1.xpose.msra.mxu0 0.0
        %2839 = vmatprep.subr.mxu0 0.0
        %2840 = vmatpush1.xpose.msra.mxu0 0.0
        %2841 = vmatprep.subr.mxu0 0.0
        %2842 = vmatpush1.xpose.msra.mxu0 0.0
        %2843 = vmatprep.subr.mxu0 0.0
        %2844 = vmatpush1.xpose.msra.mxu0 0.0
        %2845 = vmatprep.subr.mxu0 0.0
        %2846 = vmatpush1.xpose.msra.mxu0 0.0
        %2847 = vmatprep.subr.mxu0 0.0
        %2848 = vmatpush1.xpose.msra.mxu0 0.0
        %2849 = vmatprep.subr.mxu0 0.0
        %2850 = vmatpush1.xpose.msra.mxu0 0.0
        %2851 = vmatprep.subr.mxu0 0.0
        %2852 = vmatpush1.xpose.msra.mxu0 0.0
        %2853 = vmatprep.subr.mxu0 0.0
        %2854 = vmatpush1.xpose.msra.mxu0 0.0
        %2855 = vmatprep.subr.mxu0 0.0
        %2856 = vmatpush1.xpose.msra.mxu0 0.0
        %2857 = vmatprep.subr.mxu0 0.0
        %2858 = vmatpush1.xpose.msra.mxu0 0.0
        %2859 = vmatprep.subr.mxu0 0.0
        %2860 = vmatpush1.xpose.msra.mxu0 0.0
        %2861 = vmatprep.subr.mxu0 0.0
        %2862 = vmatpush1.xpose.msra.mxu0 0.0
        %2863 = vmatprep.subr.mxu0 0.0
        %2864 = vmatpush1.xpose.msra.mxu0 0.0
        %2865 = vmatprep.subr.mxu0 0.0
        %2866 = vmatpush1.xpose.msra.mxu0 0.0
        %2867 = vmatprep.subr.mxu0 0.0
        %2868 = vmatpush1.xpose.msra.mxu0 0.0
        %2869 = vmatprep.subr.mxu0 0.0
        %2870 = vmatpush1.xpose.msra.mxu0 0.0
        %2871 = vmatprep.subr.mxu0 0.0
        %2872 = vmatpush1.xpose.msra.mxu0 0.0
        %2873 = vmatprep.subr.mxu0 0.0
        %2874 = vmatpush1.xpose.msra.mxu0 0.0
        %2875 = vmatprep.subr.mxu0 0.0
        %2876 = vmatpush1.xpose.msra.mxu0 0.0
        %2877 = vmatprep.subr.mxu0 0.0
        %2878 = vmatpush1.xpose.msra.mxu0 0.0
        %2879 = vmatprep.subr.mxu0 0.0
        %2880 = vmatpush1.xpose.msra.mxu0 0.0
        %2881 = vmatprep.subr.mxu0 0.0
        %2882 = vmatpush1.xpose.msra.mxu0 0.0
        %2883 = vmatprep.subr.mxu0 0.0
        %2884 = vmatpush1.xpose.msra.mxu0 0.0
        %2885 = vmatprep.subr.mxu0 0.0
        %2886 = vmatpush1.xpose.msra.mxu0 0.0
        %2887 = vmatprep.subr.mxu0 0.0
        %2888 = vmatpush1.xpose.msra.mxu0 0.0
        %2889 = vmatprep.mubr.f32.mxu0 0.0
        %2890 = vmatmul.mubr.f32.gmra.mrb[0].mxu0 %v2819
        %v2891 = vpop.f32.mrb[0].mxu0
        %v2892 = vadd.f32 0.0, %v2891
        %v2893 = vpop.f32.mrb[0].mxu0
        %2894 = vdwg.mxu0
        %v2895 = vsel %vm2194, %v2664, -inf
        %2896 = vmax.xlane.f32.xlu0 %v2895
        %v2897 = vpop.xlane.xlu0 %2896
        %v2898 = vsel %vm2194, %v2740, -inf
        %2899 = vmax.xlane.f32.xlu0 %v2898
        %v2900 = vpop.xlane.xlu0 %2899
        %v2901 = vsel %vm2194, %v2816, -inf
        %2902 = vmax.xlane.f32.xlu0 %v2901
        %v2903 = vpop.xlane.xlu0 %2902
        %v2904 = vsel %vm2194, %v2892, -inf
        %2905 = vmax.xlane.f32.xlu0 %v2904
        %v2906 = vpop.xlane.xlu0 %2905
        %v2907 = vsub.f32 %v2664, %v2897
        %v2908 = vsub.f32 %v2740, %v2900
        %v2909 = vsub.f32 %v2816, %v2903
        %v2910 = vsub.f32 %v2892, %v2906
        %v2911 = vmul.f32 %v2907, 1.442695
        %v2912 = vpow.pop %v2911
        %v2913 = vmul.f32 %v2908, 1.442695
        %v2914 = vpow.pop %v2913
        %v2915 = vmul.f32 %v2909, 1.442695
        %v2916 = vpow.pop %v2915
        %v2917 = vmul.f32 %v2910, 1.442695
        %v2918 = vpow.pop %v2917
        %v2919 = vsel %vm2194, %v2912, 0.0
        %2920 = vadd.xlane.f32.xlu0 %v2919
        %v2921 = vpop.xlane.xlu0 %2920
        %v2922 = vsel %vm2194, %v2914, 0.0
        %2923 = vadd.xlane.f32.xlu0 %v2922
        %v2924 = vpop.xlane.xlu0 %2923
        %v2925 = vsel %vm2194, %v2916, 0.0
        %2926 = vadd.xlane.f32.xlu0 %v2925
        %v2927 = vpop.xlane.xlu0 %2926
        %v2928 = vsel %vm2194, %v2918, 0.0
        %2929 = vadd.xlane.f32.xlu0 %v2928
        %v2930 = vpop.xlane.xlu0 %2929
        %v2931 = vrcp.pop %v2921
        %v2932 = vmul.f32 %v2912, %v2931
        %v2933 = vrcp.pop %v2924
        %v2934 = vmul.f32 %v2914, %v2933
        %v2935 = vrcp.pop %v2927
        %v2936 = vmul.f32 %v2916, %v2935
        %v2937 = vrcp.pop %v2930
        %v2938 = vmul.f32 %v2918, %v2937
        %v2940 = vsel %vm2194, %v2932, 0
        %2942 = vmatprep.subr.mxu0 0.0
        %2943 = vmatpush1.msra.mxu0 %v2542
        %2944 = vmatprep.subr.mxu0 0.0
        %2945 = vmatpush1.msra.mxu0 %v2547
        %2946 = vmatprep.subr.mxu0 0.0
        %2947 = vmatpush1.msra.mxu0 0.0
        %2948 = vmatprep.subr.mxu0 0.0
        %2949 = vmatpush1.msra.mxu0 0.0
        %2950 = vmatprep.subr.mxu0 0.0
        %2951 = vmatpush1.msra.mxu0 0.0
        %2952 = vmatprep.subr.mxu0 0.0
        %2953 = vmatpush1.msra.mxu0 0.0
        %2954 = vmatprep.subr.mxu0 0.0
        %2955 = vmatpush1.msra.mxu0 0.0
        %2956 = vmatprep.subr.mxu0 0.0
        %2957 = vmatpush1.msra.mxu0 0.0
        %2958 = vmatprep.subr.mxu0 0.0
        %2959 = vmatpush1.msra.mxu0 0.0
        %2960 = vmatprep.subr.mxu0 0.0
        %2961 = vmatpush1.msra.mxu0 0.0
        %2962 = vmatprep.subr.mxu0 0.0
        %2963 = vmatpush1.msra.mxu0 0.0
        %2964 = vmatprep.subr.mxu0 0.0
        %2965 = vmatpush1.msra.mxu0 0.0
        %2966 = vmatprep.subr.mxu0 0.0
        %2967 = vmatpush1.msra.mxu0 0.0
        %2968 = vmatprep.subr.mxu0 0.0
        %2969 = vmatpush1.msra.mxu0 0.0
        %2970 = vmatprep.subr.mxu0 0.0
        %2971 = vmatpush1.msra.mxu0 0.0
        %2972 = vmatprep.subr.mxu0 0.0
        %2973 = vmatpush1.msra.mxu0 0.0
        %2974 = vmatprep.subr.mxu0 0.0
        %2975 = vmatpush1.msra.mxu0 0.0
        %2976 = vmatprep.subr.mxu0 0.0
        %2977 = vmatpush1.msra.mxu0 0.0
        %2978 = vmatprep.subr.mxu0 0.0
        %2979 = vmatpush1.msra.mxu0 0.0
        %2980 = vmatprep.subr.mxu0 0.0
        %2981 = vmatpush1.msra.mxu0 0.0
        %2982 = vmatprep.subr.mxu0 0.0
        %2983 = vmatpush1.msra.mxu0 0.0
        %2984 = vmatprep.subr.mxu0 0.0
        %2985 = vmatpush1.msra.mxu0 0.0
        %2986 = vmatprep.subr.mxu0 0.0
        %2987 = vmatpush1.msra.mxu0 0.0
        %2988 = vmatprep.subr.mxu0 0.0
        %2989 = vmatpush1.msra.mxu0 0.0
        %2990 = vmatprep.subr.mxu0 0.0
        %2991 = vmatpush1.msra.mxu0 0.0
        %2992 = vmatprep.subr.mxu0 0.0
        %2993 = vmatpush1.msra.mxu0 0.0
        %2994 = vmatprep.subr.mxu0 0.0
        %2995 = vmatpush1.msra.mxu0 0.0
        %2996 = vmatprep.subr.mxu0 0.0
        %2997 = vmatpush1.msra.mxu0 0.0
        %2998 = vmatprep.subr.mxu0 0.0
        %2999 = vmatpush1.msra.mxu0 0.0
        %3000 = vmatprep.subr.mxu0 0.0
        %3001 = vmatpush1.msra.mxu0 0.0
        %3002 = vmatprep.subr.mxu0 0.0
        %3003 = vmatpush1.msra.mxu0 0.0
        %3004 = vmatprep.subr.mxu0 0.0
        %3005 = vmatpush1.msra.mxu0 0.0
        %3006 = vmatprep.mubr.f32.mxu0 0.0
        %3007 = vmatmul.mubr.f32.gmra.mrb[0].mxu0 %v2940
        %v3008 = vpop.f32.mrb[0].mxu0
        %v3009 = vadd.f32 0.0, %v3008
        %v3010 = vpop.f32.mrb[0].mxu0
        %3011 = vdwg.mxu0
        %v3013 = vsel %vm2194, %v2934, 0
        %3015 = vmatprep.subr.mxu0 0.0
        %3016 = vmatpush1.msra.mxu0 %v2574
        %3017 = vmatprep.subr.mxu0 0.0
        %3018 = vmatpush1.msra.mxu0 %v2576
        %3019 = vmatprep.subr.mxu0 0.0
        %3020 = vmatpush1.msra.mxu0 0.0
        %3021 = vmatprep.subr.mxu0 0.0
        %3022 = vmatpush1.msra.mxu0 0.0
        %3023 = vmatprep.subr.mxu0 0.0
        %3024 = vmatpush1.msra.mxu0 0.0
        %3025 = vmatprep.subr.mxu0 0.0
        %3026 = vmatpush1.msra.mxu0 0.0
        %3027 = vmatprep.subr.mxu0 0.0
        %3028 = vmatpush1.msra.mxu0 0.0
        %3029 = vmatprep.subr.mxu0 0.0
        %3030 = vmatpush1.msra.mxu0 0.0
        %3031 = vmatprep.subr.mxu0 0.0
        %3032 = vmatpush1.msra.mxu0 0.0
        %3033 = vmatprep.subr.mxu0 0.0
        %3034 = vmatpush1.msra.mxu0 0.0
        %3035 = vmatprep.subr.mxu0 0.0
        %3036 = vmatpush1.msra.mxu0 0.0
        %3037 = vmatprep.subr.mxu0 0.0
        %3038 = vmatpush1.msra.mxu0 0.0
        %3039 = vmatprep.subr.mxu0 0.0
        %3040 = vmatpush1.msra.mxu0 0.0
        %3041 = vmatprep.subr.mxu0 0.0
        %3042 = vmatpush1.msra.mxu0 0.0
        %3043 = vmatprep.subr.mxu0 0.0
        %3044 = vmatpush1.msra.mxu0 0.0
        %3045 = vmatprep.subr.mxu0 0.0
        %3046 = vmatpush1.msra.mxu0 0.0
        %3047 = vmatprep.subr.mxu0 0.0
        %3048 = vmatpush1.msra.mxu0 0.0
        %3049 = vmatprep.subr.mxu0 0.0
        %3050 = vmatpush1.msra.mxu0 0.0
        %3051 = vmatprep.subr.mxu0 0.0
        %3052 = vmatpush1.msra.mxu0 0.0
        %3053 = vmatprep.subr.mxu0 0.0
        %3054 = vmatpush1.msra.mxu0 0.0
        %3055 = vmatprep.subr.mxu0 0.0
        %3056 = vmatpush1.msra.mxu0 0.0
        %3057 = vmatprep.subr.mxu0 0.0
        %3058 = vmatpush1.msra.mxu0 0.0
        %3059 = vmatprep.subr.mxu0 0.0
        %3060 = vmatpush1.msra.mxu0 0.0
        %3061 = vmatprep.subr.mxu0 0.0
        %3062 = vmatpush1.msra.mxu0 0.0
        %3063 = vmatprep.subr.mxu0 0.0
        %3064 = vmatpush1.msra.mxu0 0.0
        %3065 = vmatprep.subr.mxu0 0.0
        %3066 = vmatpush1.msra.mxu0 0.0
        %3067 = vmatprep.subr.mxu0 0.0
        %3068 = vmatpush1.msra.mxu0 0.0
        %3069 = vmatprep.subr.mxu0 0.0
        %3070 = vmatpush1.msra.mxu0 0.0
        %3071 = vmatprep.subr.mxu0 0.0
        %3072 = vmatpush1.msra.mxu0 0.0
        %3073 = vmatprep.subr.mxu0 0.0
        %3074 = vmatpush1.msra.mxu0 0.0
        %3075 = vmatprep.subr.mxu0 0.0
        %3076 = vmatpush1.msra.mxu0 0.0
        %3077 = vmatprep.subr.mxu0 0.0
        %3078 = vmatpush1.msra.mxu0 0.0
        %3079 = vmatprep.mubr.f32.mxu0 0.0
        %3080 = vmatmul.mubr.f32.gmra.mrb[0].mxu0 %v3013
        %v3081 = vpop.f32.mrb[0].mxu0
        %v3082 = vadd.f32 0.0, %v3081
        %v3083 = vpop.f32.mrb[0].mxu0
        %3084 = vdwg.mxu0
        %v3086 = vsel %vm2194, %v2936, 0
        %3088 = vmatprep.subr.mxu0 0.0
        %3089 = vmatpush1.msra.mxu0 %v2580
        %3090 = vmatprep.subr.mxu0 0.0
        %3091 = vmatpush1.msra.mxu0 %v2582
        %3092 = vmatprep.subr.mxu0 0.0
        %3093 = vmatpush1.msra.mxu0 0.0
        %3094 = vmatprep.subr.mxu0 0.0
        %3095 = vmatpush1.msra.mxu0 0.0
        %3096 = vmatprep.subr.mxu0 0.0
        %3097 = vmatpush1.msra.mxu0 0.0
        %3098 = vmatprep.subr.mxu0 0.0
        %3099 = vmatpush1.msra.mxu0 0.0
        %3100 = vmatprep.subr.mxu0 0.0
        %3101 = vmatpush1.msra.mxu0 0.0
        %3102 = vmatprep.subr.mxu0 0.0
        %3103 = vmatpush1.msra.mxu0 0.0
        %3104 = vmatprep.subr.mxu0 0.0
        %3105 = vmatpush1.msra.mxu0 0.0
        %3106 = vmatprep.subr.mxu0 0.0
        %3107 = vmatpush1.msra.mxu0 0.0
        %3108 = vmatprep.subr.mxu0 0.0
        %3109 = vmatpush1.msra.mxu0 0.0
        %3110 = vmatprep.subr.mxu0 0.0
        %3111 = vmatpush1.msra.mxu0 0.0
        %3112 = vmatprep.subr.mxu0 0.0
        %3113 = vmatpush1.msra.mxu0 0.0
        %3114 = vmatprep.subr.mxu0 0.0
        %3115 = vmatpush1.msra.mxu0 0.0
        %3116 = vmatprep.subr.mxu0 0.0
        %3117 = vmatpush1.msra.mxu0 0.0
        %3118 = vmatprep.subr.mxu0 0.0
        %3119 = vmatpush1.msra.mxu0 0.0
        %3120 = vmatprep.subr.mxu0 0.0
        %3121 = vmatpush1.msra.mxu0 0.0
        %3122 = vmatprep.subr.mxu0 0.0
        %3123 = vmatpush1.msra.mxu0 0.0
        %3124 = vmatprep.subr.mxu0 0.0
        %3125 = vmatpush1.msra.mxu0 0.0
        %3126 = vmatprep.subr.mxu0 0.0
        %3127 = vmatpush1.msra.mxu0 0.0
        %3128 = vmatprep.subr.mxu0 0.0
        %3129 = vmatpush1.msra.mxu0 0.0
        %3130 = vmatprep.subr.mxu0 0.0
        %3131 = vmatpush1.msra.mxu0 0.0
        %3132 = vmatprep.subr.mxu0 0.0
        %3133 = vmatpush1.msra.mxu0 0.0
        %3134 = vmatprep.subr.mxu0 0.0
        %3135 = vmatpush1.msra.mxu0 0.0
        %3136 = vmatprep.subr.mxu0 0.0
        %3137 = vmatpush1.msra.mxu0 0.0
        %3138 = vmatprep.subr.mxu0 0.0
        %3139 = vmatpush1.msra.mxu0 0.0
        %3140 = vmatprep.subr.mxu0 0.0
        %3141 = vmatpush1.msra.mxu0 0.0
        %3142 = vmatprep.subr.mxu0 0.0
        %3143 = vmatpush1.msra.mxu0 0.0
        %3144 = vmatprep.subr.mxu0 0.0
        %3145 = vmatpush1.msra.mxu0 0.0
        %3146 = vmatprep.subr.mxu0 0.0
        %3147 = vmatpush1.msra.mxu0 0.0
        %3148 = vmatprep.subr.mxu0 0.0
        %3149 = vmatpush1.msra.mxu0 0.0
        %3150 = vmatprep.subr.mxu0 0.0
        %3151 = vmatpush1.msra.mxu0 0.0
        %3152 = vmatprep.mubr.f32.mxu0 0.0
        %3153 = vmatmul.mubr.f32.gmra.mrb[0].mxu0 %v3086
        %v3154 = vpop.f32.mrb[0].mxu0
        %v3155 = vadd.f32 0.0, %v3154
        %v3156 = vpop.f32.mrb[0].mxu0
        %3157 = vdwg.mxu0
        %v3159 = vsel %vm2194, %v2938, 0
        %3161 = vmatprep.subr.mxu0 0.0
        %3162 = vmatpush1.msra.mxu0 %v2586
        %3163 = vmatprep.subr.mxu0 0.0
        %3164 = vmatpush1.msra.mxu0 %v2588
        %3165 = vmatprep.subr.mxu0 0.0
        %3166 = vmatpush1.msra.mxu0 0.0
        %3167 = vmatprep.subr.mxu0 0.0
        %3168 = vmatpush1.msra.mxu0 0.0
        %3169 = vmatprep.subr.mxu0 0.0
        %3170 = vmatpush1.msra.mxu0 0.0
        %3171 = vmatprep.subr.mxu0 0.0
        %3172 = vmatpush1.msra.mxu0 0.0
        %3173 = vmatprep.subr.mxu0 0.0
        %3174 = vmatpush1.msra.mxu0 0.0
        %3175 = vmatprep.subr.mxu0 0.0
        %3176 = vmatpush1.msra.mxu0 0.0
        %3177 = vmatprep.subr.mxu0 0.0
        %3178 = vmatpush1.msra.mxu0 0.0
        %3179 = vmatprep.subr.mxu0 0.0
        %3180 = vmatpush1.msra.mxu0 0.0
        %3181 = vmatprep.subr.mxu0 0.0
        %3182 = vmatpush1.msra.mxu0 0.0
        %3183 = vmatprep.subr.mxu0 0.0
        %3184 = vmatpush1.msra.mxu0 0.0
        %3185 = vmatprep.subr.mxu0 0.0
        %3186 = vmatpush1.msra.mxu0 0.0
        %3187 = vmatprep.subr.mxu0 0.0
        %3188 = vmatpush1.msra.mxu0 0.0
        %3189 = vmatprep.subr.mxu0 0.0
        %3190 = vmatpush1.msra.mxu0 0.0
        %3191 = vmatprep.subr.mxu0 0.0
        %3192 = vmatpush1.msra.mxu0 0.0
        %3193 = vmatprep.subr.mxu0 0.0
        %3194 = vmatpush1.msra.mxu0 0.0
        %3195 = vmatprep.subr.mxu0 0.0
        %3196 = vmatpush1.msra.mxu0 0.0
        %3197 = vmatprep.subr.mxu0 0.0
        %3198 = vmatpush1.msra.mxu0 0.0
        %3199 = vmatprep.subr.mxu0 0.0
        %3200 = vmatpush1.msra.mxu0 0.0
        %3201 = vmatprep.subr.mxu0 0.0
        %3202 = vmatpush1.msra.mxu0 0.0
        %3203 = vmatprep.subr.mxu0 0.0
        %3204 = vmatpush1.msra.mxu0 0.0
        %3205 = vmatprep.subr.mxu0 0.0
        %3206 = vmatpush1.msra.mxu0 0.0
        %3207 = vmatprep.subr.mxu0 0.0
        %3208 = vmatpush1.msra.mxu0 0.0
        %3209 = vmatprep.subr.mxu0 0.0
        %3210 = vmatpush1.msra.mxu0 0.0
        %3211 = vmatprep.subr.mxu0 0.0
        %3212 = vmatpush1.msra.mxu0 0.0
        %3213 = vmatprep.subr.mxu0 0.0
        %3214 = vmatpush1.msra.mxu0 0.0
        %3215 = vmatprep.subr.mxu0 0.0
        %3216 = vmatpush1.msra.mxu0 0.0
        %3217 = vmatprep.subr.mxu0 0.0
        %3218 = vmatpush1.msra.mxu0 0.0
        %3219 = vmatprep.subr.mxu0 0.0
        %3220 = vmatpush1.msra.mxu0 0.0
        %3221 = vmatprep.subr.mxu0 0.0
        %3222 = vmatpush1.msra.mxu0 0.0
        %3223 = vmatprep.subr.mxu0 0.0
        %3224 = vmatpush1.msra.mxu0 0.0
        %3225 = vmatprep.mubr.f32.mxu0 0.0
        %3226 = vmatmul.mubr.f32.gmra.mrb[0].mxu0 %v3159
        %v3227 = vpop.f32.mrb[0].mxu0
        %v3228 = vadd.f32 0.0, %v3227
        %v3229 = vpop.f32.mrb[0].mxu0
        %3230 = vdwg.mxu0
        %3232 = vrot.lane.b32.xlu0 %v3082, 8
        %v3233 = vpop.permute.xlu0 %3232
        %3236 = vrot.lane.b32.xlu0 %v3155, 16
        %v3237 = vpop.permute.xlu0 %3236
        %3240 = vrot.lane.b32.xlu0 %v3228, 24
        %v3241 = vpop.permute.xlu0 %3240
        %v3243 = vsel %vm1548, %v3009, %v3233
        %v3244 = vsel %vm2194, %v3243, %v3237
        %v3245 = vsel %vm2196, %v3244, %v3241
        %v3247 = vsel %vm1266, %v3245, 0
        %3249 = vmatprep.subr.mxu0 0.0
        %3250 = vmatpush1.msra.mxu0 %v2317
        %3251 = vmatprep.subr.mxu0 0.0
        %3252 = vmatpush1.msra.mxu0 %v2318
        %3253 = vmatprep.subr.mxu0 0.0
        %3254 = vmatpush1.msra.mxu0 %v2319
        %3255 = vmatprep.subr.mxu0 0.0
        %3256 = vmatpush1.msra.mxu0 %v2320
        %3257 = vmatprep.subr.mxu0 0.0
        %3258 = vmatpush1.msra.mxu0 0.0
        %3259 = vmatprep.subr.mxu0 0.0
        %3260 = vmatpush1.msra.mxu0 0.0
        %3261 = vmatprep.subr.mxu0 0.0
        %3262 = vmatpush1.msra.mxu0 0.0
        %3263 = vmatprep.subr.mxu0 0.0
        %3264 = vmatpush1.msra.mxu0 0.0
        %3265 = vmatprep.subr.mxu0 0.0
        %3266 = vmatpush1.msra.mxu0 0.0
        %3267 = vmatprep.subr.mxu0 0.0
        %3268 = vmatpush1.msra.mxu0 0.0
        %3269 = vmatprep.subr.mxu0 0.0
        %3270 = vmatpush1.msra.mxu0 0.0
        %3271 = vmatprep.subr.mxu0 0.0
        %3272 = vmatpush1.msra.mxu0 0.0
        %3273 = vmatprep.subr.mxu0 0.0
        %3274 = vmatpush1.msra.mxu0 0.0
        %3275 = vmatprep.subr.mxu0 0.0
        %3276 = vmatpush1.msra.mxu0 0.0
        %3277 = vmatprep.subr.mxu0 0.0
        %3278 = vmatpush1.msra.mxu0 0.0
        %3279 = vmatprep.subr.mxu0 0.0
        %3280 = vmatpush1.msra.mxu0 0.0
        %3281 = vmatprep.subr.mxu0 0.0
        %3282 = vmatpush1.msra.mxu0 0.0
        %3283 = vmatprep.subr.mxu0 0.0
        %3284 = vmatpush1.msra.mxu0 0.0
        %3285 = vmatprep.subr.mxu0 0.0
        %3286 = vmatpush1.msra.mxu0 0.0
        %3287 = vmatprep.subr.mxu0 0.0
        %3288 = vmatpush1.msra.mxu0 0.0
        %3289 = vmatprep.subr.mxu0 0.0
        %3290 = vmatpush1.msra.mxu0 0.0
        %3291 = vmatprep.subr.mxu0 0.0
        %3292 = vmatpush1.msra.mxu0 0.0
        %3293 = vmatprep.subr.mxu0 0.0
        %3294 = vmatpush1.msra.mxu0 0.0
        %3295 = vmatprep.subr.mxu0 0.0
        %3296 = vmatpush1.msra.mxu0 0.0
        %3297 = vmatprep.subr.mxu0 0.0
        %3298 = vmatpush1.msra.mxu0 0.0
        %3299 = vmatprep.subr.mxu0 0.0
        %3300 = vmatpush1.msra.mxu0 0.0
        %3301 = vmatprep.subr.mxu0 0.0
        %3302 = vmatpush1.msra.mxu0 0.0
        %3303 = vmatprep.subr.mxu0 0.0
        %3304 = vmatpush1.msra.mxu0 0.0
        %3305 = vmatprep.subr.mxu0 0.0
        %3306 = vmatpush1.msra.mxu0 0.0
        %3307 = vmatprep.subr.mxu0 0.0
        %3308 = vmatpush1.msra.mxu0 0.0
        %3309 = vmatprep.subr.mxu0 0.0
        %3310 = vmatpush1.msra.mxu0 0.0
        %3311 = vmatprep.subr.mxu0 0.0
        %3312 = vmatpush1.msra.mxu0 0.0
        %3313 = vmatprep.mubr.f32.mxu0 0.0
        %3314 = vmatmul.mubr.f32.gmra.mrb[0].mxu0 %v3247
        %v3315 = vpop.f32.mrb[0].mxu0
        %v3316 = vadd.f32 0.0, %v3315
        %v3317 = vpop.f32.mrb[0].mxu0
        %3318 = vdwg.mxu0
        %v3319 = vadd.f32 %v2275, %v3316
        %v3320 = vld [vmem:[%s1033] sm:$0x1]
        %v3321 = vld [vmem:[%s1041] sm:$0x1]
        %v3322 = vsel %vm1266, %v3319, 0.0
        %3323 = vadd.xlane.f32.xlu0 %v3322
        %v3324 = vpop.xlane.xlu0 %3323
        %v3325 = vmul.f32 %v3324, %v1270
        %v3326 = vsub.f32 %v3319, %v3325
        %v3327 = vmul.f32 %v3326, %v3326
        %v3328 = vsel %vm1266, %v3327, 0.0
        %3329 = vadd.xlane.f32.xlu0 %v3328
        %v3330 = vpop.xlane.xlu0 %3329
        %v3331 = vmul.f32 %v3330, %v1270
        %v3332 = vadd.f32 %v3331, 1e-05
        %v3333 = vrsqrt.pop %v3332
        %v3334 = vmul.f32 %v3326, %v3333
        %v3336 = vlaneseq
        %v3337 = vshrl.u32 %v3336, 7
        %v3338 = vsub.s32 0, %v3337
        %v3339 = vrot.slane %v3320, %v3338
        %v3341 = vmul.f32 %v3334, %v3339
        %v3343 = vlaneseq
        %v3344 = vshrl.u32 %v3343, 7
        %v3345 = vsub.s32 0, %v3344
        %v3346 = vrot.slane %v3321, %v3345
        %v3348 = vadd.f32 %v3341, %v3346
        %v3349 = vld [vmem:[%s1050] sm:$0xff]
        %v3350 = vld [vmem:[%s1050 + $0x8] sm:$0xff]
        %v3351 = vld [vmem:[%s1050 + $0x10] sm:$0xff]
        %v3352 = vld [vmem:[%s1050 + $0x18] sm:$0xff]
        %v3353 = vld [vmem:[%s1058] sm:$0x1]
        %v3355 = vlaneseq
        %v3356 = vshrl.u32 %v3355, 7
        %v3357 = vsub.s32 0, %v3356
        %v3358 = vrot.slane %v3353, %v3357
        %v3361 = vsel %vm1266, %v3348, 0
        %3363 = vmatprep.subr.mxu0 0.0
        %3364 = vmatpush1.msra.mxu0 %v3349
        %3365 = vmatprep.subr.mxu0 0.0
        %3366 = vmatpush1.msra.mxu0 %v3350
        %3367 = vmatprep.subr.mxu0 0.0
        %3368 = vmatpush1.msra.mxu0 %v3351
        %3369 = vmatprep.subr.mxu0 0.0
        %3370 = vmatpush1.msra.mxu0 %v3352
        %3371 = vmatprep.subr.mxu0 0.0
        %3372 = vmatpush1.msra.mxu0 0.0
        %3373 = vmatprep.subr.mxu0 0.0
        %3374 = vmatpush1.msra.mxu0 0.0
        %3375 = vmatprep.subr.mxu0 0.0
        %3376 = vmatpush1.msra.mxu0 0.0
        %3377 = vmatprep.subr.mxu0 0.0
        %3378 = vmatpush1.msra.mxu0 0.0
        %3379 = vmatprep.subr.mxu0 0.0
        %3380 = vmatpush1.msra.mxu0 0.0
        %3381 = vmatprep.subr.mxu0 0.0
        %3382 = vmatpush1.msra.mxu0 0.0
        %3383 = vmatprep.subr.mxu0 0.0
        %3384 = vmatpush1.msra.mxu0 0.0
        %3385 = vmatprep.subr.mxu0 0.0
        %3386 = vmatpush1.msra.mxu0 0.0
        %3387 = vmatprep.subr.mxu0 0.0
        %3388 = vmatpush1.msra.mxu0 0.0
        %3389 = vmatprep.subr.mxu0 0.0
        %3390 = vmatpush1.msra.mxu0 0.0
        %3391 = vmatprep.subr.mxu0 0.0
        %3392 = vmatpush1.msra.mxu0 0.0
        %3393 = vmatprep.subr.mxu0 0.0
        %3394 = vmatpush1.msra.mxu0 0.0
        %3395 = vmatprep.subr.mxu0 0.0
        %3396 = vmatpush1.msra.mxu0 0.0
        %3397 = vmatprep.subr.mxu0 0.0
        %3398 = vmatpush1.msra.mxu0 0.0
        %3399 = vmatprep.subr.mxu0 0.0
        %3400 = vmatpush1.msra.mxu0 0.0
        %3401 = vmatprep.subr.mxu0 0.0
        %3402 = vmatpush1.msra.mxu0 0.0
        %3403 = vmatprep.subr.mxu0 0.0
        %3404 = vmatpush1.msra.mxu0 0.0
        %3405 = vmatprep.subr.mxu0 0.0
        %3406 = vmatpush1.msra.mxu0 0.0
        %3407 = vmatprep.subr.mxu0 0.0
        %3408 = vmatpush1.msra.mxu0 0.0
        %3409 = vmatprep.subr.mxu0 0.0
        %3410 = vmatpush1.msra.mxu0 0.0
        %3411 = vmatprep.subr.mxu0 0.0
        %3412 = vmatpush1.msra.mxu0 0.0
        %3413 = vmatprep.subr.mxu0 0.0
        %3414 = vmatpush1.msra.mxu0 0.0
        %3415 = vmatprep.subr.mxu0 0.0
        %3416 = vmatpush1.msra.mxu0 0.0
        %3417 = vmatprep.subr.mxu0 0.0
        %3418 = vmatpush1.msra.mxu0 0.0
        %3419 = vmatprep.subr.mxu0 0.0
        %3420 = vmatpush1.msra.mxu0 0.0
        %3421 = vmatprep.subr.mxu0 0.0
        %3422 = vmatpush1.msra.mxu0 0.0
        %3423 = vmatprep.subr.mxu0 0.0
        %3424 = vmatpush1.msra.mxu0 0.0
        %3425 = vmatprep.subr.mxu0 0.0
        %3426 = vmatpush1.msra.mxu0 0.0
        %3427 = vmatprep.mubr.f32.mxu0 0.0
        %3428 = vmatmul.mubr.f32.gmra.mrb[0].mxu0 %v3361
        %v3429 = vpop.f32.mrb[0].mxu0
        %v3430 = vadd.f32 %v3358, %v3429
        %v3431 = vpop.f32.mrb[0].mxu0
        %3432 = vdwg.mxu0
        %v3433 = vmax.f32 %v3430, 0.0
        %v3434 = vld [vmem:[%s1247] sm:$0xff]
        %v3435 = vld [vmem:[%s1247 + $0x8] sm:$0xff]
        %v3436 = vld [vmem:[%s1247 + $0x10] sm:$0xff]
        %v3437 = vld [vmem:[%s1247 + $0x18] sm:$0xff]
        %v3438 = vld [vmem:[%s1247 + $0x20] sm:$0xff]
        %v3439 = vld [vmem:[%s1247 + $0x28] sm:$0xff]
        %v3440 = vld [vmem:[%s1247 + $0x30] sm:$0xff]
        %v3441 = vld [vmem:[%s1247 + $0x38] sm:$0xff]
        %v3442 = vld [vmem:[%s1247 + $0x40] sm:$0xff]
        %v3443 = vld [vmem:[%s1247 + $0x48] sm:$0xff]
        %v3444 = vld [vmem:[%s1247 + $0x50] sm:$0xff]
        %v3445 = vld [vmem:[%s1247 + $0x58] sm:$0xff]
        %v3446 = vld [vmem:[%s1247 + $0x60] sm:$0xff]
        %v3447 = vld [vmem:[%s1247 + $0x68] sm:$0xff]
        %v3448 = vld [vmem:[%s1247 + $0x70] sm:$0xff]
        %v3449 = vld [vmem:[%s1247 + $0x78] sm:$0xff]
        %3450 = vmatprep.subr.mxu0 0.0
        %3451 = vmatpush1.msra.mxu0 %v3434
        %3452 = vmatprep.subr.mxu0 0.0
        %3453 = vmatpush1.msra.mxu0 %v3435
        %3454 = vmatprep.subr.mxu0 0.0
        %3455 = vmatpush1.msra.mxu0 %v3436
        %3456 = vmatprep.subr.mxu0 0.0
        %3457 = vmatpush1.msra.mxu0 %v3437
        %3458 = vmatprep.subr.mxu0 0.0
        %3459 = vmatpush1.msra.mxu0 %v3438
        %3460 = vmatprep.subr.mxu0 0.0
        %3461 = vmatpush1.msra.mxu0 %v3439
        %3462 = vmatprep.subr.mxu0 0.0
        %3463 = vmatpush1.msra.mxu0 %v3440
        %3464 = vmatprep.subr.mxu0 0.0
        %3465 = vmatpush1.msra.mxu0 %v3441
        %3466 = vmatprep.subr.mxu0 0.0
        %3467 = vmatpush1.msra.mxu0 %v3442
        %3468 = vmatprep.subr.mxu0 0.0
        %3469 = vmatpush1.msra.mxu0 %v3443
        %3470 = vmatprep.subr.mxu0 0.0
        %3471 = vmatpush1.msra.mxu0 %v3444
        %3472 = vmatprep.subr.mxu0 0.0
        %3473 = vmatpush1.msra.mxu0 %v3445
        %3474 = vmatprep.subr.mxu0 0.0
        %3475 = vmatpush1.msra.mxu0 %v3446
        %3476 = vmatprep.subr.mxu0 0.0
        %3477 = vmatpush1.msra.mxu0 %v3447
        %3478 = vmatprep.subr.mxu0 0.0
        %3479 = vmatpush1.msra.mxu0 %v3448
        %3480 = vmatprep.subr.mxu0 0.0
        %3481 = vmatpush1.msra.mxu0 %v3449
        %3482 = vmatprep.subr.mxu0 0.0
        %3483 = vmatpush1.msra.mxu0 0.0
        %3484 = vmatprep.subr.mxu0 0.0
        %3485 = vmatpush1.msra.mxu0 0.0
        %3486 = vmatprep.subr.mxu0 0.0
        %3487 = vmatpush1.msra.mxu0 0.0
        %3488 = vmatprep.subr.mxu0 0.0
        %3489 = vmatpush1.msra.mxu0 0.0
        %3490 = vmatprep.subr.mxu0 0.0
        %3491 = vmatpush1.msra.mxu0 0.0
        %3492 = vmatprep.subr.mxu0 0.0
        %3493 = vmatpush1.msra.mxu0 0.0
        %3494 = vmatprep.subr.mxu0 0.0
        %3495 = vmatpush1.msra.mxu0 0.0
        %3496 = vmatprep.subr.mxu0 0.0
        %3497 = vmatpush1.msra.mxu0 0.0
        %3498 = vmatprep.subr.mxu0 0.0
        %3499 = vmatpush1.msra.mxu0 0.0
        %3500 = vmatprep.subr.mxu0 0.0
        %3501 = vmatpush1.msra.mxu0 0.0
        %3502 = vmatprep.subr.mxu0 0.0
        %3503 = vmatpush1.msra.mxu0 0.0
        %3504 = vmatprep.subr.mxu0 0.0
        %3505 = vmatpush1.msra.mxu0 0.0
        %3506 = vmatprep.subr.mxu0 0.0
        %3507 = vmatpush1.msra.mxu0 0.0
        %3508 = vmatprep.subr.mxu0 0.0
        %3509 = vmatpush1.msra.mxu0 0.0
        %3510 = vmatprep.subr.mxu0 0.0
        %3511 = vmatpush1.msra.mxu0 0.0
        %3512 = vmatprep.subr.mxu0 0.0
        %3513 = vmatpush1.msra.mxu0 0.0
        %3514 = vmatprep.mubr.f32.mxu0 0.0
        %3515 = vmatmul.mubr.f32.gmra.mrb[0].mxu0 %v3433
        %v3516 = vpop.f32.mrb[0].mxu0
        %v3517 = vadd.f32 0.0, %v3516
        %v3518 = vpop.f32.mrb[0].mxu0
        %3519 = vdwg.mxu0
        %v3520 = vadd.f32 %v3319, %v3517
        %v3521 = vld [vmem:[%s1066] sm:$0x1]
        %v3523 = vlaneseq
        %v3524 = vshrl.u32 %v3523, 7
        %v3525 = vsub.s32 0, %v3524
        %v3526 = vrot.slane %v3521, %v3525
        %v3528 = vadd.f32 %v3520, %v3526
        %3529 = vst.msk [vmem:[#allocation2] sm:$0xff] %vm1266, %v3528
        %p3530 = scmp.eq.s32.totalorder %s62, 1
        // Predicated region
        $region161: #{tpu_custom_call.1} parent=107 // pred_check
          %p3531 = pneg %p3530
        $region162: #{tpu_custom_call.1} parent=107 // pred_check_branch
          %3533 = sbr.rel (%p3531) target = $region164
        $region163: #{tpu_custom_call.1} parent=107 // pred_region
          %v3534 = vld [vmem:[%s20] sm:$0x1]
          %v3535 = vld [vmem:[%s21] sm:$0x1]
          %v3536 = vsel %vm1266, %v3528, 0.0
          %3537 = vadd.xlane.f32.xlu0 %v3536
          %v3538 = vpop.xlane.xlu0 %3537
          %v3539 = vmul.f32 %v3538, %v1270
          %v3540 = vsub.f32 %v3528, %v3539
          %v3541 = vmul.f32 %v3540, %v3540
          %v3542 = vsel %vm1266, %v3541, 0.0
          %3543 = vadd.xlane.f32.xlu0 %v3542
          %v3544 = vpop.xlane.xlu0 %3543
          %v3545 = vmul.f32 %v3544, %v1270
          %v3546 = vadd.f32 %v3545, 1e-05
          %v3547 = vrsqrt.pop %v3546
          %v3548 = vmul.f32 %v3540, %v3547
          %v3550 = vlaneseq
          %v3551 = vshrl.u32 %v3550, 7
          %v3552 = vsub.s32 0, %v3551
          %v3553 = vrot.slane %v3534, %v3552
          %v3555 = vmul.f32 %v3548, %v3553
          %v3557 = vlaneseq
          %v3558 = vshrl.u32 %v3557, 7
          %v3559 = vsub.s32 0, %v3558
          %v3560 = vrot.slane %v3535, %v3559
          %v3562 = vadd.f32 %v3555, %v3560
          %3563 = vst.msk [vmem:[%s1211] sm:$0xff] %vm1266, %v3562
        $region164: #{tpu_custom_call.1} parent=107 // pred_fallthru
          _
        %s3564 = sand.u32 %s639, 1
        %s3565 = scalar_lea.sflag [#allocation5], %s3564
        %s3566 = sand.u32 %s639, 1
        %s3567 = smul.addr %s3566, 8
        %s3568 = scalar_lea.vmem [#allocation23], %s3567
        // Predicated region
        $region165: #{tpu_custom_call.1} parent=107 // pred_check
          %p3569 = pneg %p649
        $region166: #{tpu_custom_call.1} parent=107 // pred_check_branch
          %3571 = sbr.rel (%p3569) target = $region168
        $region167: #{tpu_custom_call.1} parent=107 // pred_region
          %s3573 = ssub.s32 128, 128
          %3574 = vsyncadd %s3565, %s3573
          %s3575 = smul.addr %s61, 128
          %s3576 = scalar_lea.hbm %s22, %s3575
          %s3578 = sshll.u32 %s3568, 4
          %s3579 = int_to_ptr.vmem [resolvable:$true] %s3578
          %3581 = dma.vmem_to_hbm [thread:$0]  %s3579, 128, %s3576, %s3565
        $region168: #{tpu_custom_call.1} parent=107 // pred_fallthru
          _
      $region108: #{tpu_custom_call.1} parent=5 // pred_fallthru
        _
      %p3582 = scmp.le.s32.totalorder 2, %s52
      // Predicated region
      $region169: #{tpu_custom_call.1} parent=5 // pred_check
        %p3583 = pneg %p3582
      $region170: #{tpu_custom_call.1} parent=5 // pred_check_branch
        %3585 = sbr.rel (%p3583) target = $region172
      $region171: #{tpu_custom_call.1} parent=5 // pred_region
        %s3586 = ssub.s32 %s52, 2
        // Predicated region
        $region173: #{tpu_custom_call.1} parent=171 // pred_check
          %p3587 = pneg %p655
        $region174: #{tpu_custom_call.1} parent=171 // pred_check_branch
          %3589 = sbr.rel (%p3587) target = $region176
        $region175: #{tpu_custom_call.1} parent=171 // pred_region
          %s3590 = sand.u32 %s640, 1
          %s3591 = scalar_lea.sflag [#allocation5], %s3590
          %s3592 = sand.u32 %s640, 1
          %s3593 = smul.addr %s3592, 8
          %s3594 = scalar_lea.vmem [#allocation23], %s3593
          %3595 = dma.done %s3591, 128
        $region176: #{tpu_custom_call.1} parent=171 // pred_fallthru
          _
      $region172: #{tpu_custom_call.1} parent=5 // pred_fallthru
        _
    $region6: #{tpu_custom_call.1} parent=1 // loop_footer
      %s56 = sadd.s32 1, %s52
    $region7: #{tpu_custom_call.1} parent=1 // loop_footer_branch
      %51 = sbr.rel target = $region3
    $region8: #{tpu_custom_call.1} parent=1 // loop_exit
      _
    %3596 = vsyncpa [#allocation4], 1
    %s3597 = scalar_lea.sflag [#allocation4], 1
    %3598 = vsyncpa %s3597, 1
    %3599 = vsyncpa [#allocation7], 1
    %s3600 = scalar_lea.sflag [#allocation7], 1
    %3601 = vsyncpa %s3600, 1
    %3602 = vsyncpa [#allocation10], 1
    %s3603 = scalar_lea.sflag [#allocation10], 1
    %3604 = vsyncpa %s3603, 1
    %3605 = vsyncpa [#allocation13], 1
    %s3606 = scalar_lea.sflag [#allocation13], 1
    %3607 = vsyncpa %s3606, 1
    %3608 = vsyncpa [#allocation16], 1
    %s3609 = scalar_lea.sflag [#allocation16], 1
    %3610 = vsyncpa %s3609, 1
    %3611 = vsyncpa [#allocation19], 1
    %s3612 = scalar_lea.sflag [#allocation19], 1
    %3613 = vsyncpa %s3612, 1
    %3614 = vsyncpa [#allocation22], 1
    %s3615 = scalar_lea.sflag [#allocation22], 1
    %3616 = vsyncpa %s3615, 1
    %3617 = vsyncpa [#allocation5], 1
    %s3618 = scalar_lea.sflag [#allocation5], 1
    %3619 = vsyncpa %s3618, 1

</llo_original>
